<compile_context>
chip_gen: v6e
topology: v6e:2x2x1
jax: 0.10.0
libtpu: 0.0.40
codegen_flags: <defaults>
</compile_context>

<pallas_src>
import jax
import jax.numpy as jnp
from jax.experimental import pallas as pl
from jax.experimental.pallas import tpu as pltpu


# ----------------------------- fused Pallas kernel ---------------------------

def _fused_net_kernel(p1_ref, w1_ref, b1_ref, w2_ref, b2_ref,
                      wf1_ref, bf1_ref, wf2_ref, bf2_ref, o_ref,
                      a1pad_ref, p2_ref):
    f32, bf16 = jnp.float32, jnp.bfloat16
    Bt = o_ref.shape[0]           # images in this batch tile
    BN = 64 * Bt                  # rows of pooled conv1 act / rows per 3x3-pool tap
    CN = 8 * Bt                   # row stride of cj in a1p ; rows per oj block in a2
    M2 = 32 * Bt                  # conv2 patch rows (incl. unused oi>=4 filler rows)

    # ---- conv1: [9*64*Bt, 25] @ [25, 32], fp32 accumulation -------------------
    a1 = jnp.dot(p1_ref[...], w1_ref[...], preferred_element_type=f32)

    # ---- 3x3/3 maxpool: max over 9 contiguous, aligned row blocks (tree) ------
    blocks = [a1[t * BN:(t + 1) * BN] for t in range(9)]
    while len(blocks) > 1:
        nxt = [jnp.maximum(blocks[i], blocks[i + 1])
               for i in range(0, len(blocks) - 1, 2)]
        if len(blocks) % 2:
            nxt.append(blocks[-1])
        blocks = nxt
    # bias AFTER the pool (max(x)+b == max(x+b)), then relu.
    a1p = jnp.maximum(blocks[0] + b1_ref[...], 0.0)     # [64*Bt, 32] rows (cj, ci, b)

    # ---- conv2 im2col: 25 shifted contiguous row windows of the padded act ----
    a1pad_ref[0:BN, :] = a1p
    a1pad_ref[BN:, :] = jnp.zeros((CN, 32), f32)
    for kh in range(5):
        for kw in range(5):
            t = kh * 5 + kw
            off = kw * CN + kh * Bt
            # window rows (oj, oi, b) = a1p[cj=oj+kw, ci=oi+kh, b]; rows with
            # oi>=4 are filler and are never read by the 2x2 pool below.
            p2_ref[:, t * 32:(t + 1) * 32] = a1pad_ref[off:off + M2, :]

    # ---- conv2 as ONE deep-K matmul: [32*Bt, 800] @ [800, 64] -----------------
    p2 = p2_ref[...].astype(bf16)
    a2 = jnp.dot(p2, w2_ref[...], preferred_element_type=f32)  # rows (oj, oi, b)

    # ---- 2x2/2 maxpool via contiguous row-block maxima; bias+relu after -------
    c0 = jnp.maximum(a2[0 * CN:1 * CN], a2[1 * CN:2 * CN])     # oj in {0,1} -> pj=0
    c1 = jnp.maximum(a2[2 * CN:3 * CN], a2[3 * CN:4 * CN])     # oj in {2,3} -> pj=1

    def pooled(c, pi):
        lo = 2 * pi * Bt
        s = jnp.maximum(c[lo:lo + Bt], c[lo + Bt:lo + 2 * Bt])  # [Bt, 64]
        return jnp.maximum(s + b2_ref[...], 0.0)

    s00, s01 = pooled(c0, 0), pooled(c1, 0)    # pi=0, pj=0/1
    s10, s11 = pooled(c0, 1), pooled(c1, 1)    # pi=1, pj=0/1

    # ---- fc1: single K=256 matmul (torch NCHW flatten folded into weights) ----
    x1 = jnp.concatenate([s00, s01, s10, s11], axis=1).astype(bf16)   # [Bt, 256]
    y1 = jnp.dot(x1, wf1_ref[...], preferred_element_type=f32) + bf1_ref[...]
    y1 = jnp.maximum(y1, 0.0).astype(bf16)                            # [Bt, H]

    # ---- fc2 (output padded to 128 lanes -> lane-dense store) ------------------
    out = jnp.dot(y1, wf2_ref[...], preferred_element_type=f32) + bf2_ref[...]
    o_ref[...] = out.astype(o_ref.dtype)


# --------------------------- wrapper-side (one-time) --------------------------

def prepare_params(params):
    """Offline, batch-independent weight repacking into matmul-native layouts:
    bf16 MXU operands, conv2 weights flattened to K=800, the torch NCHW flatten
    absorbed into fc1's row order, fc2 padded to 128 output lanes."""
    bf16, f32 = jnp.bfloat16, jnp.float32
    H = params["wf1"].shape[0]
    w2p = params["w2"].transpose(2, 3, 1, 0).reshape(25 * 32, 64).astype(bf16)
    wf1p = params["wf1"].reshape(H, 64, 4).transpose(2, 1, 0).reshape(256, H).astype(bf16)
    wf2p = jnp.zeros((H, 128), bf16).at[:, :10].set(params["wf2"].T.astype(bf16))
    bf2p = jnp.zeros((1, 128), f32).at[:, :10].set(params["bf2"].astype(f32))
    return {
        "w1": params["w1"].reshape(32, 25).T.astype(bf16),   # [25, 32]
        "b1": params["b1"].reshape(1, 32).astype(f32),
        "w2": w2p,                                           # [800, 64], rows (kh,kw,cin)
        "b2": params["b2"].reshape(1, 64).astype(f32),
        "wf1": wf1p,                                         # [256, H], rows (s, cout)
        "bf1": params["bf1"].reshape(1, H).astype(f32),
        "wf2": wf2p,                                         # [H, 128] (10 real cols)
        "bf2": bf2p,                                         # [1, 128]
    }


def _pick_batch_tile(B, max_tile=8):
    for t in range(min(B, max_tile), 0, -1):
        if B % t == 0:
            return t
    return 1


def _build_conv1_patches(x, Bt):
    """x: [B,1,28,28] -> bf16 conv1 im2col patches [nb, 9*64*Bt, 25].
    Rows (per tile) ordered (di, dj, cj, ci, b): the 3x3 pool becomes a max over
    9 contiguous row blocks, and the pooled rows come out ordered (cj, ci, b) so
    every conv2 tap is a single contiguous shifted row window."""
    B = x.shape[0]
    nb = B // Bt
    xi = x[:, 0]                                                       # [B, 28, 28]
    cols = jnp.stack([xi[:, kh:kh + 24, kw:kw + 24]
                      for kh in range(5) for kw in range(5)], axis=-1)  # [B,24,24,25]
    cols = cols.reshape(B, 8, 3, 8, 3, 25)           # (b, ci, di, cj, dj, tap)
    cols = cols.reshape(nb, Bt, 8, 3, 8, 3, 25)
    p1 = cols.transpose(0, 3, 5, 4, 2, 1, 6)         # (nb, di, dj, cj, ci, b, tap)
    return p1.reshape(nb, 9 * 64 * Bt, 25).astype(jnp.bfloat16)


@jax.jit
def net_forward(prep, x):
    """x: [B,1,28,28] -> logits [B,10] via a single batch-tiled pallas_call."""
    B = x.shape[0]
    Bt = _pick_batch_tile(B)
    nb = B // Bt
    p1 = _build_conv1_patches(x, Bt)

    def full(a):
        return pl.BlockSpec(a.shape, lambda i, _nd=a.ndim: (0,) * _nd)

    res = pl.pallas_call(
        _fused_net_kernel,
        out_shape=jax.ShapeDtypeStruct((nb, Bt, 128), jnp.float32),
        grid=(nb,),
        in_specs=[pl.BlockSpec((None, 9 * 64 * Bt, 25), lambda i: (i, 0, 0)),
                  full(prep["w1"]), full(prep["b1"]),
                  full(prep["w2"]), full(prep["b2"]),
                  full(prep["wf1"]), full(prep["bf1"]),
                  full(prep["wf2"]), full(prep["bf2"])],
        out_specs=pl.BlockSpec((None, Bt, 128), lambda i: (i, 0, 0)),
        scratch_shapes=[pltpu.VMEM((72 * Bt, 32), jnp.float32),
                        pltpu.VMEM((32 * Bt, 800), jnp.float32)],
        compiler_params=pltpu.CompilerParams(
            dimension_semantics=("parallel",),
            vmem_limit_bytes=32 * 1024 * 1024),
    )(p1, prep["w1"], prep["b1"], prep["w2"], prep["b2"],
      prep["wf1"], prep["bf1"], prep["wf2"], prep["bf2"])
    return res.reshape(B, 128)[:, :10]


# ------------------------------ plain-JAX reference ---------------------------

def net_forward_reference(params, x):
    def conv(x, w, b):
        y = jax.lax.conv_general_dilated(
            x, w, window_strides=(1, 1), padding="VALID",
            dimension_numbers=("NCHW", "OIHW", "NCHW"))
        return y + b.reshape(1, -1, 1, 1)

    def pool_relu(x, k):
        B, C, Hh, Ww = x.shape
        Ho, Wo = Hh // k, Ww // k
        y = x[:, :, :Ho * k, :Wo * k].reshape(B, C, Ho, k, Wo, k).max(axis=(3, 5))
        return jnp.maximum(y, 0.0)

    x = pool_relu(conv(x, params["w1"], params["b1"]), 3)
    x = pool_relu(conv(x, params["w2"], params["b2"]), 2)
    x = x.reshape(x.shape[0], -1)
    x = jnp.maximum(x @ params["wf1"].T + params["bf1"], 0.0)
    return x @ params["wf2"].T + params["bf2"]


# --------------------------------- main ---------------------------------------

if __name__ == "__main__":
    num_hidden = 32
    batch = 2
    key = jax.random.PRNGKey(0)
    ks = jax.random.split(key, 9)

    def uinit(k, shape, fan_in):
        bound = 1.0 / (fan_in ** 0.5)
        return jax.random.uniform(k, shape, jnp.float32, -bound, bound)

    params = {
        "w1": uinit(ks[0], (32, 1, 5, 5), 1 * 5 * 5),
        "b1": uinit(ks[1], (32,), 1 * 5 * 5),
        "w2": uinit(ks[2], (64, 32, 5, 5), 32 * 5 * 5),
        "b2": uinit(ks[3], (64,), 32 * 5 * 5),
        "wf1": uinit(ks[4], (num_hidden, 256), 256),
        "bf1": uinit(ks[5], (num_hidden,), 256),
        "wf2": uinit(ks[6], (10, num_hidden), num_hidden),
        "bf2": uinit(ks[7], (10,), num_hidden),
    }

    # fc1 expects 256 = 64*2*2 features -> 28x28 single-channel input (MNIST-like).
    x = jax.random.normal(ks[8], (batch, 1, 28, 28), jnp.float32)

    prep = prepare_params(params)          # one-time, batch-independent repacking
    out = net_forward(prep, x)
    jax.block_until_ready(out)

    assert out.shape == (batch, 10) and out.dtype == jnp.float32
    ref = jax.jit(net_forward_reference)(params, x)
    max_err = float(jnp.max(jnp.abs(out - ref)))
    assert max_err < 0.15, f"mismatch vs reference: max abs err {max_err}"
    print("KERNEL_OK")
</pallas_src>

<mosaic_0001>
module attributes {stable_mosaic.version = 11 : i64} {
  func.func @_fused_net_kernel(%arg0: i32, %arg1: memref<1x1152x25xbf16, #tpu.memory_space<vmem>>, %arg2: memref<25x32xbf16, #tpu.memory_space<vmem>>, %arg3: memref<1x32xf32, #tpu.memory_space<vmem>>, %arg4: memref<800x64xbf16, #tpu.memory_space<vmem>>, %arg5: memref<1x64xf32, #tpu.memory_space<vmem>>, %arg6: memref<256x32xbf16, #tpu.memory_space<vmem>>, %arg7: memref<1x32xf32, #tpu.memory_space<vmem>>, %arg8: memref<32x128xbf16, #tpu.memory_space<vmem>>, %arg9: memref<1x128xf32, #tpu.memory_space<vmem>>, %arg10: memref<1x2x128xf32, #tpu.memory_space<vmem>>, %arg11: memref<144x32xf32, #tpu.memory_space<vmem>>, %arg12: memref<64x800xf32, #tpu.memory_space<vmem>>) attributes {dimension_semantics = [#tpu.dimension_semantics<parallel>], iteration_bounds = array<i64: 1>, scalar_prefetch = 0 : i64, scratch_operands = 2 : i64, tpu.core_type = #tpu.core_type<tc>, window_params = [{transform_indices = @transform_0, window_bounds = array<i64: 1, 1152, 25>}, {pipeline_mode = #tpu.pipeline_mode<synchronous>, transform_indices = @transform_1, window_bounds = array<i64: 25, 32>}, {pipeline_mode = #tpu.pipeline_mode<synchronous>, transform_indices = @transform_2, window_bounds = array<i64: 1, 32>}, {pipeline_mode = #tpu.pipeline_mode<synchronous>, transform_indices = @transform_3, window_bounds = array<i64: 800, 64>}, {pipeline_mode = #tpu.pipeline_mode<synchronous>, transform_indices = @transform_4, window_bounds = array<i64: 1, 64>}, {pipeline_mode = #tpu.pipeline_mode<synchronous>, transform_indices = @transform_5, window_bounds = array<i64: 256, 32>}, {pipeline_mode = #tpu.pipeline_mode<synchronous>, transform_indices = @transform_6, window_bounds = array<i64: 1, 32>}, {pipeline_mode = #tpu.pipeline_mode<synchronous>, transform_indices = @transform_7, window_bounds = array<i64: 32, 128>}, {pipeline_mode = #tpu.pipeline_mode<synchronous>, transform_indices = @transform_8, window_bounds = array<i64: 1, 128>}, {transform_indices = @transform_9, window_bounds = array<i64: 1, 2, 128>}]} {
    %c0 = arith.constant 0 : index
    %c0_0 = arith.constant 0 : index
    %c0_1 = arith.constant 0 : index
    %0 = vector.load %arg1[%c0, %c0_0, %c0_1] : memref<1x1152x25xbf16, #tpu.memory_space<vmem>>, vector<1x1152x25xbf16>
    %1 = vector.shape_cast %0 : vector<1x1152x25xbf16> to vector<1152x25xbf16>
    %c0_2 = arith.constant 0 : index
    %c0_3 = arith.constant 0 : index
    %2 = vector.load %arg2[%c0_2, %c0_3] : memref<25x32xbf16, #tpu.memory_space<vmem>>, vector<25x32xbf16>
    %cst = arith.constant dense<0.000000e+00> : vector<1152x32xf32>
    %3 = tpu.matmul %1, %2, %cst {dimension_numbers = #tpu.dot_dimension_numbers<[1], [0], [0], [1], [0, 0, 1, 1], [], []>} : vector<1152x25xbf16>, vector<25x32xbf16>, vector<1152x32xf32> -> vector<1152x32xf32>
    %4 = vector.extract_strided_slice %3 {offsets = [0, 0], sizes = [128, 32], strides = [1, 1]} : vector<1152x32xf32> to vector<128x32xf32>
    %5 = vector.extract_strided_slice %3 {offsets = [128, 0], sizes = [128, 32], strides = [1, 1]} : vector<1152x32xf32> to vector<128x32xf32>
    %6 = vector.extract_strided_slice %3 {offsets = [256, 0], sizes = [128, 32], strides = [1, 1]} : vector<1152x32xf32> to vector<128x32xf32>
    %7 = vector.extract_strided_slice %3 {offsets = [384, 0], sizes = [128, 32], strides = [1, 1]} : vector<1152x32xf32> to vector<128x32xf32>
    %8 = vector.extract_strided_slice %3 {offsets = [512, 0], sizes = [128, 32], strides = [1, 1]} : vector<1152x32xf32> to vector<128x32xf32>
    %9 = vector.extract_strided_slice %3 {offsets = [640, 0], sizes = [128, 32], strides = [1, 1]} : vector<1152x32xf32> to vector<128x32xf32>
    %10 = vector.extract_strided_slice %3 {offsets = [768, 0], sizes = [128, 32], strides = [1, 1]} : vector<1152x32xf32> to vector<128x32xf32>
    %11 = vector.extract_strided_slice %3 {offsets = [896, 0], sizes = [128, 32], strides = [1, 1]} : vector<1152x32xf32> to vector<128x32xf32>
    %12 = vector.extract_strided_slice %3 {offsets = [1024, 0], sizes = [128, 32], strides = [1, 1]} : vector<1152x32xf32> to vector<128x32xf32>
    %13 = arith.maximumf %4, %5 : vector<128x32xf32>
    %14 = arith.maximumf %6, %7 : vector<128x32xf32>
    %15 = arith.maximumf %8, %9 : vector<128x32xf32>
    %16 = arith.maximumf %10, %11 : vector<128x32xf32>
    %17 = arith.maximumf %13, %14 : vector<128x32xf32>
    %18 = arith.maximumf %15, %16 : vector<128x32xf32>
    %19 = arith.maximumf %17, %18 : vector<128x32xf32>
    %20 = arith.maximumf %19, %12 : vector<128x32xf32>
    %c0_4 = arith.constant 0 : index
    %c0_5 = arith.constant 0 : index
    %21 = vector.load %arg3[%c0_4, %c0_5] : memref<1x32xf32, #tpu.memory_space<vmem>>, vector<1x32xf32>
    %22 = vector.broadcast %21 : vector<1x32xf32> to vector<128x32xf32>
    %23 = arith.addf %20, %22 : vector<128x32xf32>
    %cst_6 = arith.constant 0.000000e+00 : f32
    %24 = vector.broadcast %cst_6 : f32 to vector<128x32xf32>
    %25 = arith.maximumf %23, %24 : vector<128x32xf32>
    %c0_7 = arith.constant 0 : index
    %c0_8 = arith.constant 0 : index
    %26 = vector.load %arg11[%c0_7, %c0_8] : memref<144x32xf32, #tpu.memory_space<vmem>>, vector<128x32xf32>
    tpu.vector_store %arg11[%c0_7, %c0_8], %25 {strides = array<i32>} : memref<144x32xf32, #tpu.memory_space<vmem>>, vector<128x32xf32>,
    %cst_9 = arith.constant 0.000000e+00 : f32
    %27 = vector.broadcast %cst_9 : f32 to vector<16x32xf32>
    %c128 = arith.constant 128 : index
    %c0_10 = arith.constant 0 : index
    %28 = vector.load %arg11[%c128, %c0_10] : memref<144x32xf32, #tpu.memory_space<vmem>>, vector<16x32xf32>
    tpu.vector_store %arg11[%c128, %c0_10], %27 {strides = array<i32>} : memref<144x32xf32, #tpu.memory_space<vmem>>, vector<16x32xf32>,
    %c0_11 = arith.constant 0 : index
    %c0_12 = arith.constant 0 : index
    %29 = vector.load %arg11[%c0_11, %c0_12] : memref<144x32xf32, #tpu.memory_space<vmem>>, vector<64x32xf32>
    %c0_13 = arith.constant 0 : index
    %c0_14 = arith.constant 0 : index
    %30 = vector.load %arg12[%c0_13, %c0_14] : memref<64x800xf32, #tpu.memory_space<vmem>>, vector<64x32xf32>
    tpu.vector_store %arg12[%c0_13, %c0_14], %29 {strides = array<i32>} : memref<64x800xf32, #tpu.memory_space<vmem>>, vector<64x32xf32>,
    %c16 = arith.constant 16 : index
    %c0_15 = arith.constant 0 : index
    %31 = vector.load %arg11[%c16, %c0_15] : memref<144x32xf32, #tpu.memory_space<vmem>>, vector<64x32xf32>
    %c0_16 = arith.constant 0 : index
    %c32 = arith.constant 32 : index
    %32 = vector.load %arg12[%c0_16, %c32] : memref<64x800xf32, #tpu.memory_space<vmem>>, vector<64x32xf32>
    tpu.vector_store %arg12[%c0_16, %c32], %31 {strides = array<i32>} : memref<64x800xf32, #tpu.memory_space<vmem>>, vector<64x32xf32>,
    %c32_17 = arith.constant 32 : index
    %c0_18 = arith.constant 0 : index
    %33 = vector.load %arg11[%c32_17, %c0_18] : memref<144x32xf32, #tpu.memory_space<vmem>>, vector<64x32xf32>
    %c0_19 = arith.constant 0 : index
    %c64 = arith.constant 64 : index
    %34 = vector.load %arg12[%c0_19, %c64] : memref<64x800xf32, #tpu.memory_space<vmem>>, vector<64x32xf32>
    tpu.vector_store %arg12[%c0_19, %c64], %33 {strides = array<i32>} : memref<64x800xf32, #tpu.memory_space<vmem>>, vector<64x32xf32>,
    %c48 = arith.constant 48 : index
    %c0_20 = arith.constant 0 : index
    %35 = vector.load %arg11[%c48, %c0_20] : memref<144x32xf32, #tpu.memory_space<vmem>>, vector<64x32xf32>
    %c0_21 = arith.constant 0 : index
    %c96 = arith.constant 96 : index
    %36 = vector.load %arg12[%c0_21, %c96] : memref<64x800xf32, #tpu.memory_space<vmem>>, vector<64x32xf32>
    tpu.vector_store %arg12[%c0_21, %c96], %35 {strides = array<i32>} : memref<64x800xf32, #tpu.memory_space<vmem>>, vector<64x32xf32>,
    %c64_22 = arith.constant 64 : index
    %c0_23 = arith.constant 0 : index
    %37 = vector.load %arg11[%c64_22, %c0_23] : memref<144x32xf32, #tpu.memory_space<vmem>>, vector<64x32xf32>
    %c0_24 = arith.constant 0 : index
    %c128_25 = arith.constant 128 : index
    %38 = vector.load %arg12[%c0_24, %c128_25] : memref<64x800xf32, #tpu.memory_space<vmem>>, vector<64x32xf32>
    tpu.vector_store %arg12[%c0_24, %c128_25], %37 {strides = array<i32>} : memref<64x800xf32, #tpu.memory_space<vmem>>, vector<64x32xf32>,
    %c2 = arith.constant 2 : index
    %c0_26 = arith.constant 0 : index
    %39 = vector.load %arg11[%c2, %c0_26] : memref<144x32xf32, #tpu.memory_space<vmem>>, vector<64x32xf32>
    %c0_27 = arith.constant 0 : index
    %c160 = arith.constant 160 : index
    %40 = vector.load %arg12[%c0_27, %c160] : memref<64x800xf32, #tpu.memory_space<vmem>>, vector<64x32xf32>
    tpu.vector_store %arg12[%c0_27, %c160], %39 {strides = array<i32>} : memref<64x800xf32, #tpu.memory_space<vmem>>, vector<64x32xf32>,
    %c18 = arith.constant 18 : index
    %c0_28 = arith.constant 0 : index
    %41 = vector.load %arg11[%c18, %c0_28] : memref<144x32xf32, #tpu.memory_space<vmem>>, vector<64x32xf32>
    %c0_29 = arith.constant 0 : index
    %c192 = arith.constant 192 : index
    %42 = vector.load %arg12[%c0_29, %c192] : memref<64x800xf32, #tpu.memory_space<vmem>>, vector<64x32xf32>
    tpu.vector_store %arg12[%c0_29, %c192], %41 {strides = array<i32>} : memref<64x800xf32, #tpu.memory_space<vmem>>, vector<64x32xf32>,
    %c34 = arith.constant 34 : index
    %c0_30 = arith.constant 0 : index
    %43 = vector.load %arg11[%c34, %c0_30] : memref<144x32xf32, #tpu.memory_space<vmem>>, vector<64x32xf32>
    %c0_31 = arith.constant 0 : index
    %c224 = arith.constant 224 : index
    %44 = vector.load %arg12[%c0_31, %c224] : memref<64x800xf32, #tpu.memory_space<vmem>>, vector<64x32xf32>
    tpu.vector_store %arg12[%c0_31, %c224], %43 {strides = array<i32>} : memref<64x800xf32, #tpu.memory_space<vmem>>, vector<64x32xf32>,
    %c50 = arith.constant 50 : index
    %c0_32 = arith.constant 0 : index
    %45 = vector.load %arg11[%c50, %c0_32] : memref<144x32xf32, #tpu.memory_space<vmem>>, vector<64x32xf32>
    %c0_33 = arith.constant 0 : index
    %c256 = arith.constant 256 : index
    %46 = vector.load %arg12[%c0_33, %c256] : memref<64x800xf32, #tpu.memory_space<vmem>>, vector<64x32xf32>
    tpu.vector_store %arg12[%c0_33, %c256], %45 {strides = array<i32>} : memref<64x800xf32, #tpu.memory_space<vmem>>, vector<64x32xf32>,
    %c66 = arith.constant 66 : index
    %c0_34 = arith.constant 0 : index
    %47 = vector.load %arg11[%c66, %c0_34] : memref<144x32xf32, #tpu.memory_space<vmem>>, vector<64x32xf32>
    %c0_35 = arith.constant 0 : index
    %c288 = arith.constant 288 : index
    %48 = vector.load %arg12[%c0_35, %c288] : memref<64x800xf32, #tpu.memory_space<vmem>>, vector<64x32xf32>
    tpu.vector_store %arg12[%c0_35, %c288], %47 {strides = array<i32>} : memref<64x800xf32, #tpu.memory_space<vmem>>, vector<64x32xf32>,
    %c4 = arith.constant 4 : index
    %c0_36 = arith.constant 0 : index
    %49 = vector.load %arg11[%c4, %c0_36] : memref<144x32xf32, #tpu.memory_space<vmem>>, vector<64x32xf32>
    %c0_37 = arith.constant 0 : index
    %c320 = arith.constant 320 : index
    %50 = vector.load %arg12[%c0_37, %c320] : memref<64x800xf32, #tpu.memory_space<vmem>>, vector<64x32xf32>
    tpu.vector_store %arg12[%c0_37, %c320], %49 {strides = array<i32>} : memref<64x800xf32, #tpu.memory_space<vmem>>, vector<64x32xf32>,
    %c20 = arith.constant 20 : index
    %c0_38 = arith.constant 0 : index
    %51 = vector.load %arg11[%c20, %c0_38] : memref<144x32xf32, #tpu.memory_space<vmem>>, vector<64x32xf32>
    %c0_39 = arith.constant 0 : index
    %c352 = arith.constant 352 : index
    %52 = vector.load %arg12[%c0_39, %c352] : memref<64x800xf32, #tpu.memory_space<vmem>>, vector<64x32xf32>
    tpu.vector_store %arg12[%c0_39, %c352], %51 {strides = array<i32>} : memref<64x800xf32, #tpu.memory_space<vmem>>, vector<64x32xf32>,
    %c36 = arith.constant 36 : index
    %c0_40 = arith.constant 0 : index
    %53 = vector.load %arg11[%c36, %c0_40] : memref<144x32xf32, #tpu.memory_space<vmem>>, vector<64x32xf32>
    %c0_41 = arith.constant 0 : index
    %c384 = arith.constant 384 : index
    %54 = vector.load %arg12[%c0_41, %c384] : memref<64x800xf32, #tpu.memory_space<vmem>>, vector<64x32xf32>
    tpu.vector_store %arg12[%c0_41, %c384], %53 {strides = array<i32>} : memref<64x800xf32, #tpu.memory_space<vmem>>, vector<64x32xf32>,
    %c52 = arith.constant 52 : index
    %c0_42 = arith.constant 0 : index
    %55 = vector.load %arg11[%c52, %c0_42] : memref<144x32xf32, #tpu.memory_space<vmem>>, vector<64x32xf32>
    %c0_43 = arith.constant 0 : index
    %c416 = arith.constant 416 : index
    %56 = vector.load %arg12[%c0_43, %c416] : memref<64x800xf32, #tpu.memory_space<vmem>>, vector<64x32xf32>
    tpu.vector_store %arg12[%c0_43, %c416], %55 {strides = array<i32>} : memref<64x800xf32, #tpu.memory_space<vmem>>, vector<64x32xf32>,
    %c68 = arith.constant 68 : index
    %c0_44 = arith.constant 0 : index
    %57 = vector.load %arg11[%c68, %c0_44] : memref<144x32xf32, #tpu.memory_space<vmem>>, vector<64x32xf32>
    %c0_45 = arith.constant 0 : index
    %c448 = arith.constant 448 : index
    %58 = vector.load %arg12[%c0_45, %c448] : memref<64x800xf32, #tpu.memory_space<vmem>>, vector<64x32xf32>
    tpu.vector_store %arg12[%c0_45, %c448], %57 {strides = array<i32>} : memref<64x800xf32, #tpu.memory_space<vmem>>, vector<64x32xf32>,
    %c6 = arith.constant 6 : index
    %c0_46 = arith.constant 0 : index
    %59 = vector.load %arg11[%c6, %c0_46] : memref<144x32xf32, #tpu.memory_space<vmem>>, vector<64x32xf32>
    %c0_47 = arith.constant 0 : index
    %c480 = arith.constant 480 : index
    %60 = vector.load %arg12[%c0_47, %c480] : memref<64x800xf32, #tpu.memory_space<vmem>>, vector<64x32xf32>
    tpu.vector_store %arg12[%c0_47, %c480], %59 {strides = array<i32>} : memref<64x800xf32, #tpu.memory_space<vmem>>, vector<64x32xf32>,
    %c22 = arith.constant 22 : index
    %c0_48 = arith.constant 0 : index
    %61 = vector.load %arg11[%c22, %c0_48] : memref<144x32xf32, #tpu.memory_space<vmem>>, vector<64x32xf32>
    %c0_49 = arith.constant 0 : index
    %c512 = arith.constant 512 : index
    %62 = vector.load %arg12[%c0_49, %c512] : memref<64x800xf32, #tpu.memory_space<vmem>>, vector<64x32xf32>
    tpu.vector_store %arg12[%c0_49, %c512], %61 {strides = array<i32>} : memref<64x800xf32, #tpu.memory_space<vmem>>, vector<64x32xf32>,
    %c38 = arith.constant 38 : index
    %c0_50 = arith.constant 0 : index
    %63 = vector.load %arg11[%c38, %c0_50] : memref<144x32xf32, #tpu.memory_space<vmem>>, vector<64x32xf32>
    %c0_51 = arith.constant 0 : index
    %c544 = arith.constant 544 : index
    %64 = vector.load %arg12[%c0_51, %c544] : memref<64x800xf32, #tpu.memory_space<vmem>>, vector<64x32xf32>
    tpu.vector_store %arg12[%c0_51, %c544], %63 {strides = array<i32>} : memref<64x800xf32, #tpu.memory_space<vmem>>, vector<64x32xf32>,
    %c54 = arith.constant 54 : index
    %c0_52 = arith.constant 0 : index
    %65 = vector.load %arg11[%c54, %c0_52] : memref<144x32xf32, #tpu.memory_space<vmem>>, vector<64x32xf32>
    %c0_53 = arith.constant 0 : index
    %c576 = arith.constant 576 : index
    %66 = vector.load %arg12[%c0_53, %c576] : memref<64x800xf32, #tpu.memory_space<vmem>>, vector<64x32xf32>
    tpu.vector_store %arg12[%c0_53, %c576], %65 {strides = array<i32>} : memref<64x800xf32, #tpu.memory_space<vmem>>, vector<64x32xf32>,
    %c70 = arith.constant 70 : index
    %c0_54 = arith.constant 0 : index
    %67 = vector.load %arg11[%c70, %c0_54] : memref<144x32xf32, #tpu.memory_space<vmem>>, vector<64x32xf32>
    %c0_55 = arith.constant 0 : index
    %c608 = arith.constant 608 : index
    %68 = vector.load %arg12[%c0_55, %c608] : memref<64x800xf32, #tpu.memory_space<vmem>>, vector<64x32xf32>
    tpu.vector_store %arg12[%c0_55, %c608], %67 {strides = array<i32>} : memref<64x800xf32, #tpu.memory_space<vmem>>, vector<64x32xf32>,
    %c8 = arith.constant 8 : index
    %c0_56 = arith.constant 0 : index
    %69 = vector.load %arg11[%c8, %c0_56] : memref<144x32xf32, #tpu.memory_space<vmem>>, vector<64x32xf32>
    %c0_57 = arith.constant 0 : index
    %c640 = arith.constant 640 : index
    %70 = vector.load %arg12[%c0_57, %c640] : memref<64x800xf32, #tpu.memory_space<vmem>>, vector<64x32xf32>
    tpu.vector_store %arg12[%c0_57, %c640], %69 {strides = array<i32>} : memref<64x800xf32, #tpu.memory_space<vmem>>, vector<64x32xf32>,
    %c24 = arith.constant 24 : index
    %c0_58 = arith.constant 0 : index
    %71 = vector.load %arg11[%c24, %c0_58] : memref<144x32xf32, #tpu.memory_space<vmem>>, vector<64x32xf32>
    %c0_59 = arith.constant 0 : index
    %c672 = arith.constant 672 : index
    %72 = vector.load %arg12[%c0_59, %c672] : memref<64x800xf32, #tpu.memory_space<vmem>>, vector<64x32xf32>
    tpu.vector_store %arg12[%c0_59, %c672], %71 {strides = array<i32>} : memref<64x800xf32, #tpu.memory_space<vmem>>, vector<64x32xf32>,
    %c40 = arith.constant 40 : index
    %c0_60 = arith.constant 0 : index
    %73 = vector.load %arg11[%c40, %c0_60] : memref<144x32xf32, #tpu.memory_space<vmem>>, vector<64x32xf32>
    %c0_61 = arith.constant 0 : index
    %c704 = arith.constant 704 : index
    %74 = vector.load %arg12[%c0_61, %c704] : memref<64x800xf32, #tpu.memory_space<vmem>>, vector<64x32xf32>
    tpu.vector_store %arg12[%c0_61, %c704], %73 {strides = array<i32>} : memref<64x800xf32, #tpu.memory_space<vmem>>, vector<64x32xf32>,
    %c56 = arith.constant 56 : index
    %c0_62 = arith.constant 0 : index
    %75 = vector.load %arg11[%c56, %c0_62] : memref<144x32xf32, #tpu.memory_space<vmem>>, vector<64x32xf32>
    %c0_63 = arith.constant 0 : index
    %c736 = arith.constant 736 : index
    %76 = vector.load %arg12[%c0_63, %c736] : memref<64x800xf32, #tpu.memory_space<vmem>>, vector<64x32xf32>
    tpu.vector_store %arg12[%c0_63, %c736], %75 {strides = array<i32>} : memref<64x800xf32, #tpu.memory_space<vmem>>, vector<64x32xf32>,
    %c72 = arith.constant 72 : index
    %c0_64 = arith.constant 0 : index
    %77 = vector.load %arg11[%c72, %c0_64] : memref<144x32xf32, #tpu.memory_space<vmem>>, vector<64x32xf32>
    %c0_65 = arith.constant 0 : index
    %c768 = arith.constant 768 : index
    %78 = vector.load %arg12[%c0_65, %c768] : memref<64x800xf32, #tpu.memory_space<vmem>>, vector<64x32xf32>
    tpu.vector_store %arg12[%c0_65, %c768], %77 {strides = array<i32>} : memref<64x800xf32, #tpu.memory_space<vmem>>, vector<64x32xf32>,
    %c0_66 = arith.constant 0 : index
    %c0_67 = arith.constant 0 : index
    %79 = vector.load %arg12[%c0_66, %c0_67] : memref<64x800xf32, #tpu.memory_space<vmem>>, vector<64x800xf32>
    %80 = arith.truncf %79 : vector<64x800xf32> to vector<64x800xbf16>
    %c0_68 = arith.constant 0 : index
    %c0_69 = arith.constant 0 : index
    %81 = vector.load %arg4[%c0_68, %c0_69] : memref<800x64xbf16, #tpu.memory_space<vmem>>, vector<800x64xbf16>
    %cst_70 = arith.constant dense<0.000000e+00> : vector<64x64xf32>
    %82 = tpu.matmul %80, %81, %cst_70 {dimension_numbers = #tpu.dot_dimension_numbers<[1], [0], [0], [1], [0, 0, 1, 1], [], []>} : vector<64x800xbf16>, vector<800x64xbf16>, vector<64x64xf32> -> vector<64x64xf32>
    %83 = vector.extract_strided_slice %82 {offsets = [0, 0], sizes = [16, 64], strides = [1, 1]} : vector<64x64xf32> to vector<16x64xf32>
    %84 = vector.extract_strided_slice %82 {offsets = [16, 0], sizes = [16, 64], strides = [1, 1]} : vector<64x64xf32> to vector<16x64xf32>
    %85 = arith.maximumf %83, %84 : vector<16x64xf32>
    %86 = vector.extract_strided_slice %82 {offsets = [32, 0], sizes = [16, 64], strides = [1, 1]} : vector<64x64xf32> to vector<16x64xf32>
    %87 = vector.extract_strided_slice %82 {offsets = [48, 0], sizes = [16, 64], strides = [1, 1]} : vector<64x64xf32> to vector<16x64xf32>
    %88 = arith.maximumf %86, %87 : vector<16x64xf32>
    %89 = vector.extract_strided_slice %85 {offsets = [0, 0], sizes = [2, 64], strides = [1, 1]} : vector<16x64xf32> to vector<2x64xf32>
    %90 = vector.extract_strided_slice %85 {offsets = [2, 0], sizes = [2, 64], strides = [1, 1]} : vector<16x64xf32> to vector<2x64xf32>
    %91 = arith.maximumf %89, %90 : vector<2x64xf32>
    %c0_71 = arith.constant 0 : index
    %c0_72 = arith.constant 0 : index
    %92 = vector.load %arg5[%c0_71, %c0_72] : memref<1x64xf32, #tpu.memory_space<vmem>>, vector<1x64xf32>
    %93 = vector.broadcast %92 : vector<1x64xf32> to vector<2x64xf32>
    %94 = arith.addf %91, %93 : vector<2x64xf32>
    %cst_73 = arith.constant 0.000000e+00 : f32
    %95 = vector.broadcast %cst_73 : f32 to vector<2x64xf32>
    %96 = arith.maximumf %94, %95 : vector<2x64xf32>
    %97 = vector.extract_strided_slice %88 {offsets = [0, 0], sizes = [2, 64], strides = [1, 1]} : vector<16x64xf32> to vector<2x64xf32>
    %98 = vector.extract_strided_slice %88 {offsets = [2, 0], sizes = [2, 64], strides = [1, 1]} : vector<16x64xf32> to vector<2x64xf32>
    %99 = arith.maximumf %97, %98 : vector<2x64xf32>
    %c0_74 = arith.constant 0 : index
    %c0_75 = arith.constant 0 : index
    %100 = vector.load %arg5[%c0_74, %c0_75] : memref<1x64xf32, #tpu.memory_space<vmem>>, vector<1x64xf32>
    %101 = vector.broadcast %100 : vector<1x64xf32> to vector<2x64xf32>
    %102 = arith.addf %99, %101 : vector<2x64xf32>
    %cst_76 = arith.constant 0.000000e+00 : f32
    %103 = vector.broadcast %cst_76 : f32 to vector<2x64xf32>
    %104 = arith.maximumf %102, %103 : vector<2x64xf32>
    %105 = vector.extract_strided_slice %85 {offsets = [4, 0], sizes = [2, 64], strides = [1, 1]} : vector<16x64xf32> to vector<2x64xf32>
    %106 = vector.extract_strided_slice %85 {offsets = [6, 0], sizes = [2, 64], strides = [1, 1]} : vector<16x64xf32> to vector<2x64xf32>
    %107 = arith.maximumf %105, %106 : vector<2x64xf32>
    %c0_77 = arith.constant 0 : index
    %c0_78 = arith.constant 0 : index
    %108 = vector.load %arg5[%c0_77, %c0_78] : memref<1x64xf32, #tpu.memory_space<vmem>>, vector<1x64xf32>
    %109 = vector.broadcast %108 : vector<1x64xf32> to vector<2x64xf32>
    %110 = arith.addf %107, %109 : vector<2x64xf32>
    %cst_79 = arith.constant 0.000000e+00 : f32
    %111 = vector.broadcast %cst_79 : f32 to vector<2x64xf32>
    %112 = arith.maximumf %110, %111 : vector<2x64xf32>
    %113 = vector.extract_strided_slice %88 {offsets = [4, 0], sizes = [2, 64], strides = [1, 1]} : vector<16x64xf32> to vector<2x64xf32>
    %114 = vector.extract_strided_slice %88 {offsets = [6, 0], sizes = [2, 64], strides = [1, 1]} : vector<16x64xf32> to vector<2x64xf32>
    %115 = arith.maximumf %113, %114 : vector<2x64xf32>
    %c0_80 = arith.constant 0 : index
    %c0_81 = arith.constant 0 : index
    %116 = vector.load %arg5[%c0_80, %c0_81] : memref<1x64xf32, #tpu.memory_space<vmem>>, vector<1x64xf32>
    %117 = vector.broadcast %116 : vector<1x64xf32> to vector<2x64xf32>
    %118 = arith.addf %115, %117 : vector<2x64xf32>
    %cst_82 = arith.constant 0.000000e+00 : f32
    %119 = vector.broadcast %cst_82 : f32 to vector<2x64xf32>
    %120 = arith.maximumf %118, %119 : vector<2x64xf32>
    %121 = tpu.concatenate %96, %104, %112, %120 in 1 : vector<2x64xf32>, vector<2x64xf32>, vector<2x64xf32>, vector<2x64xf32> -> vector<2x256xf32>
    %122 = arith.truncf %121 : vector<2x256xf32> to vector<2x256xbf16>
    %c0_83 = arith.constant 0 : index
    %c0_84 = arith.constant 0 : index
    %123 = vector.load %arg6[%c0_83, %c0_84] : memref<256x32xbf16, #tpu.memory_space<vmem>>, vector<256x32xbf16>
    %cst_85 = arith.constant dense<0.000000e+00> : vector<2x32xf32>
    %124 = tpu.matmul %122, %123, %cst_85 {dimension_numbers = #tpu.dot_dimension_numbers<[1], [0], [0], [1], [0, 0, 1, 1], [], []>} : vector<2x256xbf16>, vector<256x32xbf16>, vector<2x32xf32> -> vector<2x32xf32>
    %c0_86 = arith.constant 0 : index
    %c0_87 = arith.constant 0 : index
    %125 = vector.load %arg7[%c0_86, %c0_87] : memref<1x32xf32, #tpu.memory_space<vmem>>, vector<1x32xf32>
    %126 = vector.broadcast %125 : vector<1x32xf32> to vector<2x32xf32>
    %127 = arith.addf %124, %126 : vector<2x32xf32>
    %cst_88 = arith.constant 0.000000e+00 : f32
    %128 = vector.broadcast %cst_88 : f32 to vector<2x32xf32>
    %129 = arith.maximumf %127, %128 : vector<2x32xf32>
    %130 = arith.truncf %129 : vector<2x32xf32> to vector<2x32xbf16>
    %c0_89 = arith.constant 0 : index
    %c0_90 = arith.constant 0 : index
    %131 = vector.load %arg8[%c0_89, %c0_90] : memref<32x128xbf16, #tpu.memory_space<vmem>>, vector<32x128xbf16>
    %cst_91 = arith.constant dense<0.000000e+00> : vector<2x128xf32>
    %132 = tpu.matmul %130, %131, %cst_91 {dimension_numbers = #tpu.dot_dimension_numbers<[1], [0], [0], [1], [0, 0, 1, 1], [], []>} : vector<2x32xbf16>, vector<32x128xbf16>, vector<2x128xf32> -> vector<2x128xf32>
    %c0_92 = arith.constant 0 : index
    %c0_93 = arith.constant 0 : index
    %133 = vector.load %arg9[%c0_92, %c0_93] : memref<1x128xf32, #tpu.memory_space<vmem>>, vector<1x128xf32>
    %134 = vector.broadcast %133 : vector<1x128xf32> to vector<2x128xf32>
    %135 = arith.addf %132, %134 : vector<2x128xf32>
    %c0_94 = arith.constant 0 : index
    %c0_95 = arith.constant 0 : index
    %c0_96 = arith.constant 0 : index
    %136 = vector.load %arg10[%c0_94, %c0_95, %c0_96] : memref<1x2x128xf32, #tpu.memory_space<vmem>>, vector<1x2x128xf32>
    %137 = vector.shape_cast %136 : vector<1x2x128xf32> to vector<2x128xf32>
    %138 = vector.shape_cast %135 : vector<2x128xf32> to vector<1x2x128xf32>
    tpu.vector_store %arg10[%c0_94, %c0_95, %c0_96], %138 {strides = array<i32>} : memref<1x2x128xf32, #tpu.memory_space<vmem>>, vector<1x2x128xf32>,
    return
  }
  func.func @transform_0(%arg0: i32) -> (i32, i32, i32) {
    %c0_i32 = arith.constant 0 : i32
    %c0_i32_0 = arith.constant 0 : i32
    %c0_i32_1 = arith.constant 0 : i32
    return %arg0, %c0_i32, %c0_i32_0 : i32, i32, i32
  }
  func.func @transform_1(%arg0: i32) -> (i32, i32) {
    %c0_i32 = arith.constant 0 : i32
    %c0_i32_0 = arith.constant 0 : i32
    %c0_i32_1 = arith.constant 0 : i32
    return %c0_i32, %c0_i32_0 : i32, i32
  }
  func.func @transform_2(%arg0: i32) -> (i32, i32) {
    %c0_i32 = arith.constant 0 : i32
    %c0_i32_0 = arith.constant 0 : i32
    %c0_i32_1 = arith.constant 0 : i32
    return %c0_i32, %c0_i32_0 : i32, i32
  }
  func.func @transform_3(%arg0: i32) -> (i32, i32) {
    %c0_i32 = arith.constant 0 : i32
    %c0_i32_0 = arith.constant 0 : i32
    %c0_i32_1 = arith.constant 0 : i32
    return %c0_i32, %c0_i32_0 : i32, i32
  }
  func.func @transform_4(%arg0: i32) -> (i32, i32) {
    %c0_i32 = arith.constant 0 : i32
    %c0_i32_0 = arith.constant 0 : i32
    %c0_i32_1 = arith.constant 0 : i32
    return %c0_i32, %c0_i32_0 : i32, i32
  }
  func.func @transform_5(%arg0: i32) -> (i32, i32) {
    %c0_i32 = arith.constant 0 : i32
    %c0_i32_0 = arith.constant 0 : i32
    %c0_i32_1 = arith.constant 0 : i32
    return %c0_i32, %c0_i32_0 : i32, i32
  }
  func.func @transform_6(%arg0: i32) -> (i32, i32) {
    %c0_i32 = arith.constant 0 : i32
    %c0_i32_0 = arith.constant 0 : i32
    %c0_i32_1 = arith.constant 0 : i32
    return %c0_i32, %c0_i32_0 : i32, i32
  }
  func.func @transform_7(%arg0: i32) -> (i32, i32) {
    %c0_i32 = arith.constant 0 : i32
    %c0_i32_0 = arith.constant 0 : i32
    %c0_i32_1 = arith.constant 0 : i32
    return %c0_i32, %c0_i32_0 : i32, i32
  }
  func.func @transform_8(%arg0: i32) -> (i32, i32) {
    %c0_i32 = arith.constant 0 : i32
    %c0_i32_0 = arith.constant 0 : i32
    %c0_i32_1 = arith.constant 0 : i32
    return %c0_i32, %c0_i32_0 : i32, i32
  }
  func.func @transform_9(%arg0: i32) -> (i32, i32, i32) {
    %c0_i32 = arith.constant 0 : i32
    %c0_i32_0 = arith.constant 0 : i32
    %c0_i32_1 = arith.constant 0 : i32
    return %arg0, %c0_i32, %c0_i32_0 : i32, i32, i32
  }
}

</mosaic_0001>

<llo_original>
// kernel: net_forward.1
$region0: #{net_forward.1}
  #allocation0 [shape = 'u32[]', space=smem, size = 0x4, offset = 0x4, fixed_abs, tag = 'smem constant byte address 0x4 - core index']
  #allocation1 [shape = 'u32[144,128]{1,0:T(1,128)}', space=vmem, size = 0x12000, scoped, tag = 'internal scratch']
  #allocation2 [shape = 'f32[144,32]{1,0:T(8,128)}', space=vmem, size = 0x12000, scoped, tag = 'scratch operand']
  #allocation3 [shape = 'f32[64,800]{1,0:T(8,128)}', space=vmem, size = 0x38000, scoped, tag = 'scratch operand']
  %s0 = inlined_call_operand.vmem [shape: bf16[1,1152,25], index: 0, kind: input, shape index: {}]
  %s1 = inlined_call_operand.vmem [shape: bf16[25,32], index: 1, kind: input, shape index: {}]
  %s2 = inlined_call_operand.vmem [shape: f32[1,32], index: 2, kind: input, shape index: {}]
  %s3 = inlined_call_operand.vmem [shape: bf16[800,64], index: 3, kind: input, shape index: {}]
  %s4 = inlined_call_operand.vmem [shape: f32[1,64], index: 4, kind: input, shape index: {}]
  %s5 = inlined_call_operand.vmem [shape: bf16[256,32], index: 5, kind: input, shape index: {}]
  %s6 = inlined_call_operand.vmem [shape: f32[1,32], index: 6, kind: input, shape index: {}]
  %s7 = inlined_call_operand.vmem [shape: bf16[32,128], index: 7, kind: input, shape index: {}]
  %s8 = inlined_call_operand.vmem [shape: f32[1,128], index: 8, kind: input, shape index: {}]
  %s9 = inlined_call_operand.hbm [shape: f32[1,2,128], index: 9, kind: output, shape index: {}]
  %s10 = sld [smem:[#allocation0]]
  $region46: #{net_forward.1} parent=0
    _
  %s12 = ssub.s32 1, %s10
  %s13 = scalar_select 0, %s12, %s10
  $region1: #{net_forward.1} parent=0
    #allocation4 [shape = 'u8[1024]{0}', space=vmem, size = 0x400, scoped, tag = 'output window, operand 0, single buffered']
    #allocation5 [shape = 's32[1]{0}', space=sflag, size = 0x4, scoped, tag = 'scoped memory for net_forward.1']
    %14 = vsyncpa [#allocation5], 0
    // Predicated region
    $region2: #{net_forward.1} parent=1 // pred_check
      _
    $region3: #{net_forward.1} parent=1 // pred_check_branch
      %16 = sbr.rel (0) target = $region5
    $region4: #{net_forward.1} parent=1 // pred_region
      _
    $region5: #{net_forward.1} parent=1 // pred_fallthru
      _
    // Predicated region
    $region6: #{net_forward.1} parent=1 // pred_check
      _
    $region7: #{net_forward.1} parent=1 // pred_check_branch
      %18 = sbr.rel (0) target = $region9
    $region8: #{net_forward.1} parent=1 // pred_region
      _
    $region9: #{net_forward.1} parent=1 // pred_fallthru
      _
    // Predicated region
    $region10: #{net_forward.1} parent=1 // pred_check
      _
    $region11: #{net_forward.1} parent=1 // pred_check_branch
      %20 = sbr.rel (0) target = $region13
    $region12: #{net_forward.1} parent=1 // pred_region
      _
    $region13: #{net_forward.1} parent=1 // pred_fallthru
      _
    // Predicated region
    $region14: #{net_forward.1} parent=1 // pred_check
      _
    $region15: #{net_forward.1} parent=1 // pred_check_branch
      %22 = sbr.rel (0) target = $region17
    $region16: #{net_forward.1} parent=1 // pred_region
      _
    $region17: #{net_forward.1} parent=1 // pred_fallthru
      _
    // Predicated region
    $region18: #{net_forward.1} parent=1 // pred_check
      _
    $region19: #{net_forward.1} parent=1 // pred_check_branch
      %24 = sbr.rel (0) target = $region21
    $region20: #{net_forward.1} parent=1 // pred_region
      _
    $region21: #{net_forward.1} parent=1 // pred_fallthru
      _
    // Predicated region
    $region22: #{net_forward.1} parent=1 // pred_check
      _
    $region23: #{net_forward.1} parent=1 // pred_check_branch
      %26 = sbr.rel (0) target = $region25
    $region24: #{net_forward.1} parent=1 // pred_region
      _
    $region25: #{net_forward.1} parent=1 // pred_fallthru
      _
    // Predicated region
    $region26: #{net_forward.1} parent=1 // pred_check
      _
    $region27: #{net_forward.1} parent=1 // pred_check_branch
      %28 = sbr.rel (0) target = $region29
    $region28: #{net_forward.1} parent=1 // pred_region
      _
    $region29: #{net_forward.1} parent=1 // pred_fallthru
      _
    // Predicated region
    $region30: #{net_forward.1} parent=1 // pred_check
      _
    $region31: #{net_forward.1} parent=1 // pred_check_branch
      %30 = sbr.rel (0) target = $region33
    $region32: #{net_forward.1} parent=1 // pred_region
      _
    $region33: #{net_forward.1} parent=1 // pred_fallthru
      _
    // Predicated region
    $region34: #{net_forward.1} parent=1 // pred_check
      _
    $region35: #{net_forward.1} parent=1 // pred_check_branch
      %32 = sbr.rel (0) target = $region37
    $region36: #{net_forward.1} parent=1 // pred_region
      _
    $region37: #{net_forward.1} parent=1 // pred_fallthru
      _
    %v34 = vld [vmem:[%s0] sm:$0xf]
    %v35 = vld [vmem:[%s0 + $0x4] sm:$0xf]
    %v36 = vld [vmem:[%s0 + $0x8] sm:$0xf]
    %v37 = vld [vmem:[%s0 + $0xc] sm:$0xf]
    %v38 = vld [vmem:[%s0 + $0x10] sm:$0xf]
    %v39 = vld [vmem:[%s0 + $0x14] sm:$0xf]
    %v40 = vld [vmem:[%s0 + $0x18] sm:$0xf]
    %v41 = vld [vmem:[%s0 + $0x1c] sm:$0xf]
    %v42 = vld [vmem:[%s0 + $0x20] sm:$0xf]
    %v43 = vld [vmem:[%s0 + $0x24] sm:$0xf]
    %v44 = vld [vmem:[%s0 + $0x28] sm:$0xf]
    %v45 = vld [vmem:[%s0 + $0x2c] sm:$0xf]
    %v46 = vld [vmem:[%s0 + $0x30] sm:$0xf]
    %v47 = vld [vmem:[%s0 + $0x34] sm:$0xf]
    %v48 = vld [vmem:[%s0 + $0x38] sm:$0xf]
    %v49 = vld [vmem:[%s0 + $0x3c] sm:$0xf]
    %v50 = vld [vmem:[%s0 + $0x40] sm:$0xf]
    %v51 = vld [vmem:[%s0 + $0x44] sm:$0xf]
    %v52 = vld [vmem:[%s0 + $0x48] sm:$0xf]
    %v53 = vld [vmem:[%s0 + $0x4c] sm:$0xf]
    %v54 = vld [vmem:[%s0 + $0x50] sm:$0xf]
    %v55 = vld [vmem:[%s0 + $0x54] sm:$0xf]
    %v56 = vld [vmem:[%s0 + $0x58] sm:$0xf]
    %v57 = vld [vmem:[%s0 + $0x5c] sm:$0xf]
    %v58 = vld [vmem:[%s0 + $0x60] sm:$0xf]
    %v59 = vld [vmem:[%s0 + $0x64] sm:$0xf]
    %v60 = vld [vmem:[%s0 + $0x68] sm:$0xf]
    %v61 = vld [vmem:[%s0 + $0x6c] sm:$0xf]
    %v62 = vld [vmem:[%s0 + $0x70] sm:$0xf]
    %v63 = vld [vmem:[%s0 + $0x74] sm:$0xf]
    %v64 = vld [vmem:[%s0 + $0x78] sm:$0xf]
    %v65 = vld [vmem:[%s0 + $0x7c] sm:$0xf]
    %v66 = vld [vmem:[%s0 + $0x80] sm:$0xf]
    %v67 = vld [vmem:[%s0 + $0x84] sm:$0xf]
    %v68 = vld [vmem:[%s0 + $0x88] sm:$0xf]
    %v69 = vld [vmem:[%s0 + $0x8c] sm:$0xf]
    %v70 = vld [vmem:[%s0 + $0x90] sm:$0xf]
    %v71 = vld [vmem:[%s0 + $0x94] sm:$0xf]
    %v72 = vld [vmem:[%s0 + $0x98] sm:$0xf]
    %v73 = vld [vmem:[%s0 + $0x9c] sm:$0xf]
    %v74 = vld [vmem:[%s0 + $0xa0] sm:$0xf]
    %v75 = vld [vmem:[%s0 + $0xa4] sm:$0xf]
    %v76 = vld [vmem:[%s0 + $0xa8] sm:$0xf]
    %v77 = vld [vmem:[%s0 + $0xac] sm:$0xf]
    %v78 = vld [vmem:[%s0 + $0xb0] sm:$0xf]
    %v79 = vld [vmem:[%s0 + $0xb4] sm:$0xf]
    %v80 = vld [vmem:[%s0 + $0xb8] sm:$0xf]
    %v81 = vld [vmem:[%s0 + $0xbc] sm:$0xf]
    %v82 = vld [vmem:[%s0 + $0xc0] sm:$0xf]
    %v83 = vld [vmem:[%s0 + $0xc4] sm:$0xf]
    %v84 = vld [vmem:[%s0 + $0xc8] sm:$0xf]
    %v85 = vld [vmem:[%s0 + $0xcc] sm:$0xf]
    %v86 = vld [vmem:[%s0 + $0xd0] sm:$0xf]
    %v87 = vld [vmem:[%s0 + $0xd4] sm:$0xf]
    %v88 = vld [vmem:[%s0 + $0xd8] sm:$0xf]
    %v89 = vld [vmem:[%s0 + $0xdc] sm:$0xf]
    %v90 = vld [vmem:[%s0 + $0xe0] sm:$0xf]
    %v91 = vld [vmem:[%s0 + $0xe4] sm:$0xf]
    %v92 = vld [vmem:[%s0 + $0xe8] sm:$0xf]
    %v93 = vld [vmem:[%s0 + $0xec] sm:$0xf]
    %v94 = vld [vmem:[%s0 + $0xf0] sm:$0xf]
    %v95 = vld [vmem:[%s0 + $0xf4] sm:$0xf]
    %v96 = vld [vmem:[%s0 + $0xf8] sm:$0xf]
    %v97 = vld [vmem:[%s0 + $0xfc] sm:$0xf]
    %v98 = vld [vmem:[%s0 + $0x100] sm:$0xf]
    %v99 = vld [vmem:[%s0 + $0x104] sm:$0xf]
    %v100 = vld [vmem:[%s0 + $0x108] sm:$0xf]
    %v101 = vld [vmem:[%s0 + $0x10c] sm:$0xf]
    %v102 = vld [vmem:[%s0 + $0x110] sm:$0xf]
    %v103 = vld [vmem:[%s0 + $0x114] sm:$0xf]
    %v104 = vld [vmem:[%s0 + $0x118] sm:$0xf]
    %v105 = vld [vmem:[%s0 + $0x11c] sm:$0xf]
    %v106 = vld [vmem:[%s0 + $0x120] sm:$0xf]
    %v107 = vld [vmem:[%s0 + $0x124] sm:$0xf]
    %v108 = vld [vmem:[%s0 + $0x128] sm:$0xf]
    %v109 = vld [vmem:[%s0 + $0x12c] sm:$0xf]
    %v110 = vld [vmem:[%s0 + $0x130] sm:$0xf]
    %v111 = vld [vmem:[%s0 + $0x134] sm:$0xf]
    %v112 = vld [vmem:[%s0 + $0x138] sm:$0xf]
    %v113 = vld [vmem:[%s0 + $0x13c] sm:$0xf]
    %v114 = vld [vmem:[%s0 + $0x140] sm:$0xf]
    %v115 = vld [vmem:[%s0 + $0x144] sm:$0xf]
    %v116 = vld [vmem:[%s0 + $0x148] sm:$0xf]
    %v117 = vld [vmem:[%s0 + $0x14c] sm:$0xf]
    %v118 = vld [vmem:[%s0 + $0x150] sm:$0xf]
    %v119 = vld [vmem:[%s0 + $0x154] sm:$0xf]
    %v120 = vld [vmem:[%s0 + $0x158] sm:$0xf]
    %v121 = vld [vmem:[%s0 + $0x15c] sm:$0xf]
    %v122 = vld [vmem:[%s0 + $0x160] sm:$0xf]
    %v123 = vld [vmem:[%s0 + $0x164] sm:$0xf]
    %v124 = vld [vmem:[%s0 + $0x168] sm:$0xf]
    %v125 = vld [vmem:[%s0 + $0x16c] sm:$0xf]
    %v126 = vld [vmem:[%s0 + $0x170] sm:$0xf]
    %v127 = vld [vmem:[%s0 + $0x174] sm:$0xf]
    %v128 = vld [vmem:[%s0 + $0x178] sm:$0xf]
    %v129 = vld [vmem:[%s0 + $0x17c] sm:$0xf]
    %v130 = vld [vmem:[%s0 + $0x180] sm:$0xf]
    %v131 = vld [vmem:[%s0 + $0x184] sm:$0xf]
    %v132 = vld [vmem:[%s0 + $0x188] sm:$0xf]
    %v133 = vld [vmem:[%s0 + $0x18c] sm:$0xf]
    %v134 = vld [vmem:[%s0 + $0x190] sm:$0xf]
    %v135 = vld [vmem:[%s0 + $0x194] sm:$0xf]
    %v136 = vld [vmem:[%s0 + $0x198] sm:$0xf]
    %v137 = vld [vmem:[%s0 + $0x19c] sm:$0xf]
    %v138 = vld [vmem:[%s0 + $0x1a0] sm:$0xf]
    %v139 = vld [vmem:[%s0 + $0x1a4] sm:$0xf]
    %v140 = vld [vmem:[%s0 + $0x1a8] sm:$0xf]
    %v141 = vld [vmem:[%s0 + $0x1ac] sm:$0xf]
    %v142 = vld [vmem:[%s0 + $0x1b0] sm:$0xf]
    %v143 = vld [vmem:[%s0 + $0x1b4] sm:$0xf]
    %v144 = vld [vmem:[%s0 + $0x1b8] sm:$0xf]
    %v145 = vld [vmem:[%s0 + $0x1bc] sm:$0xf]
    %v146 = vld [vmem:[%s0 + $0x1c0] sm:$0xf]
    %v147 = vld [vmem:[%s0 + $0x1c4] sm:$0xf]
    %v148 = vld [vmem:[%s0 + $0x1c8] sm:$0xf]
    %v149 = vld [vmem:[%s0 + $0x1cc] sm:$0xf]
    %v150 = vld [vmem:[%s0 + $0x1d0] sm:$0xf]
    %v151 = vld [vmem:[%s0 + $0x1d4] sm:$0xf]
    %v152 = vld [vmem:[%s0 + $0x1d8] sm:$0xf]
    %v153 = vld [vmem:[%s0 + $0x1dc] sm:$0xf]
    %v154 = vld [vmem:[%s0 + $0x1e0] sm:$0xf]
    %v155 = vld [vmem:[%s0 + $0x1e4] sm:$0xf]
    %v156 = vld [vmem:[%s0 + $0x1e8] sm:$0xf]
    %v157 = vld [vmem:[%s0 + $0x1ec] sm:$0xf]
    %v158 = vld [vmem:[%s0 + $0x1f0] sm:$0xf]
    %v159 = vld [vmem:[%s0 + $0x1f4] sm:$0xf]
    %v160 = vld [vmem:[%s0 + $0x1f8] sm:$0xf]
    %v161 = vld [vmem:[%s0 + $0x1fc] sm:$0xf]
    %v162 = vld [vmem:[%s0 + $0x200] sm:$0xf]
    %v163 = vld [vmem:[%s0 + $0x204] sm:$0xf]
    %v164 = vld [vmem:[%s0 + $0x208] sm:$0xf]
    %v165 = vld [vmem:[%s0 + $0x20c] sm:$0xf]
    %v166 = vld [vmem:[%s0 + $0x210] sm:$0xf]
    %v167 = vld [vmem:[%s0 + $0x214] sm:$0xf]
    %v168 = vld [vmem:[%s0 + $0x218] sm:$0xf]
    %v169 = vld [vmem:[%s0 + $0x21c] sm:$0xf]
    %v170 = vld [vmem:[%s0 + $0x220] sm:$0xf]
    %v171 = vld [vmem:[%s0 + $0x224] sm:$0xf]
    %v172 = vld [vmem:[%s0 + $0x228] sm:$0xf]
    %v173 = vld [vmem:[%s0 + $0x22c] sm:$0xf]
    %v174 = vld [vmem:[%s0 + $0x230] sm:$0xf]
    %v175 = vld [vmem:[%s0 + $0x234] sm:$0xf]
    %v176 = vld [vmem:[%s0 + $0x238] sm:$0xf]
    %v177 = vld [vmem:[%s0 + $0x23c] sm:$0xf]
    %v178 = vld [vmem:[%s1] sm:$0xf]
    %v179 = vld [vmem:[%s1 + $0x4] sm:$0xf]
    %v180 = vld [vmem:[%s1 + $0x8] sm:$0xf]
    %v181 = vld [vmem:[%s1 + $0xc] sm:$0x1]
    %v326 = vunpack.c.l.b16 %v34
    %v327 = vunpack.c.l.b16 %v35
    %v328 = vunpack.c.l.b16 %v36
    %v329 = vunpack.c.l.b16 %v37
    %v330 = vunpack.c.l.b16 %v38
    %v331 = vunpack.c.l.b16 %v39
    %v332 = vunpack.c.l.b16 %v40
    %v333 = vunpack.c.l.b16 %v41
    %v334 = vunpack.c.l.b16 %v42
    %v335 = vunpack.c.l.b16 %v43
    %v336 = vunpack.c.l.b16 %v44
    %v337 = vunpack.c.l.b16 %v45
    %v338 = vunpack.c.l.b16 %v46
    %v339 = vunpack.c.l.b16 %v47
    %v340 = vunpack.c.l.b16 %v48
    %v341 = vunpack.c.l.b16 %v49
    %v342 = vunpack.c.l.b16 %v50
    %v343 = vunpack.c.l.b16 %v51
    %v344 = vunpack.c.l.b16 %v52
    %v345 = vunpack.c.l.b16 %v53
    %v346 = vunpack.c.l.b16 %v54
    %v347 = vunpack.c.l.b16 %v55
    %v348 = vunpack.c.l.b16 %v56
    %v349 = vunpack.c.l.b16 %v57
    %v350 = vunpack.c.l.b16 %v58
    %v351 = vunpack.c.l.b16 %v59
    %v352 = vunpack.c.l.b16 %v60
    %v353 = vunpack.c.l.b16 %v61
    %v354 = vunpack.c.l.b16 %v62
    %v355 = vunpack.c.l.b16 %v63
    %v356 = vunpack.c.l.b16 %v64
    %v357 = vunpack.c.l.b16 %v65
    %v358 = vunpack.c.l.b16 %v66
    %v359 = vunpack.c.l.b16 %v67
    %v360 = vunpack.c.l.b16 %v68
    %v361 = vunpack.c.l.b16 %v69
    %v362 = vunpack.c.l.b16 %v70
    %v363 = vunpack.c.l.b16 %v71
    %v364 = vunpack.c.l.b16 %v72
    %v365 = vunpack.c.l.b16 %v73
    %v366 = vunpack.c.l.b16 %v74
    %v367 = vunpack.c.l.b16 %v75
    %v368 = vunpack.c.l.b16 %v76
    %v369 = vunpack.c.l.b16 %v77
    %v370 = vunpack.c.l.b16 %v78
    %v371 = vunpack.c.l.b16 %v79
    %v372 = vunpack.c.l.b16 %v80
    %v373 = vunpack.c.l.b16 %v81
    %v374 = vunpack.c.l.b16 %v82
    %v375 = vunpack.c.l.b16 %v83
    %v376 = vunpack.c.l.b16 %v84
    %v377 = vunpack.c.l.b16 %v85
    %v378 = vunpack.c.l.b16 %v86
    %v379 = vunpack.c.l.b16 %v87
    %v380 = vunpack.c.l.b16 %v88
    %v381 = vunpack.c.l.b16 %v89
    %v382 = vunpack.c.l.b16 %v90
    %v383 = vunpack.c.l.b16 %v91
    %v384 = vunpack.c.l.b16 %v92
    %v385 = vunpack.c.l.b16 %v93
    %v386 = vunpack.c.l.b16 %v94
    %v387 = vunpack.c.l.b16 %v95
    %v388 = vunpack.c.l.b16 %v96
    %v389 = vunpack.c.l.b16 %v97
    %v390 = vunpack.c.l.b16 %v98
    %v391 = vunpack.c.l.b16 %v99
    %v392 = vunpack.c.l.b16 %v100
    %v393 = vunpack.c.l.b16 %v101
    %v394 = vunpack.c.l.b16 %v102
    %v395 = vunpack.c.l.b16 %v103
    %v396 = vunpack.c.l.b16 %v104
    %v397 = vunpack.c.l.b16 %v105
    %v398 = vunpack.c.l.b16 %v106
    %v399 = vunpack.c.l.b16 %v107
    %v400 = vunpack.c.l.b16 %v108
    %v401 = vunpack.c.l.b16 %v109
    %v402 = vunpack.c.l.b16 %v110
    %v403 = vunpack.c.l.b16 %v111
    %v404 = vunpack.c.l.b16 %v112
    %v405 = vunpack.c.l.b16 %v113
    %v406 = vunpack.c.l.b16 %v114
    %v407 = vunpack.c.l.b16 %v115
    %v408 = vunpack.c.l.b16 %v116
    %v409 = vunpack.c.l.b16 %v117
    %v410 = vunpack.c.l.b16 %v118
    %v411 = vunpack.c.l.b16 %v119
    %v412 = vunpack.c.l.b16 %v120
    %v413 = vunpack.c.l.b16 %v121
    %v414 = vunpack.c.l.b16 %v122
    %v415 = vunpack.c.l.b16 %v123
    %v416 = vunpack.c.l.b16 %v124
    %v417 = vunpack.c.l.b16 %v125
    %v418 = vunpack.c.l.b16 %v126
    %v419 = vunpack.c.l.b16 %v127
    %v420 = vunpack.c.l.b16 %v128
    %v421 = vunpack.c.l.b16 %v129
    %v422 = vunpack.c.l.b16 %v130
    %v423 = vunpack.c.l.b16 %v131
    %v424 = vunpack.c.l.b16 %v132
    %v425 = vunpack.c.l.b16 %v133
    %v426 = vunpack.c.l.b16 %v134
    %v427 = vunpack.c.l.b16 %v135
    %v428 = vunpack.c.l.b16 %v136
    %v429 = vunpack.c.l.b16 %v137
    %v430 = vunpack.c.l.b16 %v138
    %v431 = vunpack.c.l.b16 %v139
    %v432 = vunpack.c.l.b16 %v140
    %v433 = vunpack.c.l.b16 %v141
    %v434 = vunpack.c.l.b16 %v142
    %v435 = vunpack.c.l.b16 %v143
    %v436 = vunpack.c.l.b16 %v144
    %v437 = vunpack.c.l.b16 %v145
    %v438 = vunpack.c.l.b16 %v146
    %v439 = vunpack.c.l.b16 %v147
    %v440 = vunpack.c.l.b16 %v148
    %v441 = vunpack.c.l.b16 %v149
    %v442 = vunpack.c.l.b16 %v150
    %v443 = vunpack.c.l.b16 %v151
    %v444 = vunpack.c.l.b16 %v152
    %v445 = vunpack.c.l.b16 %v153
    %v446 = vunpack.c.l.b16 %v154
    %v447 = vunpack.c.l.b16 %v155
    %v448 = vunpack.c.l.b16 %v156
    %v449 = vunpack.c.l.b16 %v157
    %v450 = vunpack.c.l.b16 %v158
    %v451 = vunpack.c.l.b16 %v159
    %v452 = vunpack.c.l.b16 %v160
    %v453 = vunpack.c.l.b16 %v161
    %v454 = vunpack.c.l.b16 %v162
    %v455 = vunpack.c.l.b16 %v163
    %v456 = vunpack.c.l.b16 %v164
    %v457 = vunpack.c.l.b16 %v165
    %v458 = vunpack.c.l.b16 %v166
    %v459 = vunpack.c.l.b16 %v167
    %v460 = vunpack.c.l.b16 %v168
    %v461 = vunpack.c.l.b16 %v169
    %v462 = vunpack.c.l.b16 %v170
    %v463 = vunpack.c.l.b16 %v171
    %v464 = vunpack.c.l.b16 %v172
    %v465 = vunpack.c.l.b16 %v173
    %v466 = vunpack.c.l.b16 %v174
    %v467 = vunpack.c.l.b16 %v175
    %v468 = vunpack.c.l.b16 %v176
    %v469 = vunpack.c.l.b16 %v177
    %v470 = vpack.c.b16 %v327, %v326
    %v471 = vpack.c.b16 %v329, %v328
    %v472 = vpack.c.b16 %v331, %v330
    %v473 = vpack.c.b16 %v333, %v332
    %v474 = vpack.c.b16 %v335, %v334
    %v475 = vpack.c.b16 %v337, %v336
    %v476 = vpack.c.b16 %v339, %v338
    %v477 = vpack.c.b16 %v341, %v340
    %v478 = vpack.c.b16 %v343, %v342
    %v479 = vpack.c.b16 %v345, %v344
    %v480 = vpack.c.b16 %v347, %v346
    %v481 = vpack.c.b16 %v349, %v348
    %v482 = vpack.c.b16 %v351, %v350
    %v483 = vpack.c.b16 %v353, %v352
    %v484 = vpack.c.b16 %v355, %v354
    %v485 = vpack.c.b16 %v357, %v356
    %v486 = vpack.c.b16 %v359, %v358
    %v487 = vpack.c.b16 %v361, %v360
    %v488 = vpack.c.b16 %v363, %v362
    %v489 = vpack.c.b16 %v365, %v364
    %v490 = vpack.c.b16 %v367, %v366
    %v491 = vpack.c.b16 %v369, %v368
    %v492 = vpack.c.b16 %v371, %v370
    %v493 = vpack.c.b16 %v373, %v372
    %v494 = vpack.c.b16 %v375, %v374
    %v495 = vpack.c.b16 %v377, %v376
    %v496 = vpack.c.b16 %v379, %v378
    %v497 = vpack.c.b16 %v381, %v380
    %v498 = vpack.c.b16 %v383, %v382
    %v499 = vpack.c.b16 %v385, %v384
    %v500 = vpack.c.b16 %v387, %v386
    %v501 = vpack.c.b16 %v389, %v388
    %v502 = vpack.c.b16 %v391, %v390
    %v503 = vpack.c.b16 %v393, %v392
    %v504 = vpack.c.b16 %v395, %v394
    %v505 = vpack.c.b16 %v397, %v396
    %v506 = vpack.c.b16 %v399, %v398
    %v507 = vpack.c.b16 %v401, %v400
    %v508 = vpack.c.b16 %v403, %v402
    %v509 = vpack.c.b16 %v405, %v404
    %v510 = vpack.c.b16 %v407, %v406
    %v511 = vpack.c.b16 %v409, %v408
    %v512 = vpack.c.b16 %v411, %v410
    %v513 = vpack.c.b16 %v413, %v412
    %v514 = vpack.c.b16 %v415, %v414
    %v515 = vpack.c.b16 %v417, %v416
    %v516 = vpack.c.b16 %v419, %v418
    %v517 = vpack.c.b16 %v421, %v420
    %v518 = vpack.c.b16 %v423, %v422
    %v519 = vpack.c.b16 %v425, %v424
    %v520 = vpack.c.b16 %v427, %v426
    %v521 = vpack.c.b16 %v429, %v428
    %v522 = vpack.c.b16 %v431, %v430
    %v523 = vpack.c.b16 %v433, %v432
    %v524 = vpack.c.b16 %v435, %v434
    %v525 = vpack.c.b16 %v437, %v436
    %v526 = vpack.c.b16 %v439, %v438
    %v527 = vpack.c.b16 %v441, %v440
    %v528 = vpack.c.b16 %v443, %v442
    %v529 = vpack.c.b16 %v445, %v444
    %v530 = vpack.c.b16 %v447, %v446
    %v531 = vpack.c.b16 %v449, %v448
    %v532 = vpack.c.b16 %v451, %v450
    %v533 = vpack.c.b16 %v453, %v452
    %v534 = vpack.c.b16 %v455, %v454
    %v535 = vpack.c.b16 %v457, %v456
    %v536 = vpack.c.b16 %v459, %v458
    %v537 = vpack.c.b16 %v461, %v460
    %v538 = vpack.c.b16 %v463, %v462
    %v539 = vpack.c.b16 %v465, %v464
    %v540 = vpack.c.b16 %v467, %v466
    %v541 = vpack.c.b16 %v469, %v468
    %v546 = vunpack.c.l.b16 %v178
    %v547 = vunpack.c.l.b16 %v179
    %v548 = vunpack.c.l.b16 %v180
    %v549 = vunpack.c.l.b16 %v181
    %v550 = vpack.c.b16 %v547, %v546
    %v551 = vpack.c.b16 %v549, %v548
    %vm553 = vcmask 203776
    %v555 = vsel %vm553, %v470, 0
    %v558 = vsel %vm553, %v471, 0
    %v561 = vsel %vm553, %v472, 0
    %v564 = vsel %vm553, %v473, 0
    %v567 = vsel %vm553, %v474, 0
    %v570 = vsel %vm553, %v475, 0
    %v573 = vsel %vm553, %v476, 0
    %v576 = vsel %vm553, %v477, 0
    %v579 = vsel %vm553, %v478, 0
    %v582 = vsel %vm553, %v479, 0
    %v585 = vsel %vm553, %v480, 0
    %v588 = vsel %vm553, %v481, 0
    %v591 = vsel %vm553, %v482, 0
    %v594 = vsel %vm553, %v483, 0
    %v597 = vsel %vm553, %v484, 0
    %v600 = vsel %vm553, %v485, 0
    %v603 = vsel %vm553, %v486, 0
    %v606 = vsel %vm553, %v487, 0
    %v609 = vsel %vm553, %v488, 0
    %v612 = vsel %vm553, %v489, 0
    %v615 = vsel %vm553, %v490, 0
    %v618 = vsel %vm553, %v491, 0
    %v621 = vsel %vm553, %v492, 0
    %v624 = vsel %vm553, %v493, 0
    %v627 = vsel %vm553, %v494, 0
    %v630 = vsel %vm553, %v495, 0
    %v633 = vsel %vm553, %v496, 0
    %v636 = vsel %vm553, %v497, 0
    %v639 = vsel %vm553, %v498, 0
    %v642 = vsel %vm553, %v499, 0
    %v645 = vsel %vm553, %v500, 0
    %v648 = vsel %vm553, %v501, 0
    %v651 = vsel %vm553, %v502, 0
    %v654 = vsel %vm553, %v503, 0
    %v657 = vsel %vm553, %v504, 0
    %v660 = vsel %vm553, %v505, 0
    %v663 = vsel %vm553, %v506, 0
    %v666 = vsel %vm553, %v507, 0
    %v669 = vsel %vm553, %v508, 0
    %v672 = vsel %vm553, %v509, 0
    %v675 = vsel %vm553, %v510, 0
    %v678 = vsel %vm553, %v511, 0
    %v681 = vsel %vm553, %v512, 0
    %v684 = vsel %vm553, %v513, 0
    %v687 = vsel %vm553, %v514, 0
    %v690 = vsel %vm553, %v515, 0
    %v693 = vsel %vm553, %v516, 0
    %v696 = vsel %vm553, %v517, 0
    %v699 = vsel %vm553, %v518, 0
    %v702 = vsel %vm553, %v519, 0
    %v705 = vsel %vm553, %v520, 0
    %v708 = vsel %vm553, %v521, 0
    %v711 = vsel %vm553, %v522, 0
    %v714 = vsel %vm553, %v523, 0
    %v717 = vsel %vm553, %v524, 0
    %v720 = vsel %vm553, %v525, 0
    %v723 = vsel %vm553, %v526, 0
    %v726 = vsel %vm553, %v527, 0
    %v729 = vsel %vm553, %v528, 0
    %v732 = vsel %vm553, %v529, 0
    %v735 = vsel %vm553, %v530, 0
    %v738 = vsel %vm553, %v531, 0
    %v741 = vsel %vm553, %v532, 0
    %v744 = vsel %vm553, %v533, 0
    %v747 = vsel %vm553, %v534, 0
    %v750 = vsel %vm553, %v535, 0
    %v753 = vsel %vm553, %v536, 0
    %v756 = vsel %vm553, %v537, 0
    %v759 = vsel %vm553, %v538, 0
    %v762 = vsel %vm553, %v539, 0
    %v765 = vsel %vm553, %v540, 0
    %v768 = vsel %vm553, %v541, 0
    %vm770 = vcmask 1043456
    %vm771 = vcmask 1044480
    %v772 = vsel %vm770, 4294967295, 65535
    %v773 = vsel %vm771, %v772, 0
    %v775 = vand.u32 %v551, %v773
    %777 = vmatprep.subr.bf16.mxu0 0
    %778 = vmatpush1.bf16.msra.mxu0 0
    %779 = vmatprep.subr.bf16.mxu0 0
    %780 = vmatpush1.bf16.msra.mxu0 0
    %781 = vmatprep.subr.bf16.mxu0 0
    %782 = vmatpush1.bf16.msra.mxu0 0
    %783 = vmatprep.subr.bf16.mxu0 0
    %784 = vmatpush1.bf16.msra.mxu0 0
    %785 = vmatprep.subr.bf16.mxu0 0
    %786 = vmatpush1.bf16.msra.mxu0 0
    %787 = vmatprep.subr.bf16.mxu0 0
    %788 = vmatpush1.bf16.msra.mxu0 0
    %789 = vmatprep.subr.bf16.mxu0 0
    %790 = vmatpush1.bf16.msra.mxu0 %v775
    %791 = vmatprep.subr.bf16.mxu0 0
    %792 = vmatpush1.bf16.msra.mxu0 %v550
    %793 = vmatprep.subr.bf16.mxu0 0
    %794 = vmatpush2.bf16.msra.mxu0 0
    %795 = vmatprep.subr.bf16.mxu0 0
    %796 = vmatpush2.bf16.msra.mxu0 0
    %797 = vmatprep.subr.bf16.mxu0 0
    %798 = vmatpush2.bf16.msra.mxu0 0
    %799 = vmatprep.subr.bf16.mxu0 0
    %800 = vmatpush2.bf16.msra.mxu0 0
    %801 = vmatprep.subr.bf16.mxu0 0
    %802 = vmatpush2.bf16.msra.mxu0 0
    %803 = vmatprep.subr.bf16.mxu0 0
    %804 = vmatpush2.bf16.msra.mxu0 0
    %805 = vmatprep.subr.bf16.mxu0 0
    %806 = vmatpush2.bf16.msra.mxu0 0
    %807 = vmatprep.subr.bf16.mxu0 0
    %808 = vmatpush2.bf16.msra.mxu0 0
    %809 = vmatprep.mubr.bf16.mxu0 0
    %810 = vmatmul.mubr.bf16.gmra.mxu0 %v555
    %v811 = vpop.f32.mrf.mxu0
    %v812 = vadd.f32 0.0, %v811
    %v813 = vpop.f32.mrf.mxu0
    %v814 = vpop.f32.mrf.mxu0
    %v815 = vadd.f32 0.0, %v814
    %v816 = vpop.f32.mrf.mxu0
    %817 = vmatprep.mubr.bf16.mxu0 0
    %818 = vmatmul.mubr.bf16.gmra.mxu0 %v558
    %v819 = vpop.f32.mrf.mxu0
    %v820 = vadd.f32 0.0, %v819
    %v821 = vpop.f32.mrf.mxu0
    %v822 = vpop.f32.mrf.mxu0
    %v823 = vadd.f32 0.0, %v822
    %v824 = vpop.f32.mrf.mxu0
    %825 = vmatprep.mubr.bf16.mxu0 0
    %826 = vmatmul.mubr.bf16.gmra.mxu0 %v561
    %v827 = vpop.f32.mrf.mxu0
    %v828 = vadd.f32 0.0, %v827
    %v829 = vpop.f32.mrf.mxu0
    %v830 = vpop.f32.mrf.mxu0
    %v831 = vadd.f32 0.0, %v830
    %v832 = vpop.f32.mrf.mxu0
    %833 = vmatprep.mubr.bf16.mxu0 0
    %834 = vmatmul.mubr.bf16.gmra.mxu0 %v564
    %v835 = vpop.f32.mrf.mxu0
    %v836 = vadd.f32 0.0, %v835
    %v837 = vpop.f32.mrf.mxu0
    %v838 = vpop.f32.mrf.mxu0
    %v839 = vadd.f32 0.0, %v838
    %v840 = vpop.f32.mrf.mxu0
    %841 = vmatprep.mubr.bf16.mxu0 0
    %842 = vmatmul.mubr.bf16.gmra.mxu0 %v567
    %v843 = vpop.f32.mrf.mxu0
    %v844 = vadd.f32 0.0, %v843
    %v845 = vpop.f32.mrf.mxu0
    %v846 = vpop.f32.mrf.mxu0
    %v847 = vadd.f32 0.0, %v846
    %v848 = vpop.f32.mrf.mxu0
    %849 = vmatprep.mubr.bf16.mxu0 0
    %850 = vmatmul.mubr.bf16.gmra.mxu0 %v570
    %v851 = vpop.f32.mrf.mxu0
    %v852 = vadd.f32 0.0, %v851
    %v853 = vpop.f32.mrf.mxu0
    %v854 = vpop.f32.mrf.mxu0
    %v855 = vadd.f32 0.0, %v854
    %v856 = vpop.f32.mrf.mxu0
    %857 = vmatprep.mubr.bf16.mxu0 0
    %858 = vmatmul.mubr.bf16.gmra.mxu0 %v573
    %v859 = vpop.f32.mrf.mxu0
    %v860 = vadd.f32 0.0, %v859
    %v861 = vpop.f32.mrf.mxu0
    %v862 = vpop.f32.mrf.mxu0
    %v863 = vadd.f32 0.0, %v862
    %v864 = vpop.f32.mrf.mxu0
    %865 = vmatprep.mubr.bf16.mxu0 0
    %866 = vmatmul.mubr.bf16.gmra.mxu0 %v576
    %v867 = vpop.f32.mrf.mxu0
    %v868 = vadd.f32 0.0, %v867
    %v869 = vpop.f32.mrf.mxu0
    %v870 = vpop.f32.mrf.mxu0
    %v871 = vadd.f32 0.0, %v870
    %v872 = vpop.f32.mrf.mxu0
    %873 = vmatprep.mubr.bf16.mxu0 0
    %874 = vmatmul.mubr.bf16.gmra.mxu0 %v579
    %v875 = vpop.f32.mrf.mxu0
    %v876 = vadd.f32 0.0, %v875
    %v877 = vpop.f32.mrf.mxu0
    %v878 = vpop.f32.mrf.mxu0
    %v879 = vadd.f32 0.0, %v878
    %v880 = vpop.f32.mrf.mxu0
    %881 = vmatprep.mubr.bf16.mxu0 0
    %882 = vmatmul.mubr.bf16.gmra.mxu0 %v582
    %v883 = vpop.f32.mrf.mxu0
    %v884 = vadd.f32 0.0, %v883
    %v885 = vpop.f32.mrf.mxu0
    %v886 = vpop.f32.mrf.mxu0
    %v887 = vadd.f32 0.0, %v886
    %v888 = vpop.f32.mrf.mxu0
    %889 = vmatprep.mubr.bf16.mxu0 0
    %890 = vmatmul.mubr.bf16.gmra.mxu0 %v585
    %v891 = vpop.f32.mrf.mxu0
    %v892 = vadd.f32 0.0, %v891
    %v893 = vpop.f32.mrf.mxu0
    %v894 = vpop.f32.mrf.mxu0
    %v895 = vadd.f32 0.0, %v894
    %v896 = vpop.f32.mrf.mxu0
    %897 = vmatprep.mubr.bf16.mxu0 0
    %898 = vmatmul.mubr.bf16.gmra.mxu0 %v588
    %v899 = vpop.f32.mrf.mxu0
    %v900 = vadd.f32 0.0, %v899
    %v901 = vpop.f32.mrf.mxu0
    %v902 = vpop.f32.mrf.mxu0
    %v903 = vadd.f32 0.0, %v902
    %v904 = vpop.f32.mrf.mxu0
    %905 = vmatprep.mubr.bf16.mxu0 0
    %906 = vmatmul.mubr.bf16.gmra.mxu0 %v591
    %v907 = vpop.f32.mrf.mxu0
    %v908 = vadd.f32 0.0, %v907
    %v909 = vpop.f32.mrf.mxu0
    %v910 = vpop.f32.mrf.mxu0
    %v911 = vadd.f32 0.0, %v910
    %v912 = vpop.f32.mrf.mxu0
    %913 = vmatprep.mubr.bf16.mxu0 0
    %914 = vmatmul.mubr.bf16.gmra.mxu0 %v594
    %v915 = vpop.f32.mrf.mxu0
    %v916 = vadd.f32 0.0, %v915
    %v917 = vpop.f32.mrf.mxu0
    %v918 = vpop.f32.mrf.mxu0
    %v919 = vadd.f32 0.0, %v918
    %v920 = vpop.f32.mrf.mxu0
    %921 = vmatprep.mubr.bf16.mxu0 0
    %922 = vmatmul.mubr.bf16.gmra.mxu0 %v597
    %v923 = vpop.f32.mrf.mxu0
    %v924 = vadd.f32 0.0, %v923
    %v925 = vpop.f32.mrf.mxu0
    %v926 = vpop.f32.mrf.mxu0
    %v927 = vadd.f32 0.0, %v926
    %v928 = vpop.f32.mrf.mxu0
    %929 = vmatprep.mubr.bf16.mxu0 0
    %930 = vmatmul.mubr.bf16.gmra.mxu0 %v600
    %v931 = vpop.f32.mrf.mxu0
    %v932 = vadd.f32 0.0, %v931
    %v933 = vpop.f32.mrf.mxu0
    %v934 = vpop.f32.mrf.mxu0
    %v935 = vadd.f32 0.0, %v934
    %v936 = vpop.f32.mrf.mxu0
    %937 = vmatprep.mubr.bf16.mxu0 0
    %938 = vmatmul.mubr.bf16.gmra.mxu0 %v603
    %v939 = vpop.f32.mrf.mxu0
    %v940 = vadd.f32 0.0, %v939
    %v941 = vpop.f32.mrf.mxu0
    %v942 = vpop.f32.mrf.mxu0
    %v943 = vadd.f32 0.0, %v942
    %v944 = vpop.f32.mrf.mxu0
    %945 = vmatprep.mubr.bf16.mxu0 0
    %946 = vmatmul.mubr.bf16.gmra.mxu0 %v606
    %v947 = vpop.f32.mrf.mxu0
    %v948 = vadd.f32 0.0, %v947
    %v949 = vpop.f32.mrf.mxu0
    %v950 = vpop.f32.mrf.mxu0
    %v951 = vadd.f32 0.0, %v950
    %v952 = vpop.f32.mrf.mxu0
    %953 = vmatprep.mubr.bf16.mxu0 0
    %954 = vmatmul.mubr.bf16.gmra.mxu0 %v609
    %v955 = vpop.f32.mrf.mxu0
    %v956 = vadd.f32 0.0, %v955
    %v957 = vpop.f32.mrf.mxu0
    %v958 = vpop.f32.mrf.mxu0
    %v959 = vadd.f32 0.0, %v958
    %v960 = vpop.f32.mrf.mxu0
    %961 = vmatprep.mubr.bf16.mxu0 0
    %962 = vmatmul.mubr.bf16.gmra.mxu0 %v612
    %v963 = vpop.f32.mrf.mxu0
    %v964 = vadd.f32 0.0, %v963
    %v965 = vpop.f32.mrf.mxu0
    %v966 = vpop.f32.mrf.mxu0
    %v967 = vadd.f32 0.0, %v966
    %v968 = vpop.f32.mrf.mxu0
    %969 = vmatprep.mubr.bf16.mxu0 0
    %970 = vmatmul.mubr.bf16.gmra.mxu0 %v615
    %v971 = vpop.f32.mrf.mxu0
    %v972 = vadd.f32 0.0, %v971
    %v973 = vpop.f32.mrf.mxu0
    %v974 = vpop.f32.mrf.mxu0
    %v975 = vadd.f32 0.0, %v974
    %v976 = vpop.f32.mrf.mxu0
    %977 = vmatprep.mubr.bf16.mxu0 0
    %978 = vmatmul.mubr.bf16.gmra.mxu0 %v618
    %v979 = vpop.f32.mrf.mxu0
    %v980 = vadd.f32 0.0, %v979
    %v981 = vpop.f32.mrf.mxu0
    %v982 = vpop.f32.mrf.mxu0
    %v983 = vadd.f32 0.0, %v982
    %v984 = vpop.f32.mrf.mxu0
    %985 = vmatprep.mubr.bf16.mxu0 0
    %986 = vmatmul.mubr.bf16.gmra.mxu0 %v621
    %v987 = vpop.f32.mrf.mxu0
    %v988 = vadd.f32 0.0, %v987
    %v989 = vpop.f32.mrf.mxu0
    %v990 = vpop.f32.mrf.mxu0
    %v991 = vadd.f32 0.0, %v990
    %v992 = vpop.f32.mrf.mxu0
    %993 = vmatprep.mubr.bf16.mxu0 0
    %994 = vmatmul.mubr.bf16.gmra.mxu0 %v624
    %v995 = vpop.f32.mrf.mxu0
    %v996 = vadd.f32 0.0, %v995
    %v997 = vpop.f32.mrf.mxu0
    %v998 = vpop.f32.mrf.mxu0
    %v999 = vadd.f32 0.0, %v998
    %v1000 = vpop.f32.mrf.mxu0
    %1001 = vmatprep.mubr.bf16.mxu0 0
    %1002 = vmatmul.mubr.bf16.gmra.mxu0 %v627
    %v1003 = vpop.f32.mrf.mxu0
    %v1004 = vadd.f32 0.0, %v1003
    %v1005 = vpop.f32.mrf.mxu0
    %v1006 = vpop.f32.mrf.mxu0
    %v1007 = vadd.f32 0.0, %v1006
    %v1008 = vpop.f32.mrf.mxu0
    %1009 = vmatprep.mubr.bf16.mxu0 0
    %1010 = vmatmul.mubr.bf16.gmra.mxu0 %v630
    %v1011 = vpop.f32.mrf.mxu0
    %v1012 = vadd.f32 0.0, %v1011
    %v1013 = vpop.f32.mrf.mxu0
    %v1014 = vpop.f32.mrf.mxu0
    %v1015 = vadd.f32 0.0, %v1014
    %v1016 = vpop.f32.mrf.mxu0
    %1017 = vmatprep.mubr.bf16.mxu0 0
    %1018 = vmatmul.mubr.bf16.gmra.mxu0 %v633
    %v1019 = vpop.f32.mrf.mxu0
    %v1020 = vadd.f32 0.0, %v1019
    %v1021 = vpop.f32.mrf.mxu0
    %v1022 = vpop.f32.mrf.mxu0
    %v1023 = vadd.f32 0.0, %v1022
    %v1024 = vpop.f32.mrf.mxu0
    %1025 = vmatprep.mubr.bf16.mxu0 0
    %1026 = vmatmul.mubr.bf16.gmra.mxu0 %v636
    %v1027 = vpop.f32.mrf.mxu0
    %v1028 = vadd.f32 0.0, %v1027
    %v1029 = vpop.f32.mrf.mxu0
    %v1030 = vpop.f32.mrf.mxu0
    %v1031 = vadd.f32 0.0, %v1030
    %v1032 = vpop.f32.mrf.mxu0
    %1033 = vmatprep.mubr.bf16.mxu0 0
    %1034 = vmatmul.mubr.bf16.gmra.mxu0 %v639
    %v1035 = vpop.f32.mrf.mxu0
    %v1036 = vadd.f32 0.0, %v1035
    %v1037 = vpop.f32.mrf.mxu0
    %v1038 = vpop.f32.mrf.mxu0
    %v1039 = vadd.f32 0.0, %v1038
    %v1040 = vpop.f32.mrf.mxu0
    %1041 = vmatprep.mubr.bf16.mxu0 0
    %1042 = vmatmul.mubr.bf16.gmra.mxu0 %v642
    %v1043 = vpop.f32.mrf.mxu0
    %v1044 = vadd.f32 0.0, %v1043
    %v1045 = vpop.f32.mrf.mxu0
    %v1046 = vpop.f32.mrf.mxu0
    %v1047 = vadd.f32 0.0, %v1046
    %v1048 = vpop.f32.mrf.mxu0
    %1049 = vmatprep.mubr.bf16.mxu0 0
    %1050 = vmatmul.mubr.bf16.gmra.mxu0 %v645
    %v1051 = vpop.f32.mrf.mxu0
    %v1052 = vadd.f32 0.0, %v1051
    %v1053 = vpop.f32.mrf.mxu0
    %v1054 = vpop.f32.mrf.mxu0
    %v1055 = vadd.f32 0.0, %v1054
    %v1056 = vpop.f32.mrf.mxu0
    %1057 = vmatprep.mubr.bf16.mxu0 0
    %1058 = vmatmul.mubr.bf16.gmra.mxu0 %v648
    %v1059 = vpop.f32.mrf.mxu0
    %v1060 = vadd.f32 0.0, %v1059
    %v1061 = vpop.f32.mrf.mxu0
    %v1062 = vpop.f32.mrf.mxu0
    %v1063 = vadd.f32 0.0, %v1062
    %v1064 = vpop.f32.mrf.mxu0
    %1065 = vmatprep.mubr.bf16.mxu0 0
    %1066 = vmatmul.mubr.bf16.gmra.mxu0 %v651
    %v1067 = vpop.f32.mrf.mxu0
    %v1068 = vadd.f32 0.0, %v1067
    %v1069 = vpop.f32.mrf.mxu0
    %v1070 = vpop.f32.mrf.mxu0
    %v1071 = vadd.f32 0.0, %v1070
    %v1072 = vpop.f32.mrf.mxu0
    %1073 = vmatprep.mubr.bf16.mxu0 0
    %1074 = vmatmul.mubr.bf16.gmra.mxu0 %v654
    %v1075 = vpop.f32.mrf.mxu0
    %v1076 = vadd.f32 0.0, %v1075
    %v1077 = vpop.f32.mrf.mxu0
    %v1078 = vpop.f32.mrf.mxu0
    %v1079 = vadd.f32 0.0, %v1078
    %v1080 = vpop.f32.mrf.mxu0
    %1081 = vmatprep.mubr.bf16.mxu0 0
    %1082 = vmatmul.mubr.bf16.gmra.mxu0 %v657
    %v1083 = vpop.f32.mrf.mxu0
    %v1084 = vadd.f32 0.0, %v1083
    %v1085 = vpop.f32.mrf.mxu0
    %v1086 = vpop.f32.mrf.mxu0
    %v1087 = vadd.f32 0.0, %v1086
    %v1088 = vpop.f32.mrf.mxu0
    %1089 = vmatprep.mubr.bf16.mxu0 0
    %1090 = vmatmul.mubr.bf16.gmra.mxu0 %v660
    %v1091 = vpop.f32.mrf.mxu0
    %v1092 = vadd.f32 0.0, %v1091
    %v1093 = vpop.f32.mrf.mxu0
    %v1094 = vpop.f32.mrf.mxu0
    %v1095 = vadd.f32 0.0, %v1094
    %v1096 = vpop.f32.mrf.mxu0
    %1097 = vmatprep.mubr.bf16.mxu0 0
    %1098 = vmatmul.mubr.bf16.gmra.mxu0 %v663
    %v1099 = vpop.f32.mrf.mxu0
    %v1100 = vadd.f32 0.0, %v1099
    %v1101 = vpop.f32.mrf.mxu0
    %v1102 = vpop.f32.mrf.mxu0
    %v1103 = vadd.f32 0.0, %v1102
    %v1104 = vpop.f32.mrf.mxu0
    %1105 = vmatprep.mubr.bf16.mxu0 0
    %1106 = vmatmul.mubr.bf16.gmra.mxu0 %v666
    %v1107 = vpop.f32.mrf.mxu0
    %v1108 = vadd.f32 0.0, %v1107
    %v1109 = vpop.f32.mrf.mxu0
    %v1110 = vpop.f32.mrf.mxu0
    %v1111 = vadd.f32 0.0, %v1110
    %v1112 = vpop.f32.mrf.mxu0
    %1113 = vmatprep.mubr.bf16.mxu0 0
    %1114 = vmatmul.mubr.bf16.gmra.mxu0 %v669
    %v1115 = vpop.f32.mrf.mxu0
    %v1116 = vadd.f32 0.0, %v1115
    %v1117 = vpop.f32.mrf.mxu0
    %v1118 = vpop.f32.mrf.mxu0
    %v1119 = vadd.f32 0.0, %v1118
    %v1120 = vpop.f32.mrf.mxu0
    %1121 = vmatprep.mubr.bf16.mxu0 0
    %1122 = vmatmul.mubr.bf16.gmra.mxu0 %v672
    %v1123 = vpop.f32.mrf.mxu0
    %v1124 = vadd.f32 0.0, %v1123
    %v1125 = vpop.f32.mrf.mxu0
    %v1126 = vpop.f32.mrf.mxu0
    %v1127 = vadd.f32 0.0, %v1126
    %v1128 = vpop.f32.mrf.mxu0
    %1129 = vmatprep.mubr.bf16.mxu0 0
    %1130 = vmatmul.mubr.bf16.gmra.mxu0 %v675
    %v1131 = vpop.f32.mrf.mxu0
    %v1132 = vadd.f32 0.0, %v1131
    %v1133 = vpop.f32.mrf.mxu0
    %v1134 = vpop.f32.mrf.mxu0
    %v1135 = vadd.f32 0.0, %v1134
    %v1136 = vpop.f32.mrf.mxu0
    %1137 = vmatprep.mubr.bf16.mxu0 0
    %1138 = vmatmul.mubr.bf16.gmra.mxu0 %v678
    %v1139 = vpop.f32.mrf.mxu0
    %v1140 = vadd.f32 0.0, %v1139
    %v1141 = vpop.f32.mrf.mxu0
    %v1142 = vpop.f32.mrf.mxu0
    %v1143 = vadd.f32 0.0, %v1142
    %v1144 = vpop.f32.mrf.mxu0
    %1145 = vmatprep.mubr.bf16.mxu0 0
    %1146 = vmatmul.mubr.bf16.gmra.mxu0 %v681
    %v1147 = vpop.f32.mrf.mxu0
    %v1148 = vadd.f32 0.0, %v1147
    %v1149 = vpop.f32.mrf.mxu0
    %v1150 = vpop.f32.mrf.mxu0
    %v1151 = vadd.f32 0.0, %v1150
    %v1152 = vpop.f32.mrf.mxu0
    %1153 = vmatprep.mubr.bf16.mxu0 0
    %1154 = vmatmul.mubr.bf16.gmra.mxu0 %v684
    %v1155 = vpop.f32.mrf.mxu0
    %v1156 = vadd.f32 0.0, %v1155
    %v1157 = vpop.f32.mrf.mxu0
    %v1158 = vpop.f32.mrf.mxu0
    %v1159 = vadd.f32 0.0, %v1158
    %v1160 = vpop.f32.mrf.mxu0
    %1161 = vmatprep.mubr.bf16.mxu0 0
    %1162 = vmatmul.mubr.bf16.gmra.mxu0 %v687
    %v1163 = vpop.f32.mrf.mxu0
    %v1164 = vadd.f32 0.0, %v1163
    %v1165 = vpop.f32.mrf.mxu0
    %v1166 = vpop.f32.mrf.mxu0
    %v1167 = vadd.f32 0.0, %v1166
    %v1168 = vpop.f32.mrf.mxu0
    %1169 = vmatprep.mubr.bf16.mxu0 0
    %1170 = vmatmul.mubr.bf16.gmra.mxu0 %v690
    %v1171 = vpop.f32.mrf.mxu0
    %v1172 = vadd.f32 0.0, %v1171
    %v1173 = vpop.f32.mrf.mxu0
    %v1174 = vpop.f32.mrf.mxu0
    %v1175 = vadd.f32 0.0, %v1174
    %v1176 = vpop.f32.mrf.mxu0
    %1177 = vmatprep.mubr.bf16.mxu0 0
    %1178 = vmatmul.mubr.bf16.gmra.mxu0 %v693
    %v1179 = vpop.f32.mrf.mxu0
    %v1180 = vadd.f32 0.0, %v1179
    %v1181 = vpop.f32.mrf.mxu0
    %v1182 = vpop.f32.mrf.mxu0
    %v1183 = vadd.f32 0.0, %v1182
    %v1184 = vpop.f32.mrf.mxu0
    %1185 = vmatprep.mubr.bf16.mxu0 0
    %1186 = vmatmul.mubr.bf16.gmra.mxu0 %v696
    %v1187 = vpop.f32.mrf.mxu0
    %v1188 = vadd.f32 0.0, %v1187
    %v1189 = vpop.f32.mrf.mxu0
    %v1190 = vpop.f32.mrf.mxu0
    %v1191 = vadd.f32 0.0, %v1190
    %v1192 = vpop.f32.mrf.mxu0
    %1193 = vmatprep.mubr.bf16.mxu0 0
    %1194 = vmatmul.mubr.bf16.gmra.mxu0 %v699
    %v1195 = vpop.f32.mrf.mxu0
    %v1196 = vadd.f32 0.0, %v1195
    %v1197 = vpop.f32.mrf.mxu0
    %v1198 = vpop.f32.mrf.mxu0
    %v1199 = vadd.f32 0.0, %v1198
    %v1200 = vpop.f32.mrf.mxu0
    %1201 = vmatprep.mubr.bf16.mxu0 0
    %1202 = vmatmul.mubr.bf16.gmra.mxu0 %v702
    %v1203 = vpop.f32.mrf.mxu0
    %v1204 = vadd.f32 0.0, %v1203
    %v1205 = vpop.f32.mrf.mxu0
    %v1206 = vpop.f32.mrf.mxu0
    %v1207 = vadd.f32 0.0, %v1206
    %v1208 = vpop.f32.mrf.mxu0
    %1209 = vmatprep.mubr.bf16.mxu0 0
    %1210 = vmatmul.mubr.bf16.gmra.mxu0 %v705
    %v1211 = vpop.f32.mrf.mxu0
    %v1212 = vadd.f32 0.0, %v1211
    %v1213 = vpop.f32.mrf.mxu0
    %v1214 = vpop.f32.mrf.mxu0
    %v1215 = vadd.f32 0.0, %v1214
    %v1216 = vpop.f32.mrf.mxu0
    %1217 = vmatprep.mubr.bf16.mxu0 0
    %1218 = vmatmul.mubr.bf16.gmra.mxu0 %v708
    %v1219 = vpop.f32.mrf.mxu0
    %v1220 = vadd.f32 0.0, %v1219
    %v1221 = vpop.f32.mrf.mxu0
    %v1222 = vpop.f32.mrf.mxu0
    %v1223 = vadd.f32 0.0, %v1222
    %v1224 = vpop.f32.mrf.mxu0
    %1225 = vmatprep.mubr.bf16.mxu0 0
    %1226 = vmatmul.mubr.bf16.gmra.mxu0 %v711
    %v1227 = vpop.f32.mrf.mxu0
    %v1228 = vadd.f32 0.0, %v1227
    %v1229 = vpop.f32.mrf.mxu0
    %v1230 = vpop.f32.mrf.mxu0
    %v1231 = vadd.f32 0.0, %v1230
    %v1232 = vpop.f32.mrf.mxu0
    %1233 = vmatprep.mubr.bf16.mxu0 0
    %1234 = vmatmul.mubr.bf16.gmra.mxu0 %v714
    %v1235 = vpop.f32.mrf.mxu0
    %v1236 = vadd.f32 0.0, %v1235
    %v1237 = vpop.f32.mrf.mxu0
    %v1238 = vpop.f32.mrf.mxu0
    %v1239 = vadd.f32 0.0, %v1238
    %v1240 = vpop.f32.mrf.mxu0
    %1241 = vmatprep.mubr.bf16.mxu0 0
    %1242 = vmatmul.mubr.bf16.gmra.mxu0 %v717
    %v1243 = vpop.f32.mrf.mxu0
    %v1244 = vadd.f32 0.0, %v1243
    %v1245 = vpop.f32.mrf.mxu0
    %v1246 = vpop.f32.mrf.mxu0
    %v1247 = vadd.f32 0.0, %v1246
    %v1248 = vpop.f32.mrf.mxu0
    %1249 = vmatprep.mubr.bf16.mxu0 0
    %1250 = vmatmul.mubr.bf16.gmra.mxu0 %v720
    %v1251 = vpop.f32.mrf.mxu0
    %v1252 = vadd.f32 0.0, %v1251
    %v1253 = vpop.f32.mrf.mxu0
    %v1254 = vpop.f32.mrf.mxu0
    %v1255 = vadd.f32 0.0, %v1254
    %v1256 = vpop.f32.mrf.mxu0
    %1257 = vmatprep.mubr.bf16.mxu0 0
    %1258 = vmatmul.mubr.bf16.gmra.mxu0 %v723
    %v1259 = vpop.f32.mrf.mxu0
    %v1260 = vadd.f32 0.0, %v1259
    %v1261 = vpop.f32.mrf.mxu0
    %v1262 = vpop.f32.mrf.mxu0
    %v1263 = vadd.f32 0.0, %v1262
    %v1264 = vpop.f32.mrf.mxu0
    %1265 = vmatprep.mubr.bf16.mxu0 0
    %1266 = vmatmul.mubr.bf16.gmra.mxu0 %v726
    %v1267 = vpop.f32.mrf.mxu0
    %v1268 = vadd.f32 0.0, %v1267
    %v1269 = vpop.f32.mrf.mxu0
    %v1270 = vpop.f32.mrf.mxu0
    %v1271 = vadd.f32 0.0, %v1270
    %v1272 = vpop.f32.mrf.mxu0
    %1273 = vmatprep.mubr.bf16.mxu0 0
    %1274 = vmatmul.mubr.bf16.gmra.mxu0 %v729
    %v1275 = vpop.f32.mrf.mxu0
    %v1276 = vadd.f32 0.0, %v1275
    %v1277 = vpop.f32.mrf.mxu0
    %v1278 = vpop.f32.mrf.mxu0
    %v1279 = vadd.f32 0.0, %v1278
    %v1280 = vpop.f32.mrf.mxu0
    %1281 = vmatprep.mubr.bf16.mxu0 0
    %1282 = vmatmul.mubr.bf16.gmra.mxu0 %v732
    %v1283 = vpop.f32.mrf.mxu0
    %v1284 = vadd.f32 0.0, %v1283
    %v1285 = vpop.f32.mrf.mxu0
    %v1286 = vpop.f32.mrf.mxu0
    %v1287 = vadd.f32 0.0, %v1286
    %v1288 = vpop.f32.mrf.mxu0
    %1289 = vmatprep.mubr.bf16.mxu0 0
    %1290 = vmatmul.mubr.bf16.gmra.mxu0 %v735
    %v1291 = vpop.f32.mrf.mxu0
    %v1292 = vadd.f32 0.0, %v1291
    %v1293 = vpop.f32.mrf.mxu0
    %v1294 = vpop.f32.mrf.mxu0
    %v1295 = vadd.f32 0.0, %v1294
    %v1296 = vpop.f32.mrf.mxu0
    %1297 = vmatprep.mubr.bf16.mxu0 0
    %1298 = vmatmul.mubr.bf16.gmra.mxu0 %v738
    %v1299 = vpop.f32.mrf.mxu0
    %v1300 = vadd.f32 0.0, %v1299
    %v1301 = vpop.f32.mrf.mxu0
    %v1302 = vpop.f32.mrf.mxu0
    %v1303 = vadd.f32 0.0, %v1302
    %v1304 = vpop.f32.mrf.mxu0
    %1305 = vmatprep.mubr.bf16.mxu0 0
    %1306 = vmatmul.mubr.bf16.gmra.mxu0 %v741
    %v1307 = vpop.f32.mrf.mxu0
    %v1308 = vadd.f32 0.0, %v1307
    %v1309 = vpop.f32.mrf.mxu0
    %v1310 = vpop.f32.mrf.mxu0
    %v1311 = vadd.f32 0.0, %v1310
    %v1312 = vpop.f32.mrf.mxu0
    %1313 = vmatprep.mubr.bf16.mxu0 0
    %1314 = vmatmul.mubr.bf16.gmra.mxu0 %v744
    %v1315 = vpop.f32.mrf.mxu0
    %v1316 = vadd.f32 0.0, %v1315
    %v1317 = vpop.f32.mrf.mxu0
    %v1318 = vpop.f32.mrf.mxu0
    %v1319 = vadd.f32 0.0, %v1318
    %v1320 = vpop.f32.mrf.mxu0
    %1321 = vmatprep.mubr.bf16.mxu0 0
    %1322 = vmatmul.mubr.bf16.gmra.mxu0 %v747
    %v1323 = vpop.f32.mrf.mxu0
    %v1324 = vadd.f32 0.0, %v1323
    %v1325 = vpop.f32.mrf.mxu0
    %v1326 = vpop.f32.mrf.mxu0
    %v1327 = vadd.f32 0.0, %v1326
    %v1328 = vpop.f32.mrf.mxu0
    %1329 = vmatprep.mubr.bf16.mxu0 0
    %1330 = vmatmul.mubr.bf16.gmra.mxu0 %v750
    %v1331 = vpop.f32.mrf.mxu0
    %v1332 = vadd.f32 0.0, %v1331
    %v1333 = vpop.f32.mrf.mxu0
    %v1334 = vpop.f32.mrf.mxu0
    %v1335 = vadd.f32 0.0, %v1334
    %v1336 = vpop.f32.mrf.mxu0
    %1337 = vmatprep.mubr.bf16.mxu0 0
    %1338 = vmatmul.mubr.bf16.gmra.mxu0 %v753
    %v1339 = vpop.f32.mrf.mxu0
    %v1340 = vadd.f32 0.0, %v1339
    %v1341 = vpop.f32.mrf.mxu0
    %v1342 = vpop.f32.mrf.mxu0
    %v1343 = vadd.f32 0.0, %v1342
    %v1344 = vpop.f32.mrf.mxu0
    %1345 = vmatprep.mubr.bf16.mxu0 0
    %1346 = vmatmul.mubr.bf16.gmra.mxu0 %v756
    %v1347 = vpop.f32.mrf.mxu0
    %v1348 = vadd.f32 0.0, %v1347
    %v1349 = vpop.f32.mrf.mxu0
    %v1350 = vpop.f32.mrf.mxu0
    %v1351 = vadd.f32 0.0, %v1350
    %v1352 = vpop.f32.mrf.mxu0
    %1353 = vmatprep.mubr.bf16.mxu0 0
    %1354 = vmatmul.mubr.bf16.gmra.mxu0 %v759
    %v1355 = vpop.f32.mrf.mxu0
    %v1356 = vadd.f32 0.0, %v1355
    %v1357 = vpop.f32.mrf.mxu0
    %v1358 = vpop.f32.mrf.mxu0
    %v1359 = vadd.f32 0.0, %v1358
    %v1360 = vpop.f32.mrf.mxu0
    %1361 = vmatprep.mubr.bf16.mxu0 0
    %1362 = vmatmul.mubr.bf16.gmra.mxu0 %v762
    %v1363 = vpop.f32.mrf.mxu0
    %v1364 = vadd.f32 0.0, %v1363
    %v1365 = vpop.f32.mrf.mxu0
    %v1366 = vpop.f32.mrf.mxu0
    %v1367 = vadd.f32 0.0, %v1366
    %v1368 = vpop.f32.mrf.mxu0
    %1369 = vmatprep.mubr.bf16.mxu0 0
    %1370 = vmatmul.mubr.bf16.gmra.mxu0 %v765
    %v1371 = vpop.f32.mrf.mxu0
    %v1372 = vadd.f32 0.0, %v1371
    %v1373 = vpop.f32.mrf.mxu0
    %v1374 = vpop.f32.mrf.mxu0
    %v1375 = vadd.f32 0.0, %v1374
    %v1376 = vpop.f32.mrf.mxu0
    %1377 = vmatprep.mubr.bf16.mxu0 0
    %1378 = vmatmul.mubr.bf16.gmra.mxu0 %v768
    %v1379 = vpop.f32.mrf.mxu0
    %v1380 = vadd.f32 0.0, %v1379
    %v1381 = vpop.f32.mrf.mxu0
    %v1382 = vpop.f32.mrf.mxu0
    %v1383 = vadd.f32 0.0, %v1382
    %v1384 = vpop.f32.mrf.mxu0
    %1385 = vdwg.mxu0
    %v1386 = vmax.f32 %v812, %v876
    %v1387 = vmax.f32 %v815, %v879
    %v1388 = vmax.f32 %v820, %v884
    %v1389 = vmax.f32 %v823, %v887
    %v1390 = vmax.f32 %v828, %v892
    %v1391 = vmax.f32 %v831, %v895
    %v1392 = vmax.f32 %v836, %v900
    %v1393 = vmax.f32 %v839, %v903
    %v1394 = vmax.f32 %v844, %v908
    %v1395 = vmax.f32 %v847, %v911
    %v1396 = vmax.f32 %v852, %v916
    %v1397 = vmax.f32 %v855, %v919
    %v1398 = vmax.f32 %v860, %v924
    %v1399 = vmax.f32 %v863, %v927
    %v1400 = vmax.f32 %v868, %v932
    %v1401 = vmax.f32 %v871, %v935
    %v1402 = vmax.f32 %v940, %v1004
    %v1403 = vmax.f32 %v943, %v1007
    %v1404 = vmax.f32 %v948, %v1012
    %v1405 = vmax.f32 %v951, %v1015
    %v1406 = vmax.f32 %v956, %v1020
    %v1407 = vmax.f32 %v959, %v1023
    %v1408 = vmax.f32 %v964, %v1028
    %v1409 = vmax.f32 %v967, %v1031
    %v1410 = vmax.f32 %v972, %v1036
    %v1411 = vmax.f32 %v975, %v1039
    %v1412 = vmax.f32 %v980, %v1044
    %v1413 = vmax.f32 %v983, %v1047
    %v1414 = vmax.f32 %v988, %v1052
    %v1415 = vmax.f32 %v991, %v1055
    %v1416 = vmax.f32 %v996, %v1060
    %v1417 = vmax.f32 %v999, %v1063
    %v1418 = vmax.f32 %v1068, %v1132
    %v1419 = vmax.f32 %v1071, %v1135
    %v1420 = vmax.f32 %v1076, %v1140
    %v1421 = vmax.f32 %v1079, %v1143
    %v1422 = vmax.f32 %v1084, %v1148
    %v1423 = vmax.f32 %v1087, %v1151
    %v1424 = vmax.f32 %v1092, %v1156
    %v1425 = vmax.f32 %v1095, %v1159
    %v1426 = vmax.f32 %v1100, %v1164
    %v1427 = vmax.f32 %v1103, %v1167
    %v1428 = vmax.f32 %v1108, %v1172
    %v1429 = vmax.f32 %v1111, %v1175
    %v1430 = vmax.f32 %v1116, %v1180
    %v1431 = vmax.f32 %v1119, %v1183
    %v1432 = vmax.f32 %v1124, %v1188
    %v1433 = vmax.f32 %v1127, %v1191
    %v1434 = vmax.f32 %v1196, %v1260
    %v1435 = vmax.f32 %v1199, %v1263
    %v1436 = vmax.f32 %v1204, %v1268
    %v1437 = vmax.f32 %v1207, %v1271
    %v1438 = vmax.f32 %v1212, %v1276
    %v1439 = vmax.f32 %v1215, %v1279
    %v1440 = vmax.f32 %v1220, %v1284
    %v1441 = vmax.f32 %v1223, %v1287
    %v1442 = vmax.f32 %v1228, %v1292
    %v1443 = vmax.f32 %v1231, %v1295
    %v1444 = vmax.f32 %v1236, %v1300
    %v1445 = vmax.f32 %v1239, %v1303
    %v1446 = vmax.f32 %v1244, %v1308
    %v1447 = vmax.f32 %v1247, %v1311
    %v1448 = vmax.f32 %v1252, %v1316
    %v1449 = vmax.f32 %v1255, %v1319
    %v1450 = vmax.f32 %v1386, %v1402
    %v1451 = vmax.f32 %v1387, %v1403
    %v1452 = vmax.f32 %v1388, %v1404
    %v1453 = vmax.f32 %v1389, %v1405
    %v1454 = vmax.f32 %v1390, %v1406
    %v1455 = vmax.f32 %v1391, %v1407
    %v1456 = vmax.f32 %v1392, %v1408
    %v1457 = vmax.f32 %v1393, %v1409
    %v1458 = vmax.f32 %v1394, %v1410
    %v1459 = vmax.f32 %v1395, %v1411
    %v1460 = vmax.f32 %v1396, %v1412
    %v1461 = vmax.f32 %v1397, %v1413
    %v1462 = vmax.f32 %v1398, %v1414
    %v1463 = vmax.f32 %v1399, %v1415
    %v1464 = vmax.f32 %v1400, %v1416
    %v1465 = vmax.f32 %v1401, %v1417
    %v1466 = vmax.f32 %v1418, %v1434
    %v1467 = vmax.f32 %v1419, %v1435
    %v1468 = vmax.f32 %v1420, %v1436
    %v1469 = vmax.f32 %v1421, %v1437
    %v1470 = vmax.f32 %v1422, %v1438
    %v1471 = vmax.f32 %v1423, %v1439
    %v1472 = vmax.f32 %v1424, %v1440
    %v1473 = vmax.f32 %v1425, %v1441
    %v1474 = vmax.f32 %v1426, %v1442
    %v1475 = vmax.f32 %v1427, %v1443
    %v1476 = vmax.f32 %v1428, %v1444
    %v1477 = vmax.f32 %v1429, %v1445
    %v1478 = vmax.f32 %v1430, %v1446
    %v1479 = vmax.f32 %v1431, %v1447
    %v1480 = vmax.f32 %v1432, %v1448
    %v1481 = vmax.f32 %v1433, %v1449
    %v1482 = vmax.f32 %v1450, %v1466
    %v1483 = vmax.f32 %v1451, %v1467
    %v1484 = vmax.f32 %v1452, %v1468
    %v1485 = vmax.f32 %v1453, %v1469
    %v1486 = vmax.f32 %v1454, %v1470
    %v1487 = vmax.f32 %v1455, %v1471
    %v1488 = vmax.f32 %v1456, %v1472
    %v1489 = vmax.f32 %v1457, %v1473
    %v1490 = vmax.f32 %v1458, %v1474
    %v1491 = vmax.f32 %v1459, %v1475
    %v1492 = vmax.f32 %v1460, %v1476
    %v1493 = vmax.f32 %v1461, %v1477
    %v1494 = vmax.f32 %v1462, %v1478
    %v1495 = vmax.f32 %v1463, %v1479
    %v1496 = vmax.f32 %v1464, %v1480
    %v1497 = vmax.f32 %v1465, %v1481
    %v1498 = vmax.f32 %v1482, %v1324
    %v1499 = vmax.f32 %v1483, %v1327
    %v1500 = vmax.f32 %v1484, %v1332
    %v1501 = vmax.f32 %v1485, %v1335
    %v1502 = vmax.f32 %v1486, %v1340
    %v1503 = vmax.f32 %v1487, %v1343
    %v1504 = vmax.f32 %v1488, %v1348
    %v1505 = vmax.f32 %v1489, %v1351
    %v1506 = vmax.f32 %v1490, %v1356
    %v1507 = vmax.f32 %v1491, %v1359
    %v1508 = vmax.f32 %v1492, %v1364
    %v1509 = vmax.f32 %v1493, %v1367
    %v1510 = vmax.f32 %v1494, %v1372
    %v1511 = vmax.f32 %v1495, %v1375
    %v1512 = vmax.f32 %v1496, %v1380
    %v1513 = vmax.f32 %v1497, %v1383
    %v1514 = vld [vmem:[%s2] sm:$0x1]
    %v1516 = vlaneseq
    %v1517 = vshrl.u32 %v1516, 7
    %v1518 = vsub.s32 0, %v1517
    %v1519 = vrot.slane %v1514, %v1518
    %v1521 = vadd.f32 %v1498, %v1519
    %v1522 = vadd.f32 %v1499, %v1519
    %v1523 = vadd.f32 %v1500, %v1519
    %v1524 = vadd.f32 %v1501, %v1519
    %v1525 = vadd.f32 %v1502, %v1519
    %v1526 = vadd.f32 %v1503, %v1519
    %v1527 = vadd.f32 %v1504, %v1519
    %v1528 = vadd.f32 %v1505, %v1519
    %v1529 = vadd.f32 %v1506, %v1519
    %v1530 = vadd.f32 %v1507, %v1519
    %v1531 = vadd.f32 %v1508, %v1519
    %v1532 = vadd.f32 %v1509, %v1519
    %v1533 = vadd.f32 %v1510, %v1519
    %v1534 = vadd.f32 %v1511, %v1519
    %v1535 = vadd.f32 %v1512, %v1519
    %v1536 = vadd.f32 %v1513, %v1519
    %v1537 = vmax.f32 %v1521, 0.0
    %v1538 = vmax.f32 %v1522, 0.0
    %v1539 = vmax.f32 %v1523, 0.0
    %v1540 = vmax.f32 %v1524, 0.0
    %v1541 = vmax.f32 %v1525, 0.0
    %v1542 = vmax.f32 %v1526, 0.0
    %v1543 = vmax.f32 %v1527, 0.0
    %v1544 = vmax.f32 %v1528, 0.0
    %v1545 = vmax.f32 %v1529, 0.0
    %v1546 = vmax.f32 %v1530, 0.0
    %v1547 = vmax.f32 %v1531, 0.0
    %v1548 = vmax.f32 %v1532, 0.0
    %v1549 = vmax.f32 %v1533, 0.0
    %v1550 = vmax.f32 %v1534, 0.0
    %v1551 = vmax.f32 %v1535, 0.0
    %v1552 = vmax.f32 %v1536, 0.0
    %vm1553 = vcmask 261120
    %1554 = vst.msk [vmem:[#allocation2] sm:$0xff] %vm1553, %v1537
    %1555 = vst.msk [vmem:[#allocation2 + $0x8] sm:$0xff] %vm1553, %v1538
    %1556 = vst.msk [vmem:[#allocation2 + $0x10] sm:$0xff] %vm1553, %v1539
    %1557 = vst.msk [vmem:[#allocation2 + $0x18] sm:$0xff] %vm1553, %v1540
    %1558 = vst.msk [vmem:[#allocation2 + $0x20] sm:$0xff] %vm1553, %v1541
    %1559 = vst.msk [vmem:[#allocation2 + $0x28] sm:$0xff] %vm1553, %v1542
    %1560 = vst.msk [vmem:[#allocation2 + $0x30] sm:$0xff] %vm1553, %v1543
    %1561 = vst.msk [vmem:[#allocation2 + $0x38] sm:$0xff] %vm1553, %v1544
    %1562 = vst.msk [vmem:[#allocation2 + $0x40] sm:$0xff] %vm1553, %v1545
    %1563 = vst.msk [vmem:[#allocation2 + $0x48] sm:$0xff] %vm1553, %v1546
    %1564 = vst.msk [vmem:[#allocation2 + $0x50] sm:$0xff] %vm1553, %v1547
    %1565 = vst.msk [vmem:[#allocation2 + $0x58] sm:$0xff] %vm1553, %v1548
    %1566 = vst.msk [vmem:[#allocation2 + $0x60] sm:$0xff] %vm1553, %v1549
    %1567 = vst.msk [vmem:[#allocation2 + $0x68] sm:$0xff] %vm1553, %v1550
    %1568 = vst.msk [vmem:[#allocation2 + $0x70] sm:$0xff] %vm1553, %v1551
    %1569 = vst.msk [vmem:[#allocation2 + $0x78] sm:$0xff] %vm1553, %v1552
    %1570 = vst.msk [vmem:[#allocation2 + $0x80] sm:$0xff] %vm1553, 0.0
    %1571 = vst.msk [vmem:[#allocation2 + $0x88] sm:$0xff] %vm1553, 0.0
    %v1572 = vld [vmem:[#allocation2] sm:$0xff]
    %v1573 = vld [vmem:[#allocation2 + $0x8] sm:$0xff]
    %v1574 = vld [vmem:[#allocation2 + $0x10] sm:$0xff]
    %v1575 = vld [vmem:[#allocation2 + $0x18] sm:$0xff]
    %v1576 = vld [vmem:[#allocation2 + $0x20] sm:$0xff]
    %v1577 = vld [vmem:[#allocation2 + $0x28] sm:$0xff]
    %v1578 = vld [vmem:[#allocation2 + $0x30] sm:$0xff]
    %v1579 = vld [vmem:[#allocation2 + $0x38] sm:$0xff]
    %1580 = vst.msk [vmem:[#allocation3] sm:$0xff] %vm1553, %v1572
    %1581 = vst.msk [vmem:[#allocation3 + $0x38] sm:$0xff] %vm1553, %v1573
    %1582 = vst.msk [vmem:[#allocation3 + $0x70] sm:$0xff] %vm1553, %v1574
    %1583 = vst.msk [vmem:[#allocation3 + $0xa8] sm:$0xff] %vm1553, %v1575
    %1584 = vst.msk [vmem:[#allocation3 + $0xe0] sm:$0xff] %vm1553, %v1576
    %1585 = vst.msk [vmem:[#allocation3 + $0x118] sm:$0xff] %vm1553, %v1577
    %1586 = vst.msk [vmem:[#allocation3 + $0x150] sm:$0xff] %vm1553, %v1578
    %1587 = vst.msk [vmem:[#allocation3 + $0x188] sm:$0xff] %vm1553, %v1579
    %v1588 = vld [vmem:[#allocation2 + $0x10] sm:$0xff]
    %v1589 = vld [vmem:[#allocation2 + $0x18] sm:$0xff]
    %v1590 = vld [vmem:[#allocation2 + $0x20] sm:$0xff]
    %v1591 = vld [vmem:[#allocation2 + $0x28] sm:$0xff]
    %v1592 = vld [vmem:[#allocation2 + $0x30] sm:$0xff]
    %v1593 = vld [vmem:[#allocation2 + $0x38] sm:$0xff]
    %v1594 = vld [vmem:[#allocation2 + $0x40] sm:$0xff]
    %v1595 = vld [vmem:[#allocation2 + $0x48] sm:$0xff]
    %1604 = vrot.lane.b32.xlu0 %v1588, 32
    %v1605 = vpop.permute.xlu0 %1604
    %1606 = vrot.lane.b32.xlu0 %v1589, 32
    %v1607 = vpop.permute.xlu0 %1606
    %1608 = vrot.lane.b32.xlu0 %v1590, 32
    %v1609 = vpop.permute.xlu0 %1608
    %1610 = vrot.lane.b32.xlu0 %v1591, 32
    %v1611 = vpop.permute.xlu0 %1610
    %1612 = vrot.lane.b32.xlu0 %v1592, 32
    %v1613 = vpop.permute.xlu0 %1612
    %1614 = vrot.lane.b32.xlu0 %v1593, 32
    %v1615 = vpop.permute.xlu0 %1614
    %1616 = vrot.lane.b32.xlu0 %v1594, 32
    %v1617 = vpop.permute.xlu0 %1616
    %1618 = vrot.lane.b32.xlu0 %v1595, 32
    %v1619 = vpop.permute.xlu0 %1618
    %vm1628 = vcmask 523520
    %1629 = vst.msk [vmem:[#allocation3] sm:$0xff] %vm1628, %v1605
    %1630 = vst.msk [vmem:[#allocation3 + $0x38] sm:$0xff] %vm1628, %v1607
    %1631 = vst.msk [vmem:[#allocation3 + $0x70] sm:$0xff] %vm1628, %v1609
    %1632 = vst.msk [vmem:[#allocation3 + $0xa8] sm:$0xff] %vm1628, %v1611
    %1633 = vst.msk [vmem:[#allocation3 + $0xe0] sm:$0xff] %vm1628, %v1613
    %1634 = vst.msk [vmem:[#allocation3 + $0x118] sm:$0xff] %vm1628, %v1615
    %1635 = vst.msk [vmem:[#allocation3 + $0x150] sm:$0xff] %vm1628, %v1617
    %1636 = vst.msk [vmem:[#allocation3 + $0x188] sm:$0xff] %vm1628, %v1619
    %v1637 = vld [vmem:[#allocation2 + $0x20] sm:$0xff]
    %v1638 = vld [vmem:[#allocation2 + $0x28] sm:$0xff]
    %v1639 = vld [vmem:[#allocation2 + $0x30] sm:$0xff]
    %v1640 = vld [vmem:[#allocation2 + $0x38] sm:$0xff]
    %v1641 = vld [vmem:[#allocation2 + $0x40] sm:$0xff]
    %v1642 = vld [vmem:[#allocation2 + $0x48] sm:$0xff]
    %v1643 = vld [vmem:[#allocation2 + $0x50] sm:$0xff]
    %v1644 = vld [vmem:[#allocation2 + $0x58] sm:$0xff]
    %1653 = vrot.lane.b32.xlu0 %v1637, 64
    %v1654 = vpop.permute.xlu0 %1653
    %1655 = vrot.lane.b32.xlu0 %v1638, 64
    %v1656 = vpop.permute.xlu0 %1655
    %1657 = vrot.lane.b32.xlu0 %v1639, 64
    %v1658 = vpop.permute.xlu0 %1657
    %1659 = vrot.lane.b32.xlu0 %v1640, 64
    %v1660 = vpop.permute.xlu0 %1659
    %1661 = vrot.lane.b32.xlu0 %v1641, 64
    %v1662 = vpop.permute.xlu0 %1661
    %1663 = vrot.lane.b32.xlu0 %v1642, 64
    %v1664 = vpop.permute.xlu0 %1663
    %1665 = vrot.lane.b32.xlu0 %v1643, 64
    %v1666 = vpop.permute.xlu0 %1665
    %1667 = vrot.lane.b32.xlu0 %v1644, 64
    %v1668 = vpop.permute.xlu0 %1667
    %vm1677 = vcmask 785920
    %1678 = vst.msk [vmem:[#allocation3] sm:$0xff] %vm1677, %v1654
    %1679 = vst.msk [vmem:[#allocation3 + $0x38] sm:$0xff] %vm1677, %v1656
    %1680 = vst.msk [vmem:[#allocation3 + $0x70] sm:$0xff] %vm1677, %v1658
    %1681 = vst.msk [vmem:[#allocation3 + $0xa8] sm:$0xff] %vm1677, %v1660
    %1682 = vst.msk [vmem:[#allocation3 + $0xe0] sm:$0xff] %vm1677, %v1662
    %1683 = vst.msk [vmem:[#allocation3 + $0x118] sm:$0xff] %vm1677, %v1664
    %1684 = vst.msk [vmem:[#allocation3 + $0x150] sm:$0xff] %vm1677, %v1666
    %1685 = vst.msk [vmem:[#allocation3 + $0x188] sm:$0xff] %vm1677, %v1668
    %v1686 = vld [vmem:[#allocation2 + $0x30] sm:$0xff]
    %v1687 = vld [vmem:[#allocation2 + $0x38] sm:$0xff]
    %v1688 = vld [vmem:[#allocation2 + $0x40] sm:$0xff]
    %v1689 = vld [vmem:[#allocation2 + $0x48] sm:$0xff]
    %v1690 = vld [vmem:[#allocation2 + $0x50] sm:$0xff]
    %v1691 = vld [vmem:[#allocation2 + $0x58] sm:$0xff]
    %v1692 = vld [vmem:[#allocation2 + $0x60] sm:$0xff]
    %v1693 = vld [vmem:[#allocation2 + $0x68] sm:$0xff]
    %1702 = vrot.lane.b32.xlu0 %v1686, 96
    %v1703 = vpop.permute.xlu0 %1702
    %1704 = vrot.lane.b32.xlu0 %v1687, 96
    %v1705 = vpop.permute.xlu0 %1704
    %1706 = vrot.lane.b32.xlu0 %v1688, 96
    %v1707 = vpop.permute.xlu0 %1706
    %1708 = vrot.lane.b32.xlu0 %v1689, 96
    %v1709 = vpop.permute.xlu0 %1708
    %1710 = vrot.lane.b32.xlu0 %v1690, 96
    %v1711 = vpop.permute.xlu0 %1710
    %1712 = vrot.lane.b32.xlu0 %v1691, 96
    %v1713 = vpop.permute.xlu0 %1712
    %1714 = vrot.lane.b32.xlu0 %v1692, 96
    %v1715 = vpop.permute.xlu0 %1714
    %1716 = vrot.lane.b32.xlu0 %v1693, 96
    %v1717 = vpop.permute.xlu0 %1716
    %vm1726 = vcmask 1048320
    %1727 = vst.msk [vmem:[#allocation3] sm:$0xff] %vm1726, %v1703
    %1728 = vst.msk [vmem:[#allocation3 + $0x38] sm:$0xff] %vm1726, %v1705
    %1729 = vst.msk [vmem:[#allocation3 + $0x70] sm:$0xff] %vm1726, %v1707
    %1730 = vst.msk [vmem:[#allocation3 + $0xa8] sm:$0xff] %vm1726, %v1709
    %1731 = vst.msk [vmem:[#allocation3 + $0xe0] sm:$0xff] %vm1726, %v1711
    %1732 = vst.msk [vmem:[#allocation3 + $0x118] sm:$0xff] %vm1726, %v1713
    %1733 = vst.msk [vmem:[#allocation3 + $0x150] sm:$0xff] %vm1726, %v1715
    %1734 = vst.msk [vmem:[#allocation3 + $0x188] sm:$0xff] %vm1726, %v1717
    %v1735 = vld [vmem:[#allocation2 + $0x40] sm:$0xff]
    %v1736 = vld [vmem:[#allocation2 + $0x48] sm:$0xff]
    %v1737 = vld [vmem:[#allocation2 + $0x50] sm:$0xff]
    %v1738 = vld [vmem:[#allocation2 + $0x58] sm:$0xff]
    %v1739 = vld [vmem:[#allocation2 + $0x60] sm:$0xff]
    %v1740 = vld [vmem:[#allocation2 + $0x68] sm:$0xff]
    %v1741 = vld [vmem:[#allocation2 + $0x70] sm:$0xff]
    %v1742 = vld [vmem:[#allocation2 + $0x78] sm:$0xff]
    %1743 = vst.msk [vmem:[#allocation3 + $0x8] sm:$0xff] %vm1553, %v1735
    %1744 = vst.msk [vmem:[#allocation3 + $0x40] sm:$0xff] %vm1553, %v1736
    %1745 = vst.msk [vmem:[#allocation3 + $0x78] sm:$0xff] %vm1553, %v1737
    %1746 = vst.msk [vmem:[#allocation3 + $0xb0] sm:$0xff] %vm1553, %v1738
    %1747 = vst.msk [vmem:[#allocation3 + $0xe8] sm:$0xff] %vm1553, %v1739
    %1748 = vst.msk [vmem:[#allocation3 + $0x120] sm:$0xff] %vm1553, %v1740
    %1749 = vst.msk [vmem:[#allocation3 + $0x158] sm:$0xff] %vm1553, %v1741
    %1750 = vst.msk [vmem:[#allocation3 + $0x190] sm:$0xff] %vm1553, %v1742
    %v1751 = vld [vmem:[#allocation2 + $0x2] sm:$0xff]
    %v1752 = vld [vmem:[#allocation2 + $0xa] sm:$0xff]
    %v1753 = vld [vmem:[#allocation2 + $0x12] sm:$0xff]
    %v1754 = vld [vmem:[#allocation2 + $0x1a] sm:$0xff]
    %v1755 = vld [vmem:[#allocation2 + $0x22] sm:$0xff]
    %v1756 = vld [vmem:[#allocation2 + $0x2a] sm:$0xff]
    %v1757 = vld [vmem:[#allocation2 + $0x32] sm:$0xff]
    %v1758 = vld [vmem:[#allocation2 + $0x3a] sm:$0xff]
    %1767 = vrot.lane.b32.xlu0 %v1751, 32
    %v1768 = vpop.permute.xlu0 %1767
    %1769 = vrot.lane.b32.xlu0 %v1752, 32
    %v1770 = vpop.permute.xlu0 %1769
    %1771 = vrot.lane.b32.xlu0 %v1753, 32
    %v1772 = vpop.permute.xlu0 %1771
    %1773 = vrot.lane.b32.xlu0 %v1754, 32
    %v1774 = vpop.permute.xlu0 %1773
    %1775 = vrot.lane.b32.xlu0 %v1755, 32
    %v1776 = vpop.permute.xlu0 %1775
    %1777 = vrot.lane.b32.xlu0 %v1756, 32
    %v1778 = vpop.permute.xlu0 %1777
    %1779 = vrot.lane.b32.xlu0 %v1757, 32
    %v1780 = vpop.permute.xlu0 %1779
    %1781 = vrot.lane.b32.xlu0 %v1758, 32
    %v1782 = vpop.permute.xlu0 %1781
    %1791 = vst.msk [vmem:[#allocation3 + $0x8] sm:$0xff] %vm1628, %v1768
    %1792 = vst.msk [vmem:[#allocation3 + $0x40] sm:$0xff] %vm1628, %v1770
    %1793 = vst.msk [vmem:[#allocation3 + $0x78] sm:$0xff] %vm1628, %v1772
    %1794 = vst.msk [vmem:[#allocation3 + $0xb0] sm:$0xff] %vm1628, %v1774
    %1795 = vst.msk [vmem:[#allocation3 + $0xe8] sm:$0xff] %vm1628, %v1776
    %1796 = vst.msk [vmem:[#allocation3 + $0x120] sm:$0xff] %vm1628, %v1778
    %1797 = vst.msk [vmem:[#allocation3 + $0x158] sm:$0xff] %vm1628, %v1780
    %1798 = vst.msk [vmem:[#allocation3 + $0x190] sm:$0xff] %vm1628, %v1782
    %v1799 = vld [vmem:[#allocation2 + $0x12] sm:$0xff]
    %v1800 = vld [vmem:[#allocation2 + $0x1a] sm:$0xff]
    %v1801 = vld [vmem:[#allocation2 + $0x22] sm:$0xff]
    %v1802 = vld [vmem:[#allocation2 + $0x2a] sm:$0xff]
    %v1803 = vld [vmem:[#allocation2 + $0x32] sm:$0xff]
    %v1804 = vld [vmem:[#allocation2 + $0x3a] sm:$0xff]
    %v1805 = vld [vmem:[#allocation2 + $0x42] sm:$0xff]
    %v1806 = vld [vmem:[#allocation2 + $0x4a] sm:$0xff]
    %1815 = vrot.lane.b32.xlu0 %v1799, 64
    %v1816 = vpop.permute.xlu0 %1815
    %1817 = vrot.lane.b32.xlu0 %v1800, 64
    %v1818 = vpop.permute.xlu0 %1817
    %1819 = vrot.lane.b32.xlu0 %v1801, 64
    %v1820 = vpop.permute.xlu0 %1819
    %1821 = vrot.lane.b32.xlu0 %v1802, 64
    %v1822 = vpop.permute.xlu0 %1821
    %1823 = vrot.lane.b32.xlu0 %v1803, 64
    %v1824 = vpop.permute.xlu0 %1823
    %1825 = vrot.lane.b32.xlu0 %v1804, 64
    %v1826 = vpop.permute.xlu0 %1825
    %1827 = vrot.lane.b32.xlu0 %v1805, 64
    %v1828 = vpop.permute.xlu0 %1827
    %1829 = vrot.lane.b32.xlu0 %v1806, 64
    %v1830 = vpop.permute.xlu0 %1829
    %1839 = vst.msk [vmem:[#allocation3 + $0x8] sm:$0xff] %vm1677, %v1816
    %1840 = vst.msk [vmem:[#allocation3 + $0x40] sm:$0xff] %vm1677, %v1818
    %1841 = vst.msk [vmem:[#allocation3 + $0x78] sm:$0xff] %vm1677, %v1820
    %1842 = vst.msk [vmem:[#allocation3 + $0xb0] sm:$0xff] %vm1677, %v1822
    %1843 = vst.msk [vmem:[#allocation3 + $0xe8] sm:$0xff] %vm1677, %v1824
    %1844 = vst.msk [vmem:[#allocation3 + $0x120] sm:$0xff] %vm1677, %v1826
    %1845 = vst.msk [vmem:[#allocation3 + $0x158] sm:$0xff] %vm1677, %v1828
    %1846 = vst.msk [vmem:[#allocation3 + $0x190] sm:$0xff] %vm1677, %v1830
    %v1847 = vld [vmem:[#allocation2 + $0x22] sm:$0xff]
    %v1848 = vld [vmem:[#allocation2 + $0x2a] sm:$0xff]
    %v1849 = vld [vmem:[#allocation2 + $0x32] sm:$0xff]
    %v1850 = vld [vmem:[#allocation2 + $0x3a] sm:$0xff]
    %v1851 = vld [vmem:[#allocation2 + $0x42] sm:$0xff]
    %v1852 = vld [vmem:[#allocation2 + $0x4a] sm:$0xff]
    %v1853 = vld [vmem:[#allocation2 + $0x52] sm:$0xff]
    %v1854 = vld [vmem:[#allocation2 + $0x5a] sm:$0xff]
    %1863 = vrot.lane.b32.xlu0 %v1847, 96
    %v1864 = vpop.permute.xlu0 %1863
    %1865 = vrot.lane.b32.xlu0 %v1848, 96
    %v1866 = vpop.permute.xlu0 %1865
    %1867 = vrot.lane.b32.xlu0 %v1849, 96
    %v1868 = vpop.permute.xlu0 %1867
    %1869 = vrot.lane.b32.xlu0 %v1850, 96
    %v1870 = vpop.permute.xlu0 %1869
    %1871 = vrot.lane.b32.xlu0 %v1851, 96
    %v1872 = vpop.permute.xlu0 %1871
    %1873 = vrot.lane.b32.xlu0 %v1852, 96
    %v1874 = vpop.permute.xlu0 %1873
    %1875 = vrot.lane.b32.xlu0 %v1853, 96
    %v1876 = vpop.permute.xlu0 %1875
    %1877 = vrot.lane.b32.xlu0 %v1854, 96
    %v1878 = vpop.permute.xlu0 %1877
    %1887 = vst.msk [vmem:[#allocation3 + $0x8] sm:$0xff] %vm1726, %v1864
    %1888 = vst.msk [vmem:[#allocation3 + $0x40] sm:$0xff] %vm1726, %v1866
    %1889 = vst.msk [vmem:[#allocation3 + $0x78] sm:$0xff] %vm1726, %v1868
    %1890 = vst.msk [vmem:[#allocation3 + $0xb0] sm:$0xff] %vm1726, %v1870
    %1891 = vst.msk [vmem:[#allocation3 + $0xe8] sm:$0xff] %vm1726, %v1872
    %1892 = vst.msk [vmem:[#allocation3 + $0x120] sm:$0xff] %vm1726, %v1874
    %1893 = vst.msk [vmem:[#allocation3 + $0x158] sm:$0xff] %vm1726, %v1876
    %1894 = vst.msk [vmem:[#allocation3 + $0x190] sm:$0xff] %vm1726, %v1878
    %v1895 = vld [vmem:[#allocation2 + $0x32] sm:$0xff]
    %v1896 = vld [vmem:[#allocation2 + $0x3a] sm:$0xff]
    %v1897 = vld [vmem:[#allocation2 + $0x42] sm:$0xff]
    %v1898 = vld [vmem:[#allocation2 + $0x4a] sm:$0xff]
    %v1899 = vld [vmem:[#allocation2 + $0x52] sm:$0xff]
    %v1900 = vld [vmem:[#allocation2 + $0x5a] sm:$0xff]
    %v1901 = vld [vmem:[#allocation2 + $0x62] sm:$0xff]
    %v1902 = vld [vmem:[#allocation2 + $0x6a] sm:$0xff]
    %1903 = vst.msk [vmem:[#allocation3 + $0x10] sm:$0xff] %vm1553, %v1895
    %1904 = vst.msk [vmem:[#allocation3 + $0x48] sm:$0xff] %vm1553, %v1896
    %1905 = vst.msk [vmem:[#allocation3 + $0x80] sm:$0xff] %vm1553, %v1897
    %1906 = vst.msk [vmem:[#allocation3 + $0xb8] sm:$0xff] %vm1553, %v1898
    %1907 = vst.msk [vmem:[#allocation3 + $0xf0] sm:$0xff] %vm1553, %v1899
    %1908 = vst.msk [vmem:[#allocation3 + $0x128] sm:$0xff] %vm1553, %v1900
    %1909 = vst.msk [vmem:[#allocation3 + $0x160] sm:$0xff] %vm1553, %v1901
    %1910 = vst.msk [vmem:[#allocation3 + $0x198] sm:$0xff] %vm1553, %v1902
    %v1911 = vld [vmem:[#allocation2 + $0x42] sm:$0xff]
    %v1912 = vld [vmem:[#allocation2 + $0x4a] sm:$0xff]
    %v1913 = vld [vmem:[#allocation2 + $0x52] sm:$0xff]
    %v1914 = vld [vmem:[#allocation2 + $0x5a] sm:$0xff]
    %v1915 = vld [vmem:[#allocation2 + $0x62] sm:$0xff]
    %v1916 = vld [vmem:[#allocation2 + $0x6a] sm:$0xff]
    %v1917 = vld [vmem:[#allocation2 + $0x72] sm:$0xff]
    %v1918 = vld [vmem:[#allocation2 + $0x7a] sm:$0xff]
    %1927 = vrot.lane.b32.xlu0 %v1911, 32
    %v1928 = vpop.permute.xlu0 %1927
    %1929 = vrot.lane.b32.xlu0 %v1912, 32
    %v1930 = vpop.permute.xlu0 %1929
    %1931 = vrot.lane.b32.xlu0 %v1913, 32
    %v1932 = vpop.permute.xlu0 %1931
    %1933 = vrot.lane.b32.xlu0 %v1914, 32
    %v1934 = vpop.permute.xlu0 %1933
    %1935 = vrot.lane.b32.xlu0 %v1915, 32
    %v1936 = vpop.permute.xlu0 %1935
    %1937 = vrot.lane.b32.xlu0 %v1916, 32
    %v1938 = vpop.permute.xlu0 %1937
    %1939 = vrot.lane.b32.xlu0 %v1917, 32
    %v1940 = vpop.permute.xlu0 %1939
    %1941 = vrot.lane.b32.xlu0 %v1918, 32
    %v1942 = vpop.permute.xlu0 %1941
    %1951 = vst.msk [vmem:[#allocation3 + $0x10] sm:$0xff] %vm1628, %v1928
    %1952 = vst.msk [vmem:[#allocation3 + $0x48] sm:$0xff] %vm1628, %v1930
    %1953 = vst.msk [vmem:[#allocation3 + $0x80] sm:$0xff] %vm1628, %v1932
    %1954 = vst.msk [vmem:[#allocation3 + $0xb8] sm:$0xff] %vm1628, %v1934
    %1955 = vst.msk [vmem:[#allocation3 + $0xf0] sm:$0xff] %vm1628, %v1936
    %1956 = vst.msk [vmem:[#allocation3 + $0x128] sm:$0xff] %vm1628, %v1938
    %1957 = vst.msk [vmem:[#allocation3 + $0x160] sm:$0xff] %vm1628, %v1940
    %1958 = vst.msk [vmem:[#allocation3 + $0x198] sm:$0xff] %vm1628, %v1942
    %v1959 = vld [vmem:[#allocation2 + $0x4] sm:$0xff]
    %v1960 = vld [vmem:[#allocation2 + $0xc] sm:$0xff]
    %v1961 = vld [vmem:[#allocation2 + $0x14] sm:$0xff]
    %v1962 = vld [vmem:[#allocation2 + $0x1c] sm:$0xff]
    %v1963 = vld [vmem:[#allocation2 + $0x24] sm:$0xff]
    %v1964 = vld [vmem:[#allocation2 + $0x2c] sm:$0xff]
    %v1965 = vld [vmem:[#allocation2 + $0x34] sm:$0xff]
    %v1966 = vld [vmem:[#allocation2 + $0x3c] sm:$0xff]
    %1975 = vrot.lane.b32.xlu0 %v1959, 64
    %v1976 = vpop.permute.xlu0 %1975
    %1977 = vrot.lane.b32.xlu0 %v1960, 64
    %v1978 = vpop.permute.xlu0 %1977
    %1979 = vrot.lane.b32.xlu0 %v1961, 64
    %v1980 = vpop.permute.xlu0 %1979
    %1981 = vrot.lane.b32.xlu0 %v1962, 64
    %v1982 = vpop.permute.xlu0 %1981
    %1983 = vrot.lane.b32.xlu0 %v1963, 64
    %v1984 = vpop.permute.xlu0 %1983
    %1985 = vrot.lane.b32.xlu0 %v1964, 64
    %v1986 = vpop.permute.xlu0 %1985
    %1987 = vrot.lane.b32.xlu0 %v1965, 64
    %v1988 = vpop.permute.xlu0 %1987
    %1989 = vrot.lane.b32.xlu0 %v1966, 64
    %v1990 = vpop.permute.xlu0 %1989
    %1999 = vst.msk [vmem:[#allocation3 + $0x10] sm:$0xff] %vm1677, %v1976
    %2000 = vst.msk [vmem:[#allocation3 + $0x48] sm:$0xff] %vm1677, %v1978
    %2001 = vst.msk [vmem:[#allocation3 + $0x80] sm:$0xff] %vm1677, %v1980
    %2002 = vst.msk [vmem:[#allocation3 + $0xb8] sm:$0xff] %vm1677, %v1982
    %2003 = vst.msk [vmem:[#allocation3 + $0xf0] sm:$0xff] %vm1677, %v1984
    %2004 = vst.msk [vmem:[#allocation3 + $0x128] sm:$0xff] %vm1677, %v1986
    %2005 = vst.msk [vmem:[#allocation3 + $0x160] sm:$0xff] %vm1677, %v1988
    %2006 = vst.msk [vmem:[#allocation3 + $0x198] sm:$0xff] %vm1677, %v1990
    %v2007 = vld [vmem:[#allocation2 + $0x14] sm:$0xff]
    %v2008 = vld [vmem:[#allocation2 + $0x1c] sm:$0xff]
    %v2009 = vld [vmem:[#allocation2 + $0x24] sm:$0xff]
    %v2010 = vld [vmem:[#allocation2 + $0x2c] sm:$0xff]
    %v2011 = vld [vmem:[#allocation2 + $0x34] sm:$0xff]
    %v2012 = vld [vmem:[#allocation2 + $0x3c] sm:$0xff]
    %v2013 = vld [vmem:[#allocation2 + $0x44] sm:$0xff]
    %v2014 = vld [vmem:[#allocation2 + $0x4c] sm:$0xff]
    %2023 = vrot.lane.b32.xlu0 %v2007, 96
    %v2024 = vpop.permute.xlu0 %2023
    %2025 = vrot.lane.b32.xlu0 %v2008, 96
    %v2026 = vpop.permute.xlu0 %2025
    %2027 = vrot.lane.b32.xlu0 %v2009, 96
    %v2028 = vpop.permute.xlu0 %2027
    %2029 = vrot.lane.b32.xlu0 %v2010, 96
    %v2030 = vpop.permute.xlu0 %2029
    %2031 = vrot.lane.b32.xlu0 %v2011, 96
    %v2032 = vpop.permute.xlu0 %2031
    %2033 = vrot.lane.b32.xlu0 %v2012, 96
    %v2034 = vpop.permute.xlu0 %2033
    %2035 = vrot.lane.b32.xlu0 %v2013, 96
    %v2036 = vpop.permute.xlu0 %2035
    %2037 = vrot.lane.b32.xlu0 %v2014, 96
    %v2038 = vpop.permute.xlu0 %2037
    %2047 = vst.msk [vmem:[#allocation3 + $0x10] sm:$0xff] %vm1726, %v2024
    %2048 = vst.msk [vmem:[#allocation3 + $0x48] sm:$0xff] %vm1726, %v2026
    %2049 = vst.msk [vmem:[#allocation3 + $0x80] sm:$0xff] %vm1726, %v2028
    %2050 = vst.msk [vmem:[#allocation3 + $0xb8] sm:$0xff] %vm1726, %v2030
    %2051 = vst.msk [vmem:[#allocation3 + $0xf0] sm:$0xff] %vm1726, %v2032
    %2052 = vst.msk [vmem:[#allocation3 + $0x128] sm:$0xff] %vm1726, %v2034
    %2053 = vst.msk [vmem:[#allocation3 + $0x160] sm:$0xff] %vm1726, %v2036
    %2054 = vst.msk [vmem:[#allocation3 + $0x198] sm:$0xff] %vm1726, %v2038
    %v2055 = vld [vmem:[#allocation2 + $0x24] sm:$0xff]
    %v2056 = vld [vmem:[#allocation2 + $0x2c] sm:$0xff]
    %v2057 = vld [vmem:[#allocation2 + $0x34] sm:$0xff]
    %v2058 = vld [vmem:[#allocation2 + $0x3c] sm:$0xff]
    %v2059 = vld [vmem:[#allocation2 + $0x44] sm:$0xff]
    %v2060 = vld [vmem:[#allocation2 + $0x4c] sm:$0xff]
    %v2061 = vld [vmem:[#allocation2 + $0x54] sm:$0xff]
    %v2062 = vld [vmem:[#allocation2 + $0x5c] sm:$0xff]
    %2063 = vst.msk [vmem:[#allocation3 + $0x18] sm:$0xff] %vm1553, %v2055
    %2064 = vst.msk [vmem:[#allocation3 + $0x50] sm:$0xff] %vm1553, %v2056
    %2065 = vst.msk [vmem:[#allocation3 + $0x88] sm:$0xff] %vm1553, %v2057
    %2066 = vst.msk [vmem:[#allocation3 + $0xc0] sm:$0xff] %vm1553, %v2058
    %2067 = vst.msk [vmem:[#allocation3 + $0xf8] sm:$0xff] %vm1553, %v2059
    %2068 = vst.msk [vmem:[#allocation3 + $0x130] sm:$0xff] %vm1553, %v2060
    %2069 = vst.msk [vmem:[#allocation3 + $0x168] sm:$0xff] %vm1553, %v2061
    %2070 = vst.msk [vmem:[#allocation3 + $0x1a0] sm:$0xff] %vm1553, %v2062
    %v2071 = vld [vmem:[#allocation2 + $0x34] sm:$0xff]
    %v2072 = vld [vmem:[#allocation2 + $0x3c] sm:$0xff]
    %v2073 = vld [vmem:[#allocation2 + $0x44] sm:$0xff]
    %v2074 = vld [vmem:[#allocation2 + $0x4c] sm:$0xff]
    %v2075 = vld [vmem:[#allocation2 + $0x54] sm:$0xff]
    %v2076 = vld [vmem:[#allocation2 + $0x5c] sm:$0xff]
    %v2077 = vld [vmem:[#allocation2 + $0x64] sm:$0xff]
    %v2078 = vld [vmem:[#allocation2 + $0x6c] sm:$0xff]
    %2087 = vrot.lane.b32.xlu0 %v2071, 32
    %v2088 = vpop.permute.xlu0 %2087
    %2089 = vrot.lane.b32.xlu0 %v2072, 32
    %v2090 = vpop.permute.xlu0 %2089
    %2091 = vrot.lane.b32.xlu0 %v2073, 32
    %v2092 = vpop.permute.xlu0 %2091
    %2093 = vrot.lane.b32.xlu0 %v2074, 32
    %v2094 = vpop.permute.xlu0 %2093
    %2095 = vrot.lane.b32.xlu0 %v2075, 32
    %v2096 = vpop.permute.xlu0 %2095
    %2097 = vrot.lane.b32.xlu0 %v2076, 32
    %v2098 = vpop.permute.xlu0 %2097
    %2099 = vrot.lane.b32.xlu0 %v2077, 32
    %v2100 = vpop.permute.xlu0 %2099
    %2101 = vrot.lane.b32.xlu0 %v2078, 32
    %v2102 = vpop.permute.xlu0 %2101
    %2111 = vst.msk [vmem:[#allocation3 + $0x18] sm:$0xff] %vm1628, %v2088
    %2112 = vst.msk [vmem:[#allocation3 + $0x50] sm:$0xff] %vm1628, %v2090
    %2113 = vst.msk [vmem:[#allocation3 + $0x88] sm:$0xff] %vm1628, %v2092
    %2114 = vst.msk [vmem:[#allocation3 + $0xc0] sm:$0xff] %vm1628, %v2094
    %2115 = vst.msk [vmem:[#allocation3 + $0xf8] sm:$0xff] %vm1628, %v2096
    %2116 = vst.msk [vmem:[#allocation3 + $0x130] sm:$0xff] %vm1628, %v2098
    %2117 = vst.msk [vmem:[#allocation3 + $0x168] sm:$0xff] %vm1628, %v2100
    %2118 = vst.msk [vmem:[#allocation3 + $0x1a0] sm:$0xff] %vm1628, %v2102
    %v2119 = vld [vmem:[#allocation2 + $0x44] sm:$0xff]
    %v2120 = vld [vmem:[#allocation2 + $0x4c] sm:$0xff]
    %v2121 = vld [vmem:[#allocation2 + $0x54] sm:$0xff]
    %v2122 = vld [vmem:[#allocation2 + $0x5c] sm:$0xff]
    %v2123 = vld [vmem:[#allocation2 + $0x64] sm:$0xff]
    %v2124 = vld [vmem:[#allocation2 + $0x6c] sm:$0xff]
    %v2125 = vld [vmem:[#allocation2 + $0x74] sm:$0xff]
    %v2126 = vld [vmem:[#allocation2 + $0x7c] sm:$0xff]
    %2135 = vrot.lane.b32.xlu0 %v2119, 64
    %v2136 = vpop.permute.xlu0 %2135
    %2137 = vrot.lane.b32.xlu0 %v2120, 64
    %v2138 = vpop.permute.xlu0 %2137
    %2139 = vrot.lane.b32.xlu0 %v2121, 64
    %v2140 = vpop.permute.xlu0 %2139
    %2141 = vrot.lane.b32.xlu0 %v2122, 64
    %v2142 = vpop.permute.xlu0 %2141
    %2143 = vrot.lane.b32.xlu0 %v2123, 64
    %v2144 = vpop.permute.xlu0 %2143
    %2145 = vrot.lane.b32.xlu0 %v2124, 64
    %v2146 = vpop.permute.xlu0 %2145
    %2147 = vrot.lane.b32.xlu0 %v2125, 64
    %v2148 = vpop.permute.xlu0 %2147
    %2149 = vrot.lane.b32.xlu0 %v2126, 64
    %v2150 = vpop.permute.xlu0 %2149
    %2159 = vst.msk [vmem:[#allocation3 + $0x18] sm:$0xff] %vm1677, %v2136
    %2160 = vst.msk [vmem:[#allocation3 + $0x50] sm:$0xff] %vm1677, %v2138
    %2161 = vst.msk [vmem:[#allocation3 + $0x88] sm:$0xff] %vm1677, %v2140
    %2162 = vst.msk [vmem:[#allocation3 + $0xc0] sm:$0xff] %vm1677, %v2142
    %2163 = vst.msk [vmem:[#allocation3 + $0xf8] sm:$0xff] %vm1677, %v2144
    %2164 = vst.msk [vmem:[#allocation3 + $0x130] sm:$0xff] %vm1677, %v2146
    %2165 = vst.msk [vmem:[#allocation3 + $0x168] sm:$0xff] %vm1677, %v2148
    %2166 = vst.msk [vmem:[#allocation3 + $0x1a0] sm:$0xff] %vm1677, %v2150
    %v2167 = vld [vmem:[#allocation2 + $0x6] sm:$0xff]
    %v2168 = vld [vmem:[#allocation2 + $0xe] sm:$0xff]
    %v2169 = vld [vmem:[#allocation2 + $0x16] sm:$0xff]
    %v2170 = vld [vmem:[#allocation2 + $0x1e] sm:$0xff]
    %v2171 = vld [vmem:[#allocation2 + $0x26] sm:$0xff]
    %v2172 = vld [vmem:[#allocation2 + $0x2e] sm:$0xff]
    %v2173 = vld [vmem:[#allocation2 + $0x36] sm:$0xff]
    %v2174 = vld [vmem:[#allocation2 + $0x3e] sm:$0xff]
    %2183 = vrot.lane.b32.xlu0 %v2167, 96
    %v2184 = vpop.permute.xlu0 %2183
    %2185 = vrot.lane.b32.xlu0 %v2168, 96
    %v2186 = vpop.permute.xlu0 %2185
    %2187 = vrot.lane.b32.xlu0 %v2169, 96
    %v2188 = vpop.permute.xlu0 %2187
    %2189 = vrot.lane.b32.xlu0 %v2170, 96
    %v2190 = vpop.permute.xlu0 %2189
    %2191 = vrot.lane.b32.xlu0 %v2171, 96
    %v2192 = vpop.permute.xlu0 %2191
    %2193 = vrot.lane.b32.xlu0 %v2172, 96
    %v2194 = vpop.permute.xlu0 %2193
    %2195 = vrot.lane.b32.xlu0 %v2173, 96
    %v2196 = vpop.permute.xlu0 %2195
    %2197 = vrot.lane.b32.xlu0 %v2174, 96
    %v2198 = vpop.permute.xlu0 %2197
    %2207 = vst.msk [vmem:[#allocation3 + $0x18] sm:$0xff] %vm1726, %v2184
    %2208 = vst.msk [vmem:[#allocation3 + $0x50] sm:$0xff] %vm1726, %v2186
    %2209 = vst.msk [vmem:[#allocation3 + $0x88] sm:$0xff] %vm1726, %v2188
    %2210 = vst.msk [vmem:[#allocation3 + $0xc0] sm:$0xff] %vm1726, %v2190
    %2211 = vst.msk [vmem:[#allocation3 + $0xf8] sm:$0xff] %vm1726, %v2192
    %2212 = vst.msk [vmem:[#allocation3 + $0x130] sm:$0xff] %vm1726, %v2194
    %2213 = vst.msk [vmem:[#allocation3 + $0x168] sm:$0xff] %vm1726, %v2196
    %2214 = vst.msk [vmem:[#allocation3 + $0x1a0] sm:$0xff] %vm1726, %v2198
    %v2215 = vld [vmem:[#allocation2 + $0x16] sm:$0xff]
    %v2216 = vld [vmem:[#allocation2 + $0x1e] sm:$0xff]
    %v2217 = vld [vmem:[#allocation2 + $0x26] sm:$0xff]
    %v2218 = vld [vmem:[#allocation2 + $0x2e] sm:$0xff]
    %v2219 = vld [vmem:[#allocation2 + $0x36] sm:$0xff]
    %v2220 = vld [vmem:[#allocation2 + $0x3e] sm:$0xff]
    %v2221 = vld [vmem:[#allocation2 + $0x46] sm:$0xff]
    %v2222 = vld [vmem:[#allocation2 + $0x4e] sm:$0xff]
    %2223 = vst.msk [vmem:[#allocation3 + $0x20] sm:$0xff] %vm1553, %v2215
    %2224 = vst.msk [vmem:[#allocation3 + $0x58] sm:$0xff] %vm1553, %v2216
    %2225 = vst.msk [vmem:[#allocation3 + $0x90] sm:$0xff] %vm1553, %v2217
    %2226 = vst.msk [vmem:[#allocation3 + $0xc8] sm:$0xff] %vm1553, %v2218
    %2227 = vst.msk [vmem:[#allocation3 + $0x100] sm:$0xff] %vm1553, %v2219
    %2228 = vst.msk [vmem:[#allocation3 + $0x138] sm:$0xff] %vm1553, %v2220
    %2229 = vst.msk [vmem:[#allocation3 + $0x170] sm:$0xff] %vm1553, %v2221
    %2230 = vst.msk [vmem:[#allocation3 + $0x1a8] sm:$0xff] %vm1553, %v2222
    %v2231 = vld [vmem:[#allocation2 + $0x26] sm:$0xff]
    %v2232 = vld [vmem:[#allocation2 + $0x2e] sm:$0xff]
    %v2233 = vld [vmem:[#allocation2 + $0x36] sm:$0xff]
    %v2234 = vld [vmem:[#allocation2 + $0x3e] sm:$0xff]
    %v2235 = vld [vmem:[#allocation2 + $0x46] sm:$0xff]
    %v2236 = vld [vmem:[#allocation2 + $0x4e] sm:$0xff]
    %v2237 = vld [vmem:[#allocation2 + $0x56] sm:$0xff]
    %v2238 = vld [vmem:[#allocation2 + $0x5e] sm:$0xff]
    %2247 = vrot.lane.b32.xlu0 %v2231, 32
    %v2248 = vpop.permute.xlu0 %2247
    %2249 = vrot.lane.b32.xlu0 %v2232, 32
    %v2250 = vpop.permute.xlu0 %2249
    %2251 = vrot.lane.b32.xlu0 %v2233, 32
    %v2252 = vpop.permute.xlu0 %2251
    %2253 = vrot.lane.b32.xlu0 %v2234, 32
    %v2254 = vpop.permute.xlu0 %2253
    %2255 = vrot.lane.b32.xlu0 %v2235, 32
    %v2256 = vpop.permute.xlu0 %2255
    %2257 = vrot.lane.b32.xlu0 %v2236, 32
    %v2258 = vpop.permute.xlu0 %2257
    %2259 = vrot.lane.b32.xlu0 %v2237, 32
    %v2260 = vpop.permute.xlu0 %2259
    %2261 = vrot.lane.b32.xlu0 %v2238, 32
    %v2262 = vpop.permute.xlu0 %2261
    %2271 = vst.msk [vmem:[#allocation3 + $0x20] sm:$0xff] %vm1628, %v2248
    %2272 = vst.msk [vmem:[#allocation3 + $0x58] sm:$0xff] %vm1628, %v2250
    %2273 = vst.msk [vmem:[#allocation3 + $0x90] sm:$0xff] %vm1628, %v2252
    %2274 = vst.msk [vmem:[#allocation3 + $0xc8] sm:$0xff] %vm1628, %v2254
    %2275 = vst.msk [vmem:[#allocation3 + $0x100] sm:$0xff] %vm1628, %v2256
    %2276 = vst.msk [vmem:[#allocation3 + $0x138] sm:$0xff] %vm1628, %v2258
    %2277 = vst.msk [vmem:[#allocation3 + $0x170] sm:$0xff] %vm1628, %v2260
    %2278 = vst.msk [vmem:[#allocation3 + $0x1a8] sm:$0xff] %vm1628, %v2262
    %v2279 = vld [vmem:[#allocation2 + $0x36] sm:$0xff]
    %v2280 = vld [vmem:[#allocation2 + $0x3e] sm:$0xff]
    %v2281 = vld [vmem:[#allocation2 + $0x46] sm:$0xff]
    %v2282 = vld [vmem:[#allocation2 + $0x4e] sm:$0xff]
    %v2283 = vld [vmem:[#allocation2 + $0x56] sm:$0xff]
    %v2284 = vld [vmem:[#allocation2 + $0x5e] sm:$0xff]
    %v2285 = vld [vmem:[#allocation2 + $0x66] sm:$0xff]
    %v2286 = vld [vmem:[#allocation2 + $0x6e] sm:$0xff]
    %2295 = vrot.lane.b32.xlu0 %v2279, 64
    %v2296 = vpop.permute.xlu0 %2295
    %2297 = vrot.lane.b32.xlu0 %v2280, 64
    %v2298 = vpop.permute.xlu0 %2297
    %2299 = vrot.lane.b32.xlu0 %v2281, 64
    %v2300 = vpop.permute.xlu0 %2299
    %2301 = vrot.lane.b32.xlu0 %v2282, 64
    %v2302 = vpop.permute.xlu0 %2301
    %2303 = vrot.lane.b32.xlu0 %v2283, 64
    %v2304 = vpop.permute.xlu0 %2303
    %2305 = vrot.lane.b32.xlu0 %v2284, 64
    %v2306 = vpop.permute.xlu0 %2305
    %2307 = vrot.lane.b32.xlu0 %v2285, 64
    %v2308 = vpop.permute.xlu0 %2307
    %2309 = vrot.lane.b32.xlu0 %v2286, 64
    %v2310 = vpop.permute.xlu0 %2309
    %2319 = vst.msk [vmem:[#allocation3 + $0x20] sm:$0xff] %vm1677, %v2296
    %2320 = vst.msk [vmem:[#allocation3 + $0x58] sm:$0xff] %vm1677, %v2298
    %2321 = vst.msk [vmem:[#allocation3 + $0x90] sm:$0xff] %vm1677, %v2300
    %2322 = vst.msk [vmem:[#allocation3 + $0xc8] sm:$0xff] %vm1677, %v2302
    %2323 = vst.msk [vmem:[#allocation3 + $0x100] sm:$0xff] %vm1677, %v2304
    %2324 = vst.msk [vmem:[#allocation3 + $0x138] sm:$0xff] %vm1677, %v2306
    %2325 = vst.msk [vmem:[#allocation3 + $0x170] sm:$0xff] %vm1677, %v2308
    %2326 = vst.msk [vmem:[#allocation3 + $0x1a8] sm:$0xff] %vm1677, %v2310
    %v2327 = vld [vmem:[#allocation2 + $0x46] sm:$0xff]
    %v2328 = vld [vmem:[#allocation2 + $0x4e] sm:$0xff]
    %v2329 = vld [vmem:[#allocation2 + $0x56] sm:$0xff]
    %v2330 = vld [vmem:[#allocation2 + $0x5e] sm:$0xff]
    %v2331 = vld [vmem:[#allocation2 + $0x66] sm:$0xff]
    %v2332 = vld [vmem:[#allocation2 + $0x6e] sm:$0xff]
    %v2333 = vld [vmem:[#allocation2 + $0x76] sm:$0xff]
    %v2334 = vld [vmem:[#allocation2 + $0x7e] sm:$0xff]
    %2343 = vrot.lane.b32.xlu0 %v2327, 96
    %v2344 = vpop.permute.xlu0 %2343
    %2345 = vrot.lane.b32.xlu0 %v2328, 96
    %v2346 = vpop.permute.xlu0 %2345
    %2347 = vrot.lane.b32.xlu0 %v2329, 96
    %v2348 = vpop.permute.xlu0 %2347
    %2349 = vrot.lane.b32.xlu0 %v2330, 96
    %v2350 = vpop.permute.xlu0 %2349
    %2351 = vrot.lane.b32.xlu0 %v2331, 96
    %v2352 = vpop.permute.xlu0 %2351
    %2353 = vrot.lane.b32.xlu0 %v2332, 96
    %v2354 = vpop.permute.xlu0 %2353
    %2355 = vrot.lane.b32.xlu0 %v2333, 96
    %v2356 = vpop.permute.xlu0 %2355
    %2357 = vrot.lane.b32.xlu0 %v2334, 96
    %v2358 = vpop.permute.xlu0 %2357
    %2367 = vst.msk [vmem:[#allocation3 + $0x20] sm:$0xff] %vm1726, %v2344
    %2368 = vst.msk [vmem:[#allocation3 + $0x58] sm:$0xff] %vm1726, %v2346
    %2369 = vst.msk [vmem:[#allocation3 + $0x90] sm:$0xff] %vm1726, %v2348
    %2370 = vst.msk [vmem:[#allocation3 + $0xc8] sm:$0xff] %vm1726, %v2350
    %2371 = vst.msk [vmem:[#allocation3 + $0x100] sm:$0xff] %vm1726, %v2352
    %2372 = vst.msk [vmem:[#allocation3 + $0x138] sm:$0xff] %vm1726, %v2354
    %2373 = vst.msk [vmem:[#allocation3 + $0x170] sm:$0xff] %vm1726, %v2356
    %2374 = vst.msk [vmem:[#allocation3 + $0x1a8] sm:$0xff] %vm1726, %v2358
    %v2375 = vld [vmem:[#allocation2 + $0x8] sm:$0xff]
    %v2376 = vld [vmem:[#allocation2 + $0x10] sm:$0xff]
    %v2377 = vld [vmem:[#allocation2 + $0x18] sm:$0xff]
    %v2378 = vld [vmem:[#allocation2 + $0x20] sm:$0xff]
    %v2379 = vld [vmem:[#allocation2 + $0x28] sm:$0xff]
    %v2380 = vld [vmem:[#allocation2 + $0x30] sm:$0xff]
    %v2381 = vld [vmem:[#allocation2 + $0x38] sm:$0xff]
    %v2382 = vld [vmem:[#allocation2 + $0x40] sm:$0xff]
    %2383 = vst.msk [vmem:[#allocation3 + $0x28] sm:$0xff] %vm1553, %v2375
    %2384 = vst.msk [vmem:[#allocation3 + $0x60] sm:$0xff] %vm1553, %v2376
    %2385 = vst.msk [vmem:[#allocation3 + $0x98] sm:$0xff] %vm1553, %v2377
    %2386 = vst.msk [vmem:[#allocation3 + $0xd0] sm:$0xff] %vm1553, %v2378
    %2387 = vst.msk [vmem:[#allocation3 + $0x108] sm:$0xff] %vm1553, %v2379
    %2388 = vst.msk [vmem:[#allocation3 + $0x140] sm:$0xff] %vm1553, %v2380
    %2389 = vst.msk [vmem:[#allocation3 + $0x178] sm:$0xff] %vm1553, %v2381
    %2390 = vst.msk [vmem:[#allocation3 + $0x1b0] sm:$0xff] %vm1553, %v2382
    %v2391 = vld [vmem:[#allocation2 + $0x18] sm:$0xff]
    %v2392 = vld [vmem:[#allocation2 + $0x20] sm:$0xff]
    %v2393 = vld [vmem:[#allocation2 + $0x28] sm:$0xff]
    %v2394 = vld [vmem:[#allocation2 + $0x30] sm:$0xff]
    %v2395 = vld [vmem:[#allocation2 + $0x38] sm:$0xff]
    %v2396 = vld [vmem:[#allocation2 + $0x40] sm:$0xff]
    %v2397 = vld [vmem:[#allocation2 + $0x48] sm:$0xff]
    %v2398 = vld [vmem:[#allocation2 + $0x50] sm:$0xff]
    %2407 = vrot.lane.b32.xlu0 %v2391, 32
    %v2408 = vpop.permute.xlu0 %2407
    %2409 = vrot.lane.b32.xlu0 %v2392, 32
    %v2410 = vpop.permute.xlu0 %2409
    %2411 = vrot.lane.b32.xlu0 %v2393, 32
    %v2412 = vpop.permute.xlu0 %2411
    %2413 = vrot.lane.b32.xlu0 %v2394, 32
    %v2414 = vpop.permute.xlu0 %2413
    %2415 = vrot.lane.b32.xlu0 %v2395, 32
    %v2416 = vpop.permute.xlu0 %2415
    %2417 = vrot.lane.b32.xlu0 %v2396, 32
    %v2418 = vpop.permute.xlu0 %2417
    %2419 = vrot.lane.b32.xlu0 %v2397, 32
    %v2420 = vpop.permute.xlu0 %2419
    %2421 = vrot.lane.b32.xlu0 %v2398, 32
    %v2422 = vpop.permute.xlu0 %2421
    %2431 = vst.msk [vmem:[#allocation3 + $0x28] sm:$0xff] %vm1628, %v2408
    %2432 = vst.msk [vmem:[#allocation3 + $0x60] sm:$0xff] %vm1628, %v2410
    %2433 = vst.msk [vmem:[#allocation3 + $0x98] sm:$0xff] %vm1628, %v2412
    %2434 = vst.msk [vmem:[#allocation3 + $0xd0] sm:$0xff] %vm1628, %v2414
    %2435 = vst.msk [vmem:[#allocation3 + $0x108] sm:$0xff] %vm1628, %v2416
    %2436 = vst.msk [vmem:[#allocation3 + $0x140] sm:$0xff] %vm1628, %v2418
    %2437 = vst.msk [vmem:[#allocation3 + $0x178] sm:$0xff] %vm1628, %v2420
    %2438 = vst.msk [vmem:[#allocation3 + $0x1b0] sm:$0xff] %vm1628, %v2422
    %v2439 = vld [vmem:[#allocation2 + $0x28] sm:$0xff]
    %v2440 = vld [vmem:[#allocation2 + $0x30] sm:$0xff]
    %v2441 = vld [vmem:[#allocation2 + $0x38] sm:$0xff]
    %v2442 = vld [vmem:[#allocation2 + $0x40] sm:$0xff]
    %v2443 = vld [vmem:[#allocation2 + $0x48] sm:$0xff]
    %v2444 = vld [vmem:[#allocation2 + $0x50] sm:$0xff]
    %v2445 = vld [vmem:[#allocation2 + $0x58] sm:$0xff]
    %v2446 = vld [vmem:[#allocation2 + $0x60] sm:$0xff]
    %2455 = vrot.lane.b32.xlu0 %v2439, 64
    %v2456 = vpop.permute.xlu0 %2455
    %2457 = vrot.lane.b32.xlu0 %v2440, 64
    %v2458 = vpop.permute.xlu0 %2457
    %2459 = vrot.lane.b32.xlu0 %v2441, 64
    %v2460 = vpop.permute.xlu0 %2459
    %2461 = vrot.lane.b32.xlu0 %v2442, 64
    %v2462 = vpop.permute.xlu0 %2461
    %2463 = vrot.lane.b32.xlu0 %v2443, 64
    %v2464 = vpop.permute.xlu0 %2463
    %2465 = vrot.lane.b32.xlu0 %v2444, 64
    %v2466 = vpop.permute.xlu0 %2465
    %2467 = vrot.lane.b32.xlu0 %v2445, 64
    %v2468 = vpop.permute.xlu0 %2467
    %2469 = vrot.lane.b32.xlu0 %v2446, 64
    %v2470 = vpop.permute.xlu0 %2469
    %2479 = vst.msk [vmem:[#allocation3 + $0x28] sm:$0xff] %vm1677, %v2456
    %2480 = vst.msk [vmem:[#allocation3 + $0x60] sm:$0xff] %vm1677, %v2458
    %2481 = vst.msk [vmem:[#allocation3 + $0x98] sm:$0xff] %vm1677, %v2460
    %2482 = vst.msk [vmem:[#allocation3 + $0xd0] sm:$0xff] %vm1677, %v2462
    %2483 = vst.msk [vmem:[#allocation3 + $0x108] sm:$0xff] %vm1677, %v2464
    %2484 = vst.msk [vmem:[#allocation3 + $0x140] sm:$0xff] %vm1677, %v2466
    %2485 = vst.msk [vmem:[#allocation3 + $0x178] sm:$0xff] %vm1677, %v2468
    %2486 = vst.msk [vmem:[#allocation3 + $0x1b0] sm:$0xff] %vm1677, %v2470
    %v2487 = vld [vmem:[#allocation2 + $0x38] sm:$0xff]
    %v2488 = vld [vmem:[#allocation2 + $0x40] sm:$0xff]
    %v2489 = vld [vmem:[#allocation2 + $0x48] sm:$0xff]
    %v2490 = vld [vmem:[#allocation2 + $0x50] sm:$0xff]
    %v2491 = vld [vmem:[#allocation2 + $0x58] sm:$0xff]
    %v2492 = vld [vmem:[#allocation2 + $0x60] sm:$0xff]
    %v2493 = vld [vmem:[#allocation2 + $0x68] sm:$0xff]
    %v2494 = vld [vmem:[#allocation2 + $0x70] sm:$0xff]
    %2503 = vrot.lane.b32.xlu0 %v2487, 96
    %v2504 = vpop.permute.xlu0 %2503
    %2505 = vrot.lane.b32.xlu0 %v2488, 96
    %v2506 = vpop.permute.xlu0 %2505
    %2507 = vrot.lane.b32.xlu0 %v2489, 96
    %v2508 = vpop.permute.xlu0 %2507
    %2509 = vrot.lane.b32.xlu0 %v2490, 96
    %v2510 = vpop.permute.xlu0 %2509
    %2511 = vrot.lane.b32.xlu0 %v2491, 96
    %v2512 = vpop.permute.xlu0 %2511
    %2513 = vrot.lane.b32.xlu0 %v2492, 96
    %v2514 = vpop.permute.xlu0 %2513
    %2515 = vrot.lane.b32.xlu0 %v2493, 96
    %v2516 = vpop.permute.xlu0 %2515
    %2517 = vrot.lane.b32.xlu0 %v2494, 96
    %v2518 = vpop.permute.xlu0 %2517
    %2527 = vst.msk [vmem:[#allocation3 + $0x28] sm:$0xff] %vm1726, %v2504
    %2528 = vst.msk [vmem:[#allocation3 + $0x60] sm:$0xff] %vm1726, %v2506
    %2529 = vst.msk [vmem:[#allocation3 + $0x98] sm:$0xff] %vm1726, %v2508
    %2530 = vst.msk [vmem:[#allocation3 + $0xd0] sm:$0xff] %vm1726, %v2510
    %2531 = vst.msk [vmem:[#allocation3 + $0x108] sm:$0xff] %vm1726, %v2512
    %2532 = vst.msk [vmem:[#allocation3 + $0x140] sm:$0xff] %vm1726, %v2514
    %2533 = vst.msk [vmem:[#allocation3 + $0x178] sm:$0xff] %vm1726, %v2516
    %2534 = vst.msk [vmem:[#allocation3 + $0x1b0] sm:$0xff] %vm1726, %v2518
    %v2535 = vld [vmem:[#allocation2 + $0x48] sm:$0xff]
    %v2536 = vld [vmem:[#allocation2 + $0x50] sm:$0xff]
    %v2537 = vld [vmem:[#allocation2 + $0x58] sm:$0xff]
    %v2538 = vld [vmem:[#allocation2 + $0x60] sm:$0xff]
    %v2539 = vld [vmem:[#allocation2 + $0x68] sm:$0xff]
    %v2540 = vld [vmem:[#allocation2 + $0x70] sm:$0xff]
    %v2541 = vld [vmem:[#allocation2 + $0x78] sm:$0xff]
    %v2542 = vld [vmem:[#allocation2 + $0x80] sm:$0xff]
    %2543 = vst.msk [vmem:[#allocation3 + $0x30] sm:$0xff] %vm1553, %v2535
    %2544 = vst.msk [vmem:[#allocation3 + $0x68] sm:$0xff] %vm1553, %v2536
    %2545 = vst.msk [vmem:[#allocation3 + $0xa0] sm:$0xff] %vm1553, %v2537
    %2546 = vst.msk [vmem:[#allocation3 + $0xd8] sm:$0xff] %vm1553, %v2538
    %2547 = vst.msk [vmem:[#allocation3 + $0x110] sm:$0xff] %vm1553, %v2539
    %2548 = vst.msk [vmem:[#allocation3 + $0x148] sm:$0xff] %vm1553, %v2540
    %2549 = vst.msk [vmem:[#allocation3 + $0x180] sm:$0xff] %vm1553, %v2541
    %2550 = vst.msk [vmem:[#allocation3 + $0x1b8] sm:$0xff] %vm1553, %v2542
    %v2551 = vld [vmem:[#allocation3] sm:$0xff]
    %v2552 = vld [vmem:[#allocation3 + $0x8] sm:$0xff]
    %v2553 = vld [vmem:[#allocation3 + $0x10] sm:$0xff]
    %v2554 = vld [vmem:[#allocation3 + $0x18] sm:$0xff]
    %v2555 = vld [vmem:[#allocation3 + $0x20] sm:$0xff]
    %v2556 = vld [vmem:[#allocation3 + $0x28] sm:$0xff]
    %v2557 = vld [vmem:[#allocation3 + $0x30] sm:$0xff]
    %v2558 = vld [vmem:[#allocation3 + $0x38] sm:$0xff]
    %v2559 = vld [vmem:[#allocation3 + $0x40] sm:$0xff]
    %v2560 = vld [vmem:[#allocation3 + $0x48] sm:$0xff]
    %v2561 = vld [vmem:[#allocation3 + $0x50] sm:$0xff]
    %v2562 = vld [vmem:[#allocation3 + $0x58] sm:$0xff]
    %v2563 = vld [vmem:[#allocation3 + $0x60] sm:$0xff]
    %v2564 = vld [vmem:[#allocation3 + $0x68] sm:$0xff]
    %v2565 = vld [vmem:[#allocation3 + $0x70] sm:$0xff]
    %v2566 = vld [vmem:[#allocation3 + $0x78] sm:$0xff]
    %v2567 = vld [vmem:[#allocation3 + $0x80] sm:$0xff]
    %v2568 = vld [vmem:[#allocation3 + $0x88] sm:$0xff]
    %v2569 = vld [vmem:[#allocation3 + $0x90] sm:$0xff]
    %v2570 = vld [vmem:[#allocation3 + $0x98] sm:$0xff]
    %v2571 = vld [vmem:[#allocation3 + $0xa0] sm:$0xff]
    %v2572 = vld [vmem:[#allocation3 + $0xa8] sm:$0xff]
    %v2573 = vld [vmem:[#allocation3 + $0xb0] sm:$0xff]
    %v2574 = vld [vmem:[#allocation3 + $0xb8] sm:$0xff]
    %v2575 = vld [vmem:[#allocation3 + $0xc0] sm:$0xff]
    %v2576 = vld [vmem:[#allocation3 + $0xc8] sm:$0xff]
    %v2577 = vld [vmem:[#allocation3 + $0xd0] sm:$0xff]
    %v2578 = vld [vmem:[#allocation3 + $0xd8] sm:$0xff]
    %v2579 = vld [vmem:[#allocation3 + $0xe0] sm:$0xff]
    %v2580 = vld [vmem:[#allocation3 + $0xe8] sm:$0xff]
    %v2581 = vld [vmem:[#allocation3 + $0xf0] sm:$0xff]
    %v2582 = vld [vmem:[#allocation3 + $0xf8] sm:$0xff]
    %v2583 = vld [vmem:[#allocation3 + $0x100] sm:$0xff]
    %v2584 = vld [vmem:[#allocation3 + $0x108] sm:$0xff]
    %v2585 = vld [vmem:[#allocation3 + $0x110] sm:$0xff]
    %v2586 = vld [vmem:[#allocation3 + $0x118] sm:$0xff]
    %v2587 = vld [vmem:[#allocation3 + $0x120] sm:$0xff]
    %v2588 = vld [vmem:[#allocation3 + $0x128] sm:$0xff]
    %v2589 = vld [vmem:[#allocation3 + $0x130] sm:$0xff]
    %v2590 = vld [vmem:[#allocation3 + $0x138] sm:$0xff]
    %v2591 = vld [vmem:[#allocation3 + $0x140] sm:$0xff]
    %v2592 = vld [vmem:[#allocation3 + $0x148] sm:$0xff]
    %v2593 = vld [vmem:[#allocation3 + $0x150] sm:$0xff]
    %v2594 = vld [vmem:[#allocation3 + $0x158] sm:$0xff]
    %v2595 = vld [vmem:[#allocation3 + $0x160] sm:$0xff]
    %v2596 = vld [vmem:[#allocation3 + $0x168] sm:$0xff]
    %v2597 = vld [vmem:[#allocation3 + $0x170] sm:$0xff]
    %v2598 = vld [vmem:[#allocation3 + $0x178] sm:$0xff]
    %v2599 = vld [vmem:[#allocation3 + $0x180] sm:$0xff]
    %v2600 = vld [vmem:[#allocation3 + $0x188] sm:$0xff]
    %v2601 = vld [vmem:[#allocation3 + $0x190] sm:$0xff]
    %v2602 = vld [vmem:[#allocation3 + $0x198] sm:$0xff]
    %v2603 = vld [vmem:[#allocation3 + $0x1a0] sm:$0xff]
    %v2604 = vld [vmem:[#allocation3 + $0x1a8] sm:$0xff]
    %v2605 = vld [vmem:[#allocation3 + $0x1b0] sm:$0xff]
    %v2606 = vld [vmem:[#allocation3 + $0x1b8] sm:$0xff]
    %v2607 = vpack.c.bf16 %v2558, %v2551
    %v2608 = vpack.c.bf16 %v2559, %v2552
    %v2609 = vpack.c.bf16 %v2560, %v2553
    %v2610 = vpack.c.bf16 %v2561, %v2554
    %v2611 = vpack.c.bf16 %v2562, %v2555
    %v2612 = vpack.c.bf16 %v2563, %v2556
    %v2613 = vpack.c.bf16 %v2564, %v2557
    %v2614 = vpack.c.bf16 %v2572, %v2565
    %v2615 = vpack.c.bf16 %v2573, %v2566
    %v2616 = vpack.c.bf16 %v2574, %v2567
    %v2617 = vpack.c.bf16 %v2575, %v2568
    %v2618 = vpack.c.bf16 %v2576, %v2569
    %v2619 = vpack.c.bf16 %v2577, %v2570
    %v2620 = vpack.c.bf16 %v2578, %v2571
    %v2621 = vpack.c.bf16 %v2586, %v2579
    %v2622 = vpack.c.bf16 %v2587, %v2580
    %v2623 = vpack.c.bf16 %v2588, %v2581
    %v2624 = vpack.c.bf16 %v2589, %v2582
    %v2625 = vpack.c.bf16 %v2590, %v2583
    %v2626 = vpack.c.bf16 %v2591, %v2584
    %v2627 = vpack.c.bf16 %v2592, %v2585
    %v2628 = vpack.c.bf16 %v2600, %v2593
    %v2629 = vpack.c.bf16 %v2601, %v2594
    %v2630 = vpack.c.bf16 %v2602, %v2595
    %v2631 = vpack.c.bf16 %v2603, %v2596
    %v2632 = vpack.c.bf16 %v2604, %v2597
    %v2633 = vpack.c.bf16 %v2605, %v2598
    %v2634 = vpack.c.bf16 %v2606, %v2599
    %v2635 = vld [vmem:[%s3] sm:$0xf]
    %v2636 = vld [vmem:[%s3 + $0x4] sm:$0xf]
    %v2637 = vld [vmem:[%s3 + $0x8] sm:$0xf]
    %v2638 = vld [vmem:[%s3 + $0xc] sm:$0xf]
    %v2639 = vld [vmem:[%s3 + $0x10] sm:$0xf]
    %v2640 = vld [vmem:[%s3 + $0x14] sm:$0xf]
    %v2641 = vld [vmem:[%s3 + $0x18] sm:$0xf]
    %v2642 = vld [vmem:[%s3 + $0x1c] sm:$0xf]
    %v2643 = vld [vmem:[%s3 + $0x20] sm:$0xf]
    %v2644 = vld [vmem:[%s3 + $0x24] sm:$0xf]
    %v2645 = vld [vmem:[%s3 + $0x28] sm:$0xf]
    %v2646 = vld [vmem:[%s3 + $0x2c] sm:$0xf]
    %v2647 = vld [vmem:[%s3 + $0x30] sm:$0xf]
    %v2648 = vld [vmem:[%s3 + $0x34] sm:$0xf]
    %v2649 = vld [vmem:[%s3 + $0x38] sm:$0xf]
    %v2650 = vld [vmem:[%s3 + $0x3c] sm:$0xf]
    %v2651 = vld [vmem:[%s3 + $0x40] sm:$0xf]
    %v2652 = vld [vmem:[%s3 + $0x44] sm:$0xf]
    %v2653 = vld [vmem:[%s3 + $0x48] sm:$0xf]
    %v2654 = vld [vmem:[%s3 + $0x4c] sm:$0xf]
    %v2655 = vld [vmem:[%s3 + $0x50] sm:$0xf]
    %v2656 = vld [vmem:[%s3 + $0x54] sm:$0xf]
    %v2657 = vld [vmem:[%s3 + $0x58] sm:$0xf]
    %v2658 = vld [vmem:[%s3 + $0x5c] sm:$0xf]
    %v2659 = vld [vmem:[%s3 + $0x60] sm:$0xf]
    %v2660 = vld [vmem:[%s3 + $0x64] sm:$0xf]
    %v2661 = vld [vmem:[%s3 + $0x68] sm:$0xf]
    %v2662 = vld [vmem:[%s3 + $0x6c] sm:$0xf]
    %v2663 = vld [vmem:[%s3 + $0x70] sm:$0xf]
    %v2664 = vld [vmem:[%s3 + $0x74] sm:$0xf]
    %v2665 = vld [vmem:[%s3 + $0x78] sm:$0xf]
    %v2666 = vld [vmem:[%s3 + $0x7c] sm:$0xf]
    %v2667 = vld [vmem:[%s3 + $0x80] sm:$0xf]
    %v2668 = vld [vmem:[%s3 + $0x84] sm:$0xf]
    %v2669 = vld [vmem:[%s3 + $0x88] sm:$0xf]
    %v2670 = vld [vmem:[%s3 + $0x8c] sm:$0xf]
    %v2671 = vld [vmem:[%s3 + $0x90] sm:$0xf]
    %v2672 = vld [vmem:[%s3 + $0x94] sm:$0xf]
    %v2673 = vld [vmem:[%s3 + $0x98] sm:$0xf]
    %v2674 = vld [vmem:[%s3 + $0x9c] sm:$0xf]
    %v2675 = vld [vmem:[%s3 + $0xa0] sm:$0xf]
    %v2676 = vld [vmem:[%s3 + $0xa4] sm:$0xf]
    %v2677 = vld [vmem:[%s3 + $0xa8] sm:$0xf]
    %v2678 = vld [vmem:[%s3 + $0xac] sm:$0xf]
    %v2679 = vld [vmem:[%s3 + $0xb0] sm:$0xf]
    %v2680 = vld [vmem:[%s3 + $0xb4] sm:$0xf]
    %v2681 = vld [vmem:[%s3 + $0xb8] sm:$0xf]
    %v2682 = vld [vmem:[%s3 + $0xbc] sm:$0xf]
    %v2683 = vld [vmem:[%s3 + $0xc0] sm:$0xf]
    %v2684 = vld [vmem:[%s3 + $0xc4] sm:$0xf]
    %v2685 = vld [vmem:[%s3 + $0xc8] sm:$0xf]
    %v2686 = vld [vmem:[%s3 + $0xcc] sm:$0xf]
    %v2687 = vld [vmem:[%s3 + $0xd0] sm:$0xf]
    %v2688 = vld [vmem:[%s3 + $0xd4] sm:$0xf]
    %v2689 = vld [vmem:[%s3 + $0xd8] sm:$0xf]
    %v2690 = vld [vmem:[%s3 + $0xdc] sm:$0xf]
    %v2691 = vld [vmem:[%s3 + $0xe0] sm:$0xf]
    %v2692 = vld [vmem:[%s3 + $0xe4] sm:$0xf]
    %v2693 = vld [vmem:[%s3 + $0xe8] sm:$0xf]
    %v2694 = vld [vmem:[%s3 + $0xec] sm:$0xf]
    %v2695 = vld [vmem:[%s3 + $0xf0] sm:$0xf]
    %v2696 = vld [vmem:[%s3 + $0xf4] sm:$0xf]
    %v2697 = vld [vmem:[%s3 + $0xf8] sm:$0xf]
    %v2698 = vld [vmem:[%s3 + $0xfc] sm:$0xf]
    %v2699 = vld [vmem:[%s3 + $0x100] sm:$0xf]
    %v2700 = vld [vmem:[%s3 + $0x104] sm:$0xf]
    %v2701 = vld [vmem:[%s3 + $0x108] sm:$0xf]
    %v2702 = vld [vmem:[%s3 + $0x10c] sm:$0xf]
    %v2703 = vld [vmem:[%s3 + $0x110] sm:$0xf]
    %v2704 = vld [vmem:[%s3 + $0x114] sm:$0xf]
    %v2705 = vld [vmem:[%s3 + $0x118] sm:$0xf]
    %v2706 = vld [vmem:[%s3 + $0x11c] sm:$0xf]
    %v2707 = vld [vmem:[%s3 + $0x120] sm:$0xf]
    %v2708 = vld [vmem:[%s3 + $0x124] sm:$0xf]
    %v2709 = vld [vmem:[%s3 + $0x128] sm:$0xf]
    %v2710 = vld [vmem:[%s3 + $0x12c] sm:$0xf]
    %v2711 = vld [vmem:[%s3 + $0x130] sm:$0xf]
    %v2712 = vld [vmem:[%s3 + $0x134] sm:$0xf]
    %v2713 = vld [vmem:[%s3 + $0x138] sm:$0xf]
    %v2714 = vld [vmem:[%s3 + $0x13c] sm:$0xf]
    %v2715 = vld [vmem:[%s3 + $0x140] sm:$0xf]
    %v2716 = vld [vmem:[%s3 + $0x144] sm:$0xf]
    %v2717 = vld [vmem:[%s3 + $0x148] sm:$0xf]
    %v2718 = vld [vmem:[%s3 + $0x14c] sm:$0xf]
    %v2719 = vld [vmem:[%s3 + $0x150] sm:$0xf]
    %v2720 = vld [vmem:[%s3 + $0x154] sm:$0xf]
    %v2721 = vld [vmem:[%s3 + $0x158] sm:$0xf]
    %v2722 = vld [vmem:[%s3 + $0x15c] sm:$0xf]
    %v2723 = vld [vmem:[%s3 + $0x160] sm:$0xf]
    %v2724 = vld [vmem:[%s3 + $0x164] sm:$0xf]
    %v2725 = vld [vmem:[%s3 + $0x168] sm:$0xf]
    %v2726 = vld [vmem:[%s3 + $0x16c] sm:$0xf]
    %v2727 = vld [vmem:[%s3 + $0x170] sm:$0xf]
    %v2728 = vld [vmem:[%s3 + $0x174] sm:$0xf]
    %v2729 = vld [vmem:[%s3 + $0x178] sm:$0xf]
    %v2730 = vld [vmem:[%s3 + $0x17c] sm:$0xf]
    %v2731 = vld [vmem:[%s3 + $0x180] sm:$0xf]
    %v2732 = vld [vmem:[%s3 + $0x184] sm:$0xf]
    %v2733 = vld [vmem:[%s3 + $0x188] sm:$0xf]
    %v2734 = vld [vmem:[%s3 + $0x18c] sm:$0xf]
    %v2835 = vunpack.c.l.b16 %v2635
    %v2836 = vunpack.c.l.b16 %v2636
    %v2837 = vunpack.c.l.b16 %v2637
    %v2838 = vunpack.c.l.b16 %v2638
    %v2839 = vunpack.c.l.b16 %v2639
    %v2840 = vunpack.c.l.b16 %v2640
    %v2841 = vunpack.c.l.b16 %v2641
    %v2842 = vunpack.c.l.b16 %v2642
    %v2843 = vunpack.c.l.b16 %v2643
    %v2844 = vunpack.c.l.b16 %v2644
    %v2845 = vunpack.c.l.b16 %v2645
    %v2846 = vunpack.c.l.b16 %v2646
    %v2847 = vunpack.c.l.b16 %v2647
    %v2848 = vunpack.c.l.b16 %v2648
    %v2849 = vunpack.c.l.b16 %v2649
    %v2850 = vunpack.c.l.b16 %v2650
    %v2851 = vunpack.c.l.b16 %v2651
    %v2852 = vunpack.c.l.b16 %v2652
    %v2853 = vunpack.c.l.b16 %v2653
    %v2854 = vunpack.c.l.b16 %v2654
    %v2855 = vunpack.c.l.b16 %v2655
    %v2856 = vunpack.c.l.b16 %v2656
    %v2857 = vunpack.c.l.b16 %v2657
    %v2858 = vunpack.c.l.b16 %v2658
    %v2859 = vunpack.c.l.b16 %v2659
    %v2860 = vunpack.c.l.b16 %v2660
    %v2861 = vunpack.c.l.b16 %v2661
    %v2862 = vunpack.c.l.b16 %v2662
    %v2863 = vunpack.c.l.b16 %v2663
    %v2864 = vunpack.c.l.b16 %v2664
    %v2865 = vunpack.c.l.b16 %v2665
    %v2866 = vunpack.c.l.b16 %v2666
    %v2867 = vunpack.c.l.b16 %v2667
    %v2868 = vunpack.c.l.b16 %v2668
    %v2869 = vunpack.c.l.b16 %v2669
    %v2870 = vunpack.c.l.b16 %v2670
    %v2871 = vunpack.c.l.b16 %v2671
    %v2872 = vunpack.c.l.b16 %v2672
    %v2873 = vunpack.c.l.b16 %v2673
    %v2874 = vunpack.c.l.b16 %v2674
    %v2875 = vunpack.c.l.b16 %v2675
    %v2876 = vunpack.c.l.b16 %v2676
    %v2877 = vunpack.c.l.b16 %v2677
    %v2878 = vunpack.c.l.b16 %v2678
    %v2879 = vunpack.c.l.b16 %v2679
    %v2880 = vunpack.c.l.b16 %v2680
    %v2881 = vunpack.c.l.b16 %v2681
    %v2882 = vunpack.c.l.b16 %v2682
    %v2883 = vunpack.c.l.b16 %v2683
    %v2884 = vunpack.c.l.b16 %v2684
    %v2885 = vunpack.c.l.b16 %v2685
    %v2886 = vunpack.c.l.b16 %v2686
    %v2887 = vunpack.c.l.b16 %v2687
    %v2888 = vunpack.c.l.b16 %v2688
    %v2889 = vunpack.c.l.b16 %v2689
    %v2890 = vunpack.c.l.b16 %v2690
    %v2891 = vunpack.c.l.b16 %v2691
    %v2892 = vunpack.c.l.b16 %v2692
    %v2893 = vunpack.c.l.b16 %v2693
    %v2894 = vunpack.c.l.b16 %v2694
    %v2895 = vunpack.c.l.b16 %v2695
    %v2896 = vunpack.c.l.b16 %v2696
    %v2897 = vunpack.c.l.b16 %v2697
    %v2898 = vunpack.c.l.b16 %v2698
    %v2899 = vunpack.c.l.b16 %v2699
    %v2900 = vunpack.c.l.b16 %v2700
    %v2901 = vunpack.c.l.b16 %v2701
    %v2902 = vunpack.c.l.b16 %v2702
    %v2903 = vunpack.c.l.b16 %v2703
    %v2904 = vunpack.c.l.b16 %v2704
    %v2905 = vunpack.c.l.b16 %v2705
    %v2906 = vunpack.c.l.b16 %v2706
    %v2907 = vunpack.c.l.b16 %v2707
    %v2908 = vunpack.c.l.b16 %v2708
    %v2909 = vunpack.c.l.b16 %v2709
    %v2910 = vunpack.c.l.b16 %v2710
    %v2911 = vunpack.c.l.b16 %v2711
    %v2912 = vunpack.c.l.b16 %v2712
    %v2913 = vunpack.c.l.b16 %v2713
    %v2914 = vunpack.c.l.b16 %v2714
    %v2915 = vunpack.c.l.b16 %v2715
    %v2916 = vunpack.c.l.b16 %v2716
    %v2917 = vunpack.c.l.b16 %v2717
    %v2918 = vunpack.c.l.b16 %v2718
    %v2919 = vunpack.c.l.b16 %v2719
    %v2920 = vunpack.c.l.b16 %v2720
    %v2921 = vunpack.c.l.b16 %v2721
    %v2922 = vunpack.c.l.b16 %v2722
    %v2923 = vunpack.c.l.b16 %v2723
    %v2924 = vunpack.c.l.b16 %v2724
    %v2925 = vunpack.c.l.b16 %v2725
    %v2926 = vunpack.c.l.b16 %v2726
    %v2927 = vunpack.c.l.b16 %v2727
    %v2928 = vunpack.c.l.b16 %v2728
    %v2929 = vunpack.c.l.b16 %v2729
    %v2930 = vunpack.c.l.b16 %v2730
    %v2931 = vunpack.c.l.b16 %v2731
    %v2932 = vunpack.c.l.b16 %v2732
    %v2933 = vunpack.c.l.b16 %v2733
    %v2934 = vunpack.c.l.b16 %v2734
    %v2935 = vpack.c.b16 %v2836, %v2835
    %v2936 = vpack.c.b16 %v2838, %v2837
    %v2937 = vpack.c.b16 %v2840, %v2839
    %v2938 = vpack.c.b16 %v2842, %v2841
    %v2939 = vpack.c.b16 %v2844, %v2843
    %v2940 = vpack.c.b16 %v2846, %v2845
    %v2941 = vpack.c.b16 %v2848, %v2847
    %v2942 = vpack.c.b16 %v2850, %v2849
    %v2943 = vpack.c.b16 %v2852, %v2851
    %v2944 = vpack.c.b16 %v2854, %v2853
    %v2945 = vpack.c.b16 %v2856, %v2855
    %v2946 = vpack.c.b16 %v2858, %v2857
    %v2947 = vpack.c.b16 %v2860, %v2859
    %v2948 = vpack.c.b16 %v2862, %v2861
    %v2949 = vpack.c.b16 %v2864, %v2863
    %v2950 = vpack.c.b16 %v2866, %v2865
    %v2951 = vpack.c.b16 %v2868, %v2867
    %v2952 = vpack.c.b16 %v2870, %v2869
    %v2953 = vpack.c.b16 %v2872, %v2871
    %v2954 = vpack.c.b16 %v2874, %v2873
    %v2955 = vpack.c.b16 %v2876, %v2875
    %v2956 = vpack.c.b16 %v2878, %v2877
    %v2957 = vpack.c.b16 %v2880, %v2879
    %v2958 = vpack.c.b16 %v2882, %v2881
    %v2959 = vpack.c.b16 %v2884, %v2883
    %v2960 = vpack.c.b16 %v2886, %v2885
    %v2961 = vpack.c.b16 %v2888, %v2887
    %v2962 = vpack.c.b16 %v2890, %v2889
    %v2963 = vpack.c.b16 %v2892, %v2891
    %v2964 = vpack.c.b16 %v2894, %v2893
    %v2965 = vpack.c.b16 %v2896, %v2895
    %v2966 = vpack.c.b16 %v2898, %v2897
    %v2967 = vpack.c.b16 %v2900, %v2899
    %v2968 = vpack.c.b16 %v2902, %v2901
    %v2969 = vpack.c.b16 %v2904, %v2903
    %v2970 = vpack.c.b16 %v2906, %v2905
    %v2971 = vpack.c.b16 %v2908, %v2907
    %v2972 = vpack.c.b16 %v2910, %v2909
    %v2973 = vpack.c.b16 %v2912, %v2911
    %v2974 = vpack.c.b16 %v2914, %v2913
    %v2975 = vpack.c.b16 %v2916, %v2915
    %v2976 = vpack.c.b16 %v2918, %v2917
    %v2977 = vpack.c.b16 %v2920, %v2919
    %v2978 = vpack.c.b16 %v2922, %v2921
    %v2979 = vpack.c.b16 %v2924, %v2923
    %v2980 = vpack.c.b16 %v2926, %v2925
    %v2981 = vpack.c.b16 %v2928, %v2927
    %v2982 = vpack.c.b16 %v2930, %v2929
    %v2983 = vpack.c.b16 %v2932, %v2931
    %v2984 = vpack.c.b16 %v2934, %v2933
    %v3036 = vsel %vm1553, %v2613, 0
    %v3039 = vsel %vm1553, %v2620, 0
    %v3042 = vsel %vm1553, %v2627, 0
    %v3045 = vsel %vm1553, %v2634, 0
    %3047 = vmatprep.subr.bf16.mxu0 0
    %3048 = vmatpush1.bf16.msra.mxu0 %v2942
    %3049 = vmatprep.subr.bf16.mxu0 0
    %3050 = vmatpush1.bf16.msra.mxu0 %v2941
    %3051 = vmatprep.subr.bf16.mxu0 0
    %3052 = vmatpush1.bf16.msra.mxu0 %v2940
    %3053 = vmatprep.subr.bf16.mxu0 0
    %3054 = vmatpush1.bf16.msra.mxu0 %v2939
    %3055 = vmatprep.subr.bf16.mxu0 0
    %3056 = vmatpush1.bf16.msra.mxu0 %v2938
    %3057 = vmatprep.subr.bf16.mxu0 0
    %3058 = vmatpush1.bf16.msra.mxu0 %v2937
    %3059 = vmatprep.subr.bf16.mxu0 0
    %3060 = vmatpush1.bf16.msra.mxu0 %v2936
    %3061 = vmatprep.subr.bf16.mxu0 0
    %3062 = vmatpush1.bf16.msra.mxu0 %v2935
    %3063 = vmatprep.subr.bf16.mxu0 0
    %3064 = vmatpush2.bf16.msra.mxu0 %v2950
    %3065 = vmatprep.subr.bf16.mxu0 0
    %3066 = vmatpush2.bf16.msra.mxu0 %v2949
    %3067 = vmatprep.subr.bf16.mxu0 0
    %3068 = vmatpush2.bf16.msra.mxu0 %v2948
    %3069 = vmatprep.subr.bf16.mxu0 0
    %3070 = vmatpush2.bf16.msra.mxu0 %v2947
    %3071 = vmatprep.subr.bf16.mxu0 0
    %3072 = vmatpush2.bf16.msra.mxu0 %v2946
    %3073 = vmatprep.subr.bf16.mxu0 0
    %3074 = vmatpush2.bf16.msra.mxu0 %v2945
    %3075 = vmatprep.subr.bf16.mxu0 0
    %3076 = vmatpush2.bf16.msra.mxu0 %v2944
    %3077 = vmatprep.subr.bf16.mxu0 0
    %3078 = vmatpush2.bf16.msra.mxu0 %v2943
    %3079 = vmatprep.mubr.bf16.mxu0 %v2608
    %3080 = vmatmul.mubr.bf16.gmra.mxu0 %v2607
    %v3081 = vpop.f32.mrf.mxu0
    %v3082 = vadd.f32 0.0, %v3081
    %v3083 = vpop.f32.mrf.mxu0
    %v3084 = vpop.f32.mrf.mxu0
    %v3085 = vpop.f32.mrf.mxu0
    %3086 = vmatprep.mubr.bf16.mxu0 %v2615
    %3087 = vmatmul.mubr.bf16.gmra.mxu0 %v2614
    %v3088 = vpop.f32.mrf.mxu0
    %v3089 = vadd.f32 0.0, %v3088
    %v3090 = vpop.f32.mrf.mxu0
    %v3091 = vpop.f32.mrf.mxu0
    %v3092 = vpop.f32.mrf.mxu0
    %3093 = vmatprep.mubr.bf16.mxu0 %v2622
    %3094 = vmatmul.mubr.bf16.gmra.mxu0 %v2621
    %v3095 = vpop.f32.mrf.mxu0
    %v3096 = vadd.f32 0.0, %v3095
    %v3097 = vpop.f32.mrf.mxu0
    %v3098 = vpop.f32.mrf.mxu0
    %v3099 = vpop.f32.mrf.mxu0
    %3100 = vmatprep.mubr.bf16.mxu0 %v2629
    %3101 = vmatmul.mubr.bf16.gmra.mxu0 %v2628
    %v3102 = vpop.f32.mrf.mxu0
    %v3103 = vadd.f32 0.0, %v3102
    %v3104 = vpop.f32.mrf.mxu0
    %v3105 = vpop.f32.mrf.mxu0
    %v3106 = vpop.f32.mrf.mxu0
    %3107 = vdwg.mxu0
    %3108 = vmatprep.subr.bf16.mxu0 0
    %3109 = vmatpush1.bf16.msra.mxu0 %v2958
    %3110 = vmatprep.subr.bf16.mxu0 0
    %3111 = vmatpush1.bf16.msra.mxu0 %v2957
    %3112 = vmatprep.subr.bf16.mxu0 0
    %3113 = vmatpush1.bf16.msra.mxu0 %v2956
    %3114 = vmatprep.subr.bf16.mxu0 0
    %3115 = vmatpush1.bf16.msra.mxu0 %v2955
    %3116 = vmatprep.subr.bf16.mxu0 0
    %3117 = vmatpush1.bf16.msra.mxu0 %v2954
    %3118 = vmatprep.subr.bf16.mxu0 0
    %3119 = vmatpush1.bf16.msra.mxu0 %v2953
    %3120 = vmatprep.subr.bf16.mxu0 0
    %3121 = vmatpush1.bf16.msra.mxu0 %v2952
    %3122 = vmatprep.subr.bf16.mxu0 0
    %3123 = vmatpush1.bf16.msra.mxu0 %v2951
    %3124 = vmatprep.subr.bf16.mxu0 0
    %3125 = vmatpush2.bf16.msra.mxu0 %v2966
    %3126 = vmatprep.subr.bf16.mxu0 0
    %3127 = vmatpush2.bf16.msra.mxu0 %v2965
    %3128 = vmatprep.subr.bf16.mxu0 0
    %3129 = vmatpush2.bf16.msra.mxu0 %v2964
    %3130 = vmatprep.subr.bf16.mxu0 0
    %3131 = vmatpush2.bf16.msra.mxu0 %v2963
    %3132 = vmatprep.subr.bf16.mxu0 0
    %3133 = vmatpush2.bf16.msra.mxu0 %v2962
    %3134 = vmatprep.subr.bf16.mxu0 0
    %3135 = vmatpush2.bf16.msra.mxu0 %v2961
    %3136 = vmatprep.subr.bf16.mxu0 0
    %3137 = vmatpush2.bf16.msra.mxu0 %v2960
    %3138 = vmatprep.subr.bf16.mxu0 0
    %3139 = vmatpush2.bf16.msra.mxu0 %v2959
    %3140 = vmatprep.mubr.bf16.mxu0 %v2610
    %3141 = vmatmul.mubr.bf16.gmra.mxu0 %v2609
    %v3142 = vpop.f32.mrf.mxu0
    %v3143 = vadd.f32 %v3082, %v3142
    %v3144 = vpop.f32.mrf.mxu0
    %v3145 = vpop.f32.mrf.mxu0
    %v3146 = vpop.f32.mrf.mxu0
    %3147 = vmatprep.mubr.bf16.mxu0 %v2617
    %3148 = vmatmul.mubr.bf16.gmra.mxu0 %v2616
    %v3149 = vpop.f32.mrf.mxu0
    %v3150 = vadd.f32 %v3089, %v3149
    %v3151 = vpop.f32.mrf.mxu0
    %v3152 = vpop.f32.mrf.mxu0
    %v3153 = vpop.f32.mrf.mxu0
    %3154 = vmatprep.mubr.bf16.mxu0 %v2624
    %3155 = vmatmul.mubr.bf16.gmra.mxu0 %v2623
    %v3156 = vpop.f32.mrf.mxu0
    %v3157 = vadd.f32 %v3096, %v3156
    %v3158 = vpop.f32.mrf.mxu0
    %v3159 = vpop.f32.mrf.mxu0
    %v3160 = vpop.f32.mrf.mxu0
    %3161 = vmatprep.mubr.bf16.mxu0 %v2631
    %3162 = vmatmul.mubr.bf16.gmra.mxu0 %v2630
    %v3163 = vpop.f32.mrf.mxu0
    %v3164 = vadd.f32 %v3103, %v3163
    %v3165 = vpop.f32.mrf.mxu0
    %v3166 = vpop.f32.mrf.mxu0
    %v3167 = vpop.f32.mrf.mxu0
    %3168 = vdwg.mxu0
    %3169 = vmatprep.subr.bf16.mxu0 0
    %3170 = vmatpush1.bf16.msra.mxu0 %v2974
    %3171 = vmatprep.subr.bf16.mxu0 0
    %3172 = vmatpush1.bf16.msra.mxu0 %v2973
    %3173 = vmatprep.subr.bf16.mxu0 0
    %3174 = vmatpush1.bf16.msra.mxu0 %v2972
    %3175 = vmatprep.subr.bf16.mxu0 0
    %3176 = vmatpush1.bf16.msra.mxu0 %v2971
    %3177 = vmatprep.subr.bf16.mxu0 0
    %3178 = vmatpush1.bf16.msra.mxu0 %v2970
    %3179 = vmatprep.subr.bf16.mxu0 0
    %3180 = vmatpush1.bf16.msra.mxu0 %v2969
    %3181 = vmatprep.subr.bf16.mxu0 0
    %3182 = vmatpush1.bf16.msra.mxu0 %v2968
    %3183 = vmatprep.subr.bf16.mxu0 0
    %3184 = vmatpush1.bf16.msra.mxu0 %v2967
    %3185 = vmatprep.subr.bf16.mxu0 0
    %3186 = vmatpush2.bf16.msra.mxu0 %v2982
    %3187 = vmatprep.subr.bf16.mxu0 0
    %3188 = vmatpush2.bf16.msra.mxu0 %v2981
    %3189 = vmatprep.subr.bf16.mxu0 0
    %3190 = vmatpush2.bf16.msra.mxu0 %v2980
    %3191 = vmatprep.subr.bf16.mxu0 0
    %3192 = vmatpush2.bf16.msra.mxu0 %v2979
    %3193 = vmatprep.subr.bf16.mxu0 0
    %3194 = vmatpush2.bf16.msra.mxu0 %v2978
    %3195 = vmatprep.subr.bf16.mxu0 0
    %3196 = vmatpush2.bf16.msra.mxu0 %v2977
    %3197 = vmatprep.subr.bf16.mxu0 0
    %3198 = vmatpush2.bf16.msra.mxu0 %v2976
    %3199 = vmatprep.subr.bf16.mxu0 0
    %3200 = vmatpush2.bf16.msra.mxu0 %v2975
    %3201 = vmatprep.mubr.bf16.mxu0 %v2612
    %3202 = vmatmul.mubr.bf16.gmra.mxu0 %v2611
    %v3203 = vpop.f32.mrf.mxu0
    %v3204 = vadd.f32 %v3143, %v3203
    %v3205 = vpop.f32.mrf.mxu0
    %v3206 = vpop.f32.mrf.mxu0
    %v3207 = vpop.f32.mrf.mxu0
    %3208 = vmatprep.mubr.bf16.mxu0 %v2619
    %3209 = vmatmul.mubr.bf16.gmra.mxu0 %v2618
    %v3210 = vpop.f32.mrf.mxu0
    %v3211 = vadd.f32 %v3150, %v3210
    %v3212 = vpop.f32.mrf.mxu0
    %v3213 = vpop.f32.mrf.mxu0
    %v3214 = vpop.f32.mrf.mxu0
    %3215 = vmatprep.mubr.bf16.mxu0 %v2626
    %3216 = vmatmul.mubr.bf16.gmra.mxu0 %v2625
    %v3217 = vpop.f32.mrf.mxu0
    %v3218 = vadd.f32 %v3157, %v3217
    %v3219 = vpop.f32.mrf.mxu0
    %v3220 = vpop.f32.mrf.mxu0
    %v3221 = vpop.f32.mrf.mxu0
    %3222 = vmatprep.mubr.bf16.mxu0 %v2633
    %3223 = vmatmul.mubr.bf16.gmra.mxu0 %v2632
    %v3224 = vpop.f32.mrf.mxu0
    %v3225 = vadd.f32 %v3164, %v3224
    %v3226 = vpop.f32.mrf.mxu0
    %v3227 = vpop.f32.mrf.mxu0
    %v3228 = vpop.f32.mrf.mxu0
    %3229 = vdwg.mxu0
    %3230 = vmatprep.subr.bf16.mxu0 0
    %3231 = vmatpush1.bf16.msra.mxu0 0
    %3232 = vmatprep.subr.bf16.mxu0 0
    %3233 = vmatpush1.bf16.msra.mxu0 0
    %3234 = vmatprep.subr.bf16.mxu0 0
    %3235 = vmatpush1.bf16.msra.mxu0 0
    %3236 = vmatprep.subr.bf16.mxu0 0
    %3237 = vmatpush1.bf16.msra.mxu0 0
    %3238 = vmatprep.subr.bf16.mxu0 0
    %3239 = vmatpush1.bf16.msra.mxu0 0
    %3240 = vmatprep.subr.bf16.mxu0 0
    %3241 = vmatpush1.bf16.msra.mxu0 0
    %3242 = vmatprep.subr.bf16.mxu0 0
    %3243 = vmatpush1.bf16.msra.mxu0 %v2984
    %3244 = vmatprep.subr.bf16.mxu0 0
    %3245 = vmatpush1.bf16.msra.mxu0 %v2983
    %3246 = vmatprep.subr.bf16.mxu0 0
    %3247 = vmatpush2.bf16.msra.mxu0 0
    %3248 = vmatprep.subr.bf16.mxu0 0
    %3249 = vmatpush2.bf16.msra.mxu0 0
    %3250 = vmatprep.subr.bf16.mxu0 0
    %3251 = vmatpush2.bf16.msra.mxu0 0
    %3252 = vmatprep.subr.bf16.mxu0 0
    %3253 = vmatpush2.bf16.msra.mxu0 0
    %3254 = vmatprep.subr.bf16.mxu0 0
    %3255 = vmatpush2.bf16.msra.mxu0 0
    %3256 = vmatprep.subr.bf16.mxu0 0
    %3257 = vmatpush2.bf16.msra.mxu0 0
    %3258 = vmatprep.subr.bf16.mxu0 0
    %3259 = vmatpush2.bf16.msra.mxu0 0
    %3260 = vmatprep.subr.bf16.mxu0 0
    %3261 = vmatpush2.bf16.msra.mxu0 0
    %3262 = vmatprep.mubr.bf16.mxu0 0
    %3263 = vmatmul.mubr.bf16.gmra.mxu0 %v3036
    %v3264 = vpop.f32.mrf.mxu0
    %v3265 = vadd.f32 %v3204, %v3264
    %v3266 = vpop.f32.mrf.mxu0
    %v3267 = vpop.f32.mrf.mxu0
    %v3268 = vpop.f32.mrf.mxu0
    %3269 = vmatprep.mubr.bf16.mxu0 0
    %3270 = vmatmul.mubr.bf16.gmra.mxu0 %v3039
    %v3271 = vpop.f32.mrf.mxu0
    %v3272 = vadd.f32 %v3211, %v3271
    %v3273 = vpop.f32.mrf.mxu0
    %v3274 = vpop.f32.mrf.mxu0
    %v3275 = vpop.f32.mrf.mxu0
    %3276 = vmatprep.mubr.bf16.mxu0 0
    %3277 = vmatmul.mubr.bf16.gmra.mxu0 %v3042
    %v3278 = vpop.f32.mrf.mxu0
    %v3279 = vadd.f32 %v3218, %v3278
    %v3280 = vpop.f32.mrf.mxu0
    %v3281 = vpop.f32.mrf.mxu0
    %v3282 = vpop.f32.mrf.mxu0
    %3283 = vmatprep.mubr.bf16.mxu0 0
    %3284 = vmatmul.mubr.bf16.gmra.mxu0 %v3045
    %v3285 = vpop.f32.mrf.mxu0
    %v3286 = vadd.f32 %v3225, %v3285
    %v3287 = vpop.f32.mrf.mxu0
    %v3288 = vpop.f32.mrf.mxu0
    %v3289 = vpop.f32.mrf.mxu0
    %3290 = vdwg.mxu0
    %v3291 = vmax.f32 %v3265, %v3272
    %v3292 = vmax.f32 %v3279, %v3286
    %v3294 = vrot.slane %v3291, 2
    %v3296 = vmax.f32 %v3291, %v3294
    %v3297 = vld [vmem:[%s4] sm:$0x1]
    %v3299 = vlaneseq
    %v3300 = vshrl.u32 %v3299, 7
    %v3301 = vsub.s32 0, %v3300
    %v3302 = vrot.slane %v3297, %v3301
    %v3304 = vadd.f32 %v3296, %v3302
    %v3305 = vmax.f32 %v3304, 0.0
    %v3307 = vrot.slane %v3292, 2
    %v3309 = vmax.f32 %v3292, %v3307
    %v3310 = vadd.f32 %v3309, %v3302
    %v3311 = vmax.f32 %v3310, 0.0
    %3313 = vrot.lane.b32.xlu0 %v3311, 64
    %v3314 = vpop.permute.xlu0 %3313
    %v3317 = vrot.slane %v3305, 4
    %v3319 = vrot.slane %v3311, 4
    %3320 = vrot.lane.b32.xlu0 %v3319, 64
    %v3321 = vpop.permute.xlu0 %3320
    %vm3323 = vcmask 523264
    %v3324 = vsel %vm3323, %v3305, %v3314
    %v3325 = vsel %vm3323, %v3317, %v3321
    %v3326 = vpack.c.bf16 %v3324, %v3324
    %v3327 = vpack.c.bf16 %v3325, %v3325
    %v3328 = vld [vmem:[%s5] sm:$0xf]
    %v3329 = vld [vmem:[%s5 + $0x4] sm:$0xf]
    %v3330 = vld [vmem:[%s5 + $0x8] sm:$0xf]
    %v3331 = vld [vmem:[%s5 + $0xc] sm:$0xf]
    %v3332 = vld [vmem:[%s5 + $0x10] sm:$0xf]
    %v3333 = vld [vmem:[%s5 + $0x14] sm:$0xf]
    %v3334 = vld [vmem:[%s5 + $0x18] sm:$0xf]
    %v3335 = vld [vmem:[%s5 + $0x1c] sm:$0xf]
    %v3336 = vld [vmem:[%s5 + $0x20] sm:$0xf]
    %v3337 = vld [vmem:[%s5 + $0x24] sm:$0xf]
    %v3338 = vld [vmem:[%s5 + $0x28] sm:$0xf]
    %v3339 = vld [vmem:[%s5 + $0x2c] sm:$0xf]
    %v3340 = vld [vmem:[%s5 + $0x30] sm:$0xf]
    %v3341 = vld [vmem:[%s5 + $0x34] sm:$0xf]
    %v3342 = vld [vmem:[%s5 + $0x38] sm:$0xf]
    %v3343 = vld [vmem:[%s5 + $0x3c] sm:$0xf]
    %v3344 = vld [vmem:[%s5 + $0x40] sm:$0xf]
    %v3345 = vld [vmem:[%s5 + $0x44] sm:$0xf]
    %v3346 = vld [vmem:[%s5 + $0x48] sm:$0xf]
    %v3347 = vld [vmem:[%s5 + $0x4c] sm:$0xf]
    %v3348 = vld [vmem:[%s5 + $0x50] sm:$0xf]
    %v3349 = vld [vmem:[%s5 + $0x54] sm:$0xf]
    %v3350 = vld [vmem:[%s5 + $0x58] sm:$0xf]
    %v3351 = vld [vmem:[%s5 + $0x5c] sm:$0xf]
    %v3352 = vld [vmem:[%s5 + $0x60] sm:$0xf]
    %v3353 = vld [vmem:[%s5 + $0x64] sm:$0xf]
    %v3354 = vld [vmem:[%s5 + $0x68] sm:$0xf]
    %v3355 = vld [vmem:[%s5 + $0x6c] sm:$0xf]
    %v3356 = vld [vmem:[%s5 + $0x70] sm:$0xf]
    %v3357 = vld [vmem:[%s5 + $0x74] sm:$0xf]
    %v3358 = vld [vmem:[%s5 + $0x78] sm:$0xf]
    %v3359 = vld [vmem:[%s5 + $0x7c] sm:$0xf]
    %v3360 = vld [vmem:[%s6] sm:$0x1]
    %v3362 = vlaneseq
    %v3363 = vshrl.u32 %v3362, 7
    %v3364 = vsub.s32 0, %v3363
    %v3365 = vrot.slane %v3360, %v3364
    %v3399 = vunpack.c.l.b16 %v3328
    %v3400 = vunpack.c.l.b16 %v3329
    %v3401 = vunpack.c.l.b16 %v3330
    %v3402 = vunpack.c.l.b16 %v3331
    %v3403 = vunpack.c.l.b16 %v3332
    %v3404 = vunpack.c.l.b16 %v3333
    %v3405 = vunpack.c.l.b16 %v3334
    %v3406 = vunpack.c.l.b16 %v3335
    %v3407 = vunpack.c.l.b16 %v3336
    %v3408 = vunpack.c.l.b16 %v3337
    %v3409 = vunpack.c.l.b16 %v3338
    %v3410 = vunpack.c.l.b16 %v3339
    %v3411 = vunpack.c.l.b16 %v3340
    %v3412 = vunpack.c.l.b16 %v3341
    %v3413 = vunpack.c.l.b16 %v3342
    %v3414 = vunpack.c.l.b16 %v3343
    %v3415 = vunpack.c.l.b16 %v3344
    %v3416 = vunpack.c.l.b16 %v3345
    %v3417 = vunpack.c.l.b16 %v3346
    %v3418 = vunpack.c.l.b16 %v3347
    %v3419 = vunpack.c.l.b16 %v3348
    %v3420 = vunpack.c.l.b16 %v3349
    %v3421 = vunpack.c.l.b16 %v3350
    %v3422 = vunpack.c.l.b16 %v3351
    %v3423 = vunpack.c.l.b16 %v3352
    %v3424 = vunpack.c.l.b16 %v3353
    %v3425 = vunpack.c.l.b16 %v3354
    %v3426 = vunpack.c.l.b16 %v3355
    %v3427 = vunpack.c.l.b16 %v3356
    %v3428 = vunpack.c.l.b16 %v3357
    %v3429 = vunpack.c.l.b16 %v3358
    %v3430 = vunpack.c.l.b16 %v3359
    %v3431 = vpack.c.b16 %v3400, %v3399
    %v3432 = vpack.c.b16 %v3402, %v3401
    %v3433 = vpack.c.b16 %v3404, %v3403
    %v3434 = vpack.c.b16 %v3406, %v3405
    %v3435 = vpack.c.b16 %v3408, %v3407
    %v3436 = vpack.c.b16 %v3410, %v3409
    %v3437 = vpack.c.b16 %v3412, %v3411
    %v3438 = vpack.c.b16 %v3414, %v3413
    %v3439 = vpack.c.b16 %v3416, %v3415
    %v3440 = vpack.c.b16 %v3418, %v3417
    %v3441 = vpack.c.b16 %v3420, %v3419
    %v3442 = vpack.c.b16 %v3422, %v3421
    %v3443 = vpack.c.b16 %v3424, %v3423
    %v3444 = vpack.c.b16 %v3426, %v3425
    %v3445 = vpack.c.b16 %v3428, %v3427
    %v3446 = vpack.c.b16 %v3430, %v3429
    %3463 = vmatprep.subr.bf16.mxu0 0
    %3464 = vmatpush1.bf16.msra.mxu0 %v3438
    %3465 = vmatprep.subr.bf16.mxu0 0
    %3466 = vmatpush1.bf16.msra.mxu0 %v3437
    %3467 = vmatprep.subr.bf16.mxu0 0
    %3468 = vmatpush1.bf16.msra.mxu0 %v3436
    %3469 = vmatprep.subr.bf16.mxu0 0
    %3470 = vmatpush1.bf16.msra.mxu0 %v3435
    %3471 = vmatprep.subr.bf16.mxu0 0
    %3472 = vmatpush1.bf16.msra.mxu0 %v3434
    %3473 = vmatprep.subr.bf16.mxu0 0
    %3474 = vmatpush1.bf16.msra.mxu0 %v3433
    %3475 = vmatprep.subr.bf16.mxu0 0
    %3476 = vmatpush1.bf16.msra.mxu0 %v3432
    %3477 = vmatprep.subr.bf16.mxu0 0
    %3478 = vmatpush1.bf16.msra.mxu0 %v3431
    %3479 = vmatprep.subr.bf16.mxu0 0
    %3480 = vmatpush2.bf16.msra.mxu0 %v3446
    %3481 = vmatprep.subr.bf16.mxu0 0
    %3482 = vmatpush2.bf16.msra.mxu0 %v3445
    %3483 = vmatprep.subr.bf16.mxu0 0
    %3484 = vmatpush2.bf16.msra.mxu0 %v3444
    %3485 = vmatprep.subr.bf16.mxu0 0
    %3486 = vmatpush2.bf16.msra.mxu0 %v3443
    %3487 = vmatprep.subr.bf16.mxu0 0
    %3488 = vmatpush2.bf16.msra.mxu0 %v3442
    %3489 = vmatprep.subr.bf16.mxu0 0
    %3490 = vmatpush2.bf16.msra.mxu0 %v3441
    %3491 = vmatprep.subr.bf16.mxu0 0
    %3492 = vmatpush2.bf16.msra.mxu0 %v3440
    %3493 = vmatprep.subr.bf16.mxu0 0
    %3494 = vmatpush2.bf16.msra.mxu0 %v3439
    %3495 = vmatprep.mubr.bf16.mxu0 %v3327
    %3496 = vmatmul.mubr.bf16.gmra.mxu0 %v3326
    %v3497 = vpop.f32.mrf.mxu0
    %v3498 = vadd.f32 %v3365, %v3497
    %v3499 = vpop.f32.mrf.mxu0
    %v3500 = vpop.f32.mrf.mxu0
    %v3501 = vpop.f32.mrf.mxu0
    %3502 = vdwg.mxu0
    %v3503 = vmax.f32 %v3498, 0.0
    %v3504 = vpack.c.bf16 %v3503, %v3503
    %v3505 = vld [vmem:[%s7] sm:$0xf]
    %v3506 = vld [vmem:[%s7 + $0x4] sm:$0xf]
    %v3507 = vld [vmem:[%s7 + $0x8] sm:$0xf]
    %v3508 = vld [vmem:[%s7 + $0xc] sm:$0xf]
    %v3509 = vld [vmem:[%s8] sm:$0x1]
    %v3511 = vlaneseq
    %v3512 = vshrl.u32 %v3511, 7
    %v3513 = vsub.s32 0, %v3512
    %v3514 = vrot.slane %v3509, %v3513
    %v3520 = vunpack.c.l.b16 %v3505
    %v3521 = vunpack.c.l.b16 %v3506
    %v3522 = vunpack.c.l.b16 %v3507
    %v3523 = vunpack.c.l.b16 %v3508
    %v3524 = vpack.c.b16 %v3521, %v3520
    %v3525 = vpack.c.b16 %v3523, %v3522
    %v3529 = vsel %vm1553, %v3504, 0
    %3531 = vmatprep.subr.bf16.mxu0 0
    %3532 = vmatpush1.bf16.msra.mxu0 0
    %3533 = vmatprep.subr.bf16.mxu0 0
    %3534 = vmatpush1.bf16.msra.mxu0 0
    %3535 = vmatprep.subr.bf16.mxu0 0
    %3536 = vmatpush1.bf16.msra.mxu0 0
    %3537 = vmatprep.subr.bf16.mxu0 0
    %3538 = vmatpush1.bf16.msra.mxu0 0
    %3539 = vmatprep.subr.bf16.mxu0 0
    %3540 = vmatpush1.bf16.msra.mxu0 0
    %3541 = vmatprep.subr.bf16.mxu0 0
    %3542 = vmatpush1.bf16.msra.mxu0 0
    %3543 = vmatprep.subr.bf16.mxu0 0
    %3544 = vmatpush1.bf16.msra.mxu0 %v3525
    %3545 = vmatprep.subr.bf16.mxu0 0
    %3546 = vmatpush1.bf16.msra.mxu0 %v3524
    %3547 = vmatprep.subr.bf16.mxu0 0
    %3548 = vmatpush2.bf16.msra.mxu0 0
    %3549 = vmatprep.subr.bf16.mxu0 0
    %3550 = vmatpush2.bf16.msra.mxu0 0
    %3551 = vmatprep.subr.bf16.mxu0 0
    %3552 = vmatpush2.bf16.msra.mxu0 0
    %3553 = vmatprep.subr.bf16.mxu0 0
    %3554 = vmatpush2.bf16.msra.mxu0 0
    %3555 = vmatprep.subr.bf16.mxu0 0
    %3556 = vmatpush2.bf16.msra.mxu0 0
    %3557 = vmatprep.subr.bf16.mxu0 0
    %3558 = vmatpush2.bf16.msra.mxu0 0
    %3559 = vmatprep.subr.bf16.mxu0 0
    %3560 = vmatpush2.bf16.msra.mxu0 0
    %3561 = vmatprep.subr.bf16.mxu0 0
    %3562 = vmatpush2.bf16.msra.mxu0 0
    %3563 = vmatprep.mubr.bf16.mxu0 0
    %3564 = vmatmul.mubr.bf16.gmra.mxu0 %v3529
    %v3565 = vpop.f32.mrf.mxu0
    %v3566 = vadd.f32 %v3514, %v3565
    %v3567 = vpop.f32.mrf.mxu0
    %v3568 = vpop.f32.mrf.mxu0
    %v3569 = vpop.f32.mrf.mxu0
    %3570 = vdwg.mxu0
    %3571 = vst [vmem:[#allocation4] sm:$0x3] %v3566
    // Predicated region
    $region38: #{net_forward.1} parent=1 // pred_check
      _
    $region39: #{net_forward.1} parent=1 // pred_check_branch
      %3573 = sbr.rel (0) target = $region41
    $region40: #{net_forward.1} parent=1 // pred_region
      %s3575 = ssub.s32 32, 32
      %3576 = vsyncadd [#allocation5], %s3575
      %s3578 = sshll.u32 [#allocation4], 4
      %s3579 = int_to_ptr.vmem [resolvable:$true] %s3578
      %3581 = dma.vmem_to_hbm [thread:$0]  %s3579, 32, %s9, [#allocation5]
    $region41: #{net_forward.1} parent=1 // pred_fallthru
      _
    // Predicated region
    $region42: #{net_forward.1} parent=1 // pred_check
      _
    $region43: #{net_forward.1} parent=1 // pred_check_branch
      %3583 = sbr.rel (0) target = $region45
    $region44: #{net_forward.1} parent=1 // pred_region
      %3584 = dma.done [#allocation5], 32
    $region45: #{net_forward.1} parent=1 // pred_fallthru
      _
    %3585 = vsyncpa [#allocation5], 1

</llo_original>
